<compile_context>
chip_gen: v5e
topology: v5e:2x2
jax: 0.10.0
libtpu: 0.0.40
codegen_flags: <defaults>
</compile_context>

<pallas_src>
import functools

import jax
import jax.numpy as jnp
from jax.experimental import pallas as pl
from jax.experimental.pallas import tpu as pltpu

# ---------------------------------------------------------------------------
# Static ATCNet hyper-parameters (canonical values; F2 == feature_dim == 32).
# ---------------------------------------------------------------------------
F1 = 16            # temporal conv filters
D_MULT = 2         # depthwise multiplier
F2 = F1 * D_MULT   # = 32 == ATCNetModel.feature_dim
K1 = 64            # conv block: first temporal conv kernel
K2 = 16            # conv block: third temporal conv kernel
POOL1 = 8          # first average pool along time
POOL2 = 7          # second average pool along time
N_WINDOWS = 3      # sliding windows
NUM_HEADS = 2      # MHA heads
HEAD_DIM = F2 // NUM_HEADS
TCN_KERNEL = 4     # TCN conv kernel size
TCN_DEPTH = 2      # TCN residual blocks (dilations 1, 2)
LN_EPS = 1e-6
BN_EPS = 1e-5
NEG_INF = -1e30


def _elu(x):
    return jnp.where(x > 0, x, jnp.exp(jnp.minimum(x, 0.0)) - 1.0)


# ---------------------------------------------------------------------------
# Kernel 1: fused EEGNet-style conv block (one grid step per batch sample).
#   conv1+BN1+depthwise+BN2 folded into one matmul, pools done as matmuls,
#   conv3+BN3 as a second matmul; only the tiny (F2, Tc) result leaves VMEM.
# ---------------------------------------------------------------------------
def _conv_block_kernel(x_ref, wc_ref, w3_ref, vec_ref, p1_ref, p2_ref, o_ref,
                       *, t_len):
    x = x_ref[0].astype(jnp.float32)                       # (E, T + K1 - 1), pre-padded

    # --- conv1 + BN1 + depthwise + BN2 as one MXU contraction over (k, e) ---
    # taps built in VMEM from the slab: row (k*E + e) = x[e, k : k + T]
    taps1 = jnp.concatenate([x[:, k:k + t_len] for k in range(K1)], axis=0)
    h = jax.lax.dot_general(
        wc_ref[...], taps1,
        dimension_numbers=(((1,), (0,)), ((), ())),
        preferred_element_type=jnp.float32)                # (F2, T) lane-dense
    h = _elu(h + vec_ref[:, 0:1])

    # --- AvgPool(1, POOL1) as a matmul (time stays on the lane axis) ---
    h = jax.lax.dot_general(
        h, p1_ref[...],
        dimension_numbers=(((1,), (0,)), ((), ())),
        preferred_element_type=jnp.float32)                # (F2, T1)
    t1 = h.shape[1]

    # --- conv3 ('same', K2) + BN3 + ELU ---
    lpad, rpad = (K2 - 1) // 2, K2 // 2
    hp = jnp.concatenate(
        [jnp.zeros((F2, lpad), jnp.float32), h, jnp.zeros((F2, rpad), jnp.float32)],
        axis=1)
    taps3 = jnp.concatenate([hp[:, m:m + t1] for m in range(K2)], axis=0)
    h = jax.lax.dot_general(
        w3_ref[...], taps3,
        dimension_numbers=(((1,), (0,)), ((), ())),
        preferred_element_type=jnp.float32)                # (F2, T1)
    h = _elu(h + vec_ref[:, 1:2])

    # --- AvgPool(1, POOL2) as a matmul ---
    h = jax.lax.dot_general(
        h, p2_ref[...],
        dimension_numbers=(((1,), (0,)), ((), ())),
        preferred_element_type=jnp.float32)                # (F2, Tc)
    o_ref[0] = h.astype(o_ref.dtype)


# ---------------------------------------------------------------------------
# Kernel 2: fused "tail" = pre-LN MHA + residual, two dilated-causal TCN
# residual blocks, last-timestep feature.  Grid over the window-batch axis.
# ---------------------------------------------------------------------------
def _tail_kernel(z_ref, wqkv_ref, wo_ref, wtcn_ref, vec_ref, o_ref, *, wt):
    x = z_ref[...].astype(jnp.float32)                     # (G, TP, F2), TP % 8 == 0
    g, tp, d = x.shape
    x2 = x.reshape(g * tp, d)                              # layout-free (TP mult of 8)

    # ---- pre-LN multi-head self-attention + residual ----
    mu = jnp.mean(x2, axis=-1, keepdims=True)
    var = jnp.mean(jnp.square(x2 - mu), axis=-1, keepdims=True)
    xn = (x2 - mu) * jax.lax.rsqrt(var + LN_EPS)
    xn = xn * vec_ref[0:1, :] + vec_ref[1:2, :]

    # single QKV matmul against the stacked (3*F2, F2) weight
    qkv = jax.lax.dot_general(
        xn, wqkv_ref[...],
        dimension_numbers=(((1,), (1,)), ((), ())),
        preferred_element_type=jnp.float32)                # (G*TP, 96)
    q = (qkv[:, 0:d] + vec_ref[2:3, :]).reshape(g, tp, d)
    k = (qkv[:, d:2 * d] + vec_ref[3:4, :]).reshape(g, tp, d)
    v = (qkv[:, 2 * d:3 * d] + vec_ref[4:5, :]).reshape(g, tp, d)

    scale = 1.0 / (HEAD_DIM ** 0.5)
    key_idx = jax.lax.broadcasted_iota(jnp.int32, (g, tp, tp), 2)
    attn = jnp.zeros((g * tp, d), jnp.float32)
    for h in range(NUM_HEADS):
        sl = slice(h * HEAD_DIM, (h + 1) * HEAD_DIM)
        s = jnp.einsum('gqd,gkd->gqk', q[..., sl], k[..., sl],
                       preferred_element_type=jnp.float32) * scale
        s = jnp.where(key_idx < wt, s, NEG_INF)            # mask end padding
        s = s - jnp.max(s, axis=-1, keepdims=True)
        p = jnp.exp(s)
        p = p / jnp.sum(p, axis=-1, keepdims=True)
        ctx = jnp.einsum('gqk,gkd->gqd', p, v[..., sl],
                         preferred_element_type=jnp.float32)
        # fold the head into the output projection -> no lane concatenate
        attn = attn + jax.lax.dot_general(
            ctx.reshape(g * tp, HEAD_DIM), wo_ref[:, sl],
            dimension_numbers=(((1,), (1,)), ((), ())),
            preferred_element_type=jnp.float32)
    y = x2 + attn + vec_ref[5:6, :]                        # residual

    # ---- dilated causal TCN residual blocks ----
    for j in range(TCN_DEPTH):
        dil = 2 ** j
        pad = (TCN_KERNEL - 1) * dil
        res = y
        for c in range(2):
            w = wtcn_ref[(2 * j + c) * F2:(2 * j + c + 1) * F2, :]   # (F2, K*F2)
            b = vec_ref[6 + 2 * j + c:7 + 2 * j + c, :]
            y3 = y.reshape(g, tp, d)
            yp = jnp.concatenate(
                [jnp.zeros((g, pad, d), jnp.float32), y3], axis=1)
            # 4 taps packed along lanes -> one (g*tp, 128) x (32, 128) matmul
            taps = jnp.concatenate(
                [yp[:, kk * dil:kk * dil + tp, :] for kk in range(TCN_KERNEL)],
                axis=-1)
            y = jax.lax.dot_general(
                taps.reshape(g * tp, TCN_KERNEL * d), w,
                dimension_numbers=(((1,), (1,)), ((), ())),
                preferred_element_type=jnp.float32)
            y = _elu(y + b)
        y = _elu(y + res)

    o_ref[0] = y.reshape(g, tp, d)[:, wt - 1, :].astype(o_ref.dtype)


# ---------------------------------------------------------------------------
# Parameter preparation: fold BN into weights, build the packed slabs.
# ---------------------------------------------------------------------------
def prepare_params(p, num_electrodes, chunk_size):
    t = chunk_size
    t1 = t // POOL1
    tc = t1 // POOL2
    f1_of_f2 = jnp.arange(F2) // D_MULT

    s1, sh1 = p['bn1_s'][f1_of_f2], p['bn1_sh'][f1_of_f2]          # per F2 channel
    s2, sh2 = p['bn2_s'], p['bn2_sh']
    s3, sh3 = p['bn3_s'], p['bn3_sh']
    w1 = p['conv1_w'][f1_of_f2]                                    # (F2, K1)
    dw = p['dw_w']                                                 # (F2, E)

    # conv1 -> BN1 -> depthwise -> BN2 folded: wc[f2, k*E+e]
    wc = (s2 * s1)[:, None, None] * w1[:, :, None] * dw[:, None, :]
    wc = wc.reshape(F2, K1 * num_electrodes)
    b2 = s2 * sh1 * jnp.sum(dw, axis=1) + sh2

    # conv3 -> BN3 folded: w3[g, m*F2+f]
    w3 = (s3[:, None, None] * jnp.transpose(p['conv3_w'], (0, 2, 1)))
    w3 = w3.reshape(F2, K2 * F2)
    b3 = sh3
    conv_vec = jnp.stack([b2, b3], axis=1)                         # (F2, 2)

    pool1 = (jnp.arange(t)[:, None] // POOL1
             == jnp.arange(t1)[None, :]).astype(jnp.float32) / POOL1
    pool2 = (jnp.arange(t1)[:, None] // POOL2
             == jnp.arange(tc)[None, :]).astype(jnp.float32) / POOL2

    a = p['attn']
    wqkv = jnp.concatenate([a['wq'], a['wk'], a['wv']], axis=0)    # (96, F2)
    vec_rows = [a['ln_w'], a['ln_b'], a['bq'], a['bk'], a['bv'], a['bo']]
    tcn_rows = []
    for blk in p['tcn']:
        for j in (1, 2):
            w = jnp.transpose(blk[f'w{j}'], (0, 2, 1)).reshape(F2, TCN_KERNEL * F2)
            tcn_rows.append(blk[f's{j}'][:, None] * w)             # BN scale folded
            vec_rows.append(blk[f'b{j}'] * blk[f's{j}'] + blk[f'sh{j}'])
    wtcn = jnp.concatenate(tcn_rows, axis=0)                       # (128, 128)
    vecs = jnp.stack(vec_rows, axis=0)                             # (10, F2)
    return dict(wc=wc, w3=w3, conv_vec=conv_vec, pool1=pool1, pool2=pool2,
                wqkv=wqkv, wo=a['wo'], wtcn=wtcn, vecs=vecs)


# ---------------------------------------------------------------------------
# Full ATCNet encoder forward (== ATCNetModel.forward) via two Pallas launches.
# ---------------------------------------------------------------------------
def atcnet_forward_pallas(params, x):
    """x: (B, num_electrodes, chunk_size) or (B, 1, E, T) -> (B, F2) features."""
    if x.ndim == 4:
        x = x.reshape(x.shape[0], x.shape[-2], x.shape[-1])
    x = x.astype(jnp.float32)
    b, e, t = x.shape
    assert t % (POOL1 * POOL2) == 0, "chunk_size must be divisible by 56"
    t1 = t // POOL1
    tc = t1 // POOL2
    assert tc >= N_WINDOWS, "chunk_size too small for the sliding windows"

    prep = prepare_params(params, e, t)

    # ---- fused conv block: one launch, grid over batch ----
    lpad, rpad = (K1 - 1) // 2, K1 // 2
    xp = jnp.pad(x, ((0, 0), (0, 0), (lpad, rpad)))
    tp1 = t + K1 - 1
    conv_out = pl.pallas_call(
        functools.partial(_conv_block_kernel, t_len=t),
        out_shape=jax.ShapeDtypeStruct((b, F2, tc), jnp.float32),
        grid=(b,),
        in_specs=[
            pl.BlockSpec((1, e, tp1), lambda i: (i, 0, 0)),
            pl.BlockSpec((F2, K1 * e), lambda i: (0, 0)),
            pl.BlockSpec((F2, K2 * F2), lambda i: (0, 0)),
            pl.BlockSpec((F2, 2), lambda i: (0, 0)),
            pl.BlockSpec((t, t1), lambda i: (0, 0)),
            pl.BlockSpec((t1, tc), lambda i: (0, 0)),
        ],
        out_specs=pl.BlockSpec((1, F2, tc), lambda i: (i, 0, 0)),
        compiler_params=pltpu.CompilerParams(dimension_semantics=("parallel",)),
    )(xp, prep['wc'], prep['w3'], prep['conv_vec'], prep['pool1'], prep['pool2'])

    h = jnp.transpose(conv_out, (0, 2, 1))                 # (B, Tc, F2) tiny glue

    # ---- sliding windows, padded to a sublane multiple of 8 ----
    wt = tc - N_WINDOWS + 1
    tpad = -(-wt // 8) * 8
    z = jnp.stack([h[:, w:w + wt, :] for w in range(N_WINDOWS)], axis=0)
    g = N_WINDOWS * b
    z = z.reshape(g, wt, F2)
    n_prog = 2 if g >= 2 else 1                            # both v7x TensorCores
    gb = -(-g // n_prog)
    z = jnp.pad(z, ((0, n_prog * gb - g), (0, tpad - wt), (0, 0)))

    feat = pl.pallas_call(
        functools.partial(_tail_kernel, wt=wt),
        out_shape=jax.ShapeDtypeStruct((n_prog, gb, F2), jnp.float32),
        grid=(n_prog,),
        in_specs=[
            pl.BlockSpec((gb, tpad, F2), lambda i: (i, 0, 0)),
            pl.BlockSpec((3 * F2, F2), lambda i: (0, 0)),
            pl.BlockSpec((F2, F2), lambda i: (0, 0)),
            pl.BlockSpec((2 * TCN_DEPTH * F2, TCN_KERNEL * F2), lambda i: (0, 0)),
            pl.BlockSpec((6 + 2 * TCN_DEPTH, F2), lambda i: (0, 0)),
        ],
        out_specs=pl.BlockSpec((1, gb, F2), lambda i: (i, 0, 0)),
        compiler_params=pltpu.CompilerParams(dimension_semantics=("parallel",)),
    )(z, prep['wqkv'], prep['wo'], prep['wtcn'], prep['vecs'])

    feat = feat.reshape(n_prog * gb, F2)[:g].reshape(N_WINDOWS, b, F2)
    # TODO(synk): ATCNetEncoder source was not in the spec; the per-window
    # aggregation is assumed to be a mean of last-timestep features (no classifier).
    return feat.mean(axis=0)                               # (B, F2)


# ---------------------------------------------------------------------------
# Pure-JAX reference of the same math (raw, un-folded parameters).
# ---------------------------------------------------------------------------
def atcnet_forward_ref(params, x):
    if x.ndim == 4:
        x = x.reshape(x.shape[0], x.shape[-2], x.shape[-1])
    x = x.astype(jnp.float32)
    b, e, t = x.shape
    t1 = t // POOL1
    tc = t1 // POOL2
    p = params

    # conv1 ('same', K1) + BN1
    xp = jnp.pad(x, ((0, 0), (0, 0), ((K1 - 1) // 2, K1 // 2)))
    idx = jnp.arange(t)[:, None] + jnp.arange(K1)[None, :]
    h = jnp.einsum('betk,fk->bfet', xp[:, :, idx], p['conv1_w'])
    h = h * p['bn1_s'][None, :, None, None] + p['bn1_sh'][None, :, None, None]
    # depthwise spatial conv (groups=F1, multiplier D) + BN2 + ELU + pool1
    h = h[:, jnp.arange(F2) // D_MULT, :, :]
    h = jnp.einsum('bfet,fe->bft', h, p['dw_w'])
    h = _elu(h * p['bn2_s'][None, :, None] + p['bn2_sh'][None, :, None])
    h = h.reshape(b, F2, t1, POOL1).mean(-1)
    # conv3 ('same', K2) + BN3 + ELU + pool2
    hp = jnp.pad(h, ((0, 0), (0, 0), ((K2 - 1) // 2, K2 // 2)))
    idx2 = jnp.arange(t1)[:, None] + jnp.arange(K2)[None, :]
    h = jnp.einsum('bftk,gfk->bgt', hp[:, :, idx2], p['conv3_w'])
    h = _elu(h * p['bn3_s'][None, :, None] + p['bn3_sh'][None, :, None])
    h = h.reshape(b, F2, tc, POOL2).mean(-1)
    h = jnp.transpose(h, (0, 2, 1))                        # (B, Tc, F2)

    wt = tc - N_WINDOWS + 1
    z = jnp.stack([h[:, w:w + wt, :] for w in range(N_WINDOWS)], axis=0)
    z = z.reshape(N_WINDOWS * b, wt, F2)

    # pre-LN MHA + residual
    a = p['attn']
    mu = z.mean(-1, keepdims=True)
    var = jnp.square(z - mu).mean(-1, keepdims=True)
    zn = (z - mu) * jax.lax.rsqrt(var + LN_EPS) * a['ln_w'] + a['ln_b']

    def proj(w, bias):
        return jnp.einsum('gtd,od->gto', zn, w) + bias

    q, k, v = proj(a['wq'], a['bq']), proj(a['wk'], a['bk']), proj(a['wv'], a['bv'])
    heads = []
    for hd in range(NUM_HEADS):
        sl = slice(hd * HEAD_DIM, (hd + 1) * HEAD_DIM)
        s = jnp.einsum('gqd,gkd->gqk', q[..., sl], k[..., sl]) / (HEAD_DIM ** 0.5)
        heads.append(jnp.einsum('gqk,gkd->gqd', jax.nn.softmax(s, -1), v[..., sl]))
    ctx = jnp.concatenate(heads, axis=-1)
    z = z + jnp.einsum('gtd,od->gto', ctx, a['wo']) + a['bo']

    # dilated causal TCN residual blocks
    for i, blk in enumerate(p['tcn']):
        dil = 2 ** i
        pad = (TCN_KERNEL - 1) * dil

        def cconv(inp, w, bias):
            ipad = jnp.pad(inp, ((0, 0), (pad, 0), (0, 0)))
            out = jnp.zeros_like(inp)
            for kk in range(TCN_KERNEL):
                out = out + jnp.einsum('gtc,oc->gto',
                                       ipad[:, kk * dil:kk * dil + wt, :],
                                       w[:, :, kk])
            return out + bias

        hh = _elu(cconv(z, blk['w1'], blk['b1']) * blk['s1'] + blk['sh1'])
        hh = _elu(cconv(hh, blk['w2'], blk['b2']) * blk['s2'] + blk['sh2'])
        z = _elu(hh + z)

    return z[:, -1, :].reshape(N_WINDOWS, b, F2).mean(axis=0)


# ---------------------------------------------------------------------------
# Deterministic parameter init (PyTorch-style U(-1/sqrt(fan_in), 1/sqrt(fan_in))).
# ---------------------------------------------------------------------------
def init_params(key, num_electrodes):
    keys = iter(jax.random.split(key, 32))

    def uniform(shape, fan_in):
        bound = 1.0 / (fan_in ** 0.5)
        return jax.random.uniform(next(keys), shape, jnp.float32, -bound, bound)

    def bn(n):
        gamma = jnp.ones((n,), jnp.float32)
        beta = jnp.zeros((n,), jnp.float32)
        mean = jnp.zeros((n,), jnp.float32)
        var = jnp.ones((n,), jnp.float32)
        s = gamma * jax.lax.rsqrt(var + BN_EPS)
        return s, beta - mean * s

    p = {}
    p['conv1_w'] = uniform((F1, K1), K1)                       # torch (F1, 1, 1, K1)
    p['bn1_s'], p['bn1_sh'] = bn(F1)
    p['dw_w'] = uniform((F2, num_electrodes), num_electrodes)  # torch (F2, 1, E, 1)
    p['bn2_s'], p['bn2_sh'] = bn(F2)
    p['conv3_w'] = uniform((F2, F2, K2), F2 * K2)              # torch (out, in, K)
    p['bn3_s'], p['bn3_sh'] = bn(F2)
    attn = {'ln_w': jnp.ones((F2,), jnp.float32),
            'ln_b': jnp.zeros((F2,), jnp.float32)}
    for nm in ('q', 'k', 'v', 'o'):
        attn['w' + nm] = uniform((F2, F2), F2)                 # torch (out, in)
        attn['b' + nm] = uniform((F2,), F2)
    p['attn'] = attn
    blocks = []
    for _ in range(TCN_DEPTH):
        blk = {}
        for j in (1, 2):
            blk[f'w{j}'] = uniform((F2, F2, TCN_KERNEL), F2 * TCN_KERNEL)
            blk[f'b{j}'] = uniform((F2,), F2 * TCN_KERNEL)
            blk[f's{j}'], blk[f'sh{j}'] = bn(F2)
        blocks.append(blk)
    p['tcn'] = blocks
    return p


if __name__ == "__main__":
    num_electrodes = 4
    chunk_size = 448          # -> Tc = 448 / (8*7) = 8, window length 6 (padded to 8)
    batch = 2

    key = jax.random.PRNGKey(0)
    kx, kp = jax.random.split(key)
    x = jax.random.normal(kx, (batch, num_electrodes, chunk_size), jnp.float32)
    params = init_params(kp, num_electrodes)

    fwd = jax.jit(atcnet_forward_pallas)
    out = jax.block_until_ready(fwd(params, x))
    assert out.shape == (batch, F2)
    assert bool(jnp.all(jnp.isfinite(out)))

    ref = jax.block_until_ready(jax.jit(atcnet_forward_ref)(params, x))
    err = float(jnp.max(jnp.abs(out - ref)))
    assert jnp.allclose(out, ref, atol=1e-2, rtol=1e-2), err

    print("KERNEL_OK")
</pallas_src>

<mosaic_0001>
module attributes {stable_mosaic.version = 11 : i64} {
  func.func @_conv_block_kernel(%arg0: i32, %arg1: memref<1x4x511xf32, #tpu.memory_space<vmem>>, %arg2: memref<32x256xf32, #tpu.memory_space<vmem>>, %arg3: memref<32x512xf32, #tpu.memory_space<vmem>>, %arg4: memref<32x2xf32, #tpu.memory_space<vmem>>, %arg5: memref<448x56xf32, #tpu.memory_space<vmem>>, %arg6: memref<56x8xf32, #tpu.memory_space<vmem>>, %arg7: memref<1x32x8xf32, #tpu.memory_space<vmem>>) attributes {dimension_semantics = [#tpu.dimension_semantics<parallel>], iteration_bounds = array<i64: 2>, scalar_prefetch = 0 : i64, scratch_operands = 0 : i64, tpu.core_type = #tpu.core_type<tc>, window_params = [{transform_indices = @transform_0, window_bounds = array<i64: 1, 4, 511>}, {pipeline_mode = #tpu.pipeline_mode<synchronous>, transform_indices = @transform_1, window_bounds = array<i64: 32, 256>}, {pipeline_mode = #tpu.pipeline_mode<synchronous>, transform_indices = @transform_2, window_bounds = array<i64: 32, 512>}, {pipeline_mode = #tpu.pipeline_mode<synchronous>, transform_indices = @transform_3, window_bounds = array<i64: 32, 2>}, {pipeline_mode = #tpu.pipeline_mode<synchronous>, transform_indices = @transform_4, window_bounds = array<i64: 448, 56>}, {pipeline_mode = #tpu.pipeline_mode<synchronous>, transform_indices = @transform_5, window_bounds = array<i64: 56, 8>}, {transform_indices = @transform_6, window_bounds = array<i64: 1, 32, 8>}]} {
    %c0 = arith.constant 0 : index
    %c0_0 = arith.constant 0 : index
    %c0_1 = arith.constant 0 : index
    %0 = vector.load %arg1[%c0, %c0_0, %c0_1] : memref<1x4x511xf32, #tpu.memory_space<vmem>>, vector<1x4x511xf32>
    %1 = vector.shape_cast %0 : vector<1x4x511xf32> to vector<4x511xf32>
    %2 = vector.extract_strided_slice %1 {offsets = [0, 0], sizes = [4, 448], strides = [1, 1]} : vector<4x511xf32> to vector<4x448xf32>
    %3 = vector.extract_strided_slice %1 {offsets = [0, 1], sizes = [4, 448], strides = [1, 1]} : vector<4x511xf32> to vector<4x448xf32>
    %4 = vector.extract_strided_slice %1 {offsets = [0, 2], sizes = [4, 448], strides = [1, 1]} : vector<4x511xf32> to vector<4x448xf32>
    %5 = vector.extract_strided_slice %1 {offsets = [0, 3], sizes = [4, 448], strides = [1, 1]} : vector<4x511xf32> to vector<4x448xf32>
    %6 = vector.extract_strided_slice %1 {offsets = [0, 4], sizes = [4, 448], strides = [1, 1]} : vector<4x511xf32> to vector<4x448xf32>
    %7 = vector.extract_strided_slice %1 {offsets = [0, 5], sizes = [4, 448], strides = [1, 1]} : vector<4x511xf32> to vector<4x448xf32>
    %8 = vector.extract_strided_slice %1 {offsets = [0, 6], sizes = [4, 448], strides = [1, 1]} : vector<4x511xf32> to vector<4x448xf32>
    %9 = vector.extract_strided_slice %1 {offsets = [0, 7], sizes = [4, 448], strides = [1, 1]} : vector<4x511xf32> to vector<4x448xf32>
    %10 = vector.extract_strided_slice %1 {offsets = [0, 8], sizes = [4, 448], strides = [1, 1]} : vector<4x511xf32> to vector<4x448xf32>
    %11 = vector.extract_strided_slice %1 {offsets = [0, 9], sizes = [4, 448], strides = [1, 1]} : vector<4x511xf32> to vector<4x448xf32>
    %12 = vector.extract_strided_slice %1 {offsets = [0, 10], sizes = [4, 448], strides = [1, 1]} : vector<4x511xf32> to vector<4x448xf32>
    %13 = vector.extract_strided_slice %1 {offsets = [0, 11], sizes = [4, 448], strides = [1, 1]} : vector<4x511xf32> to vector<4x448xf32>
    %14 = vector.extract_strided_slice %1 {offsets = [0, 12], sizes = [4, 448], strides = [1, 1]} : vector<4x511xf32> to vector<4x448xf32>
    %15 = vector.extract_strided_slice %1 {offsets = [0, 13], sizes = [4, 448], strides = [1, 1]} : vector<4x511xf32> to vector<4x448xf32>
    %16 = vector.extract_strided_slice %1 {offsets = [0, 14], sizes = [4, 448], strides = [1, 1]} : vector<4x511xf32> to vector<4x448xf32>
    %17 = vector.extract_strided_slice %1 {offsets = [0, 15], sizes = [4, 448], strides = [1, 1]} : vector<4x511xf32> to vector<4x448xf32>
    %18 = vector.extract_strided_slice %1 {offsets = [0, 16], sizes = [4, 448], strides = [1, 1]} : vector<4x511xf32> to vector<4x448xf32>
    %19 = vector.extract_strided_slice %1 {offsets = [0, 17], sizes = [4, 448], strides = [1, 1]} : vector<4x511xf32> to vector<4x448xf32>
    %20 = vector.extract_strided_slice %1 {offsets = [0, 18], sizes = [4, 448], strides = [1, 1]} : vector<4x511xf32> to vector<4x448xf32>
    %21 = vector.extract_strided_slice %1 {offsets = [0, 19], sizes = [4, 448], strides = [1, 1]} : vector<4x511xf32> to vector<4x448xf32>
    %22 = vector.extract_strided_slice %1 {offsets = [0, 20], sizes = [4, 448], strides = [1, 1]} : vector<4x511xf32> to vector<4x448xf32>
    %23 = vector.extract_strided_slice %1 {offsets = [0, 21], sizes = [4, 448], strides = [1, 1]} : vector<4x511xf32> to vector<4x448xf32>
    %24 = vector.extract_strided_slice %1 {offsets = [0, 22], sizes = [4, 448], strides = [1, 1]} : vector<4x511xf32> to vector<4x448xf32>
    %25 = vector.extract_strided_slice %1 {offsets = [0, 23], sizes = [4, 448], strides = [1, 1]} : vector<4x511xf32> to vector<4x448xf32>
    %26 = vector.extract_strided_slice %1 {offsets = [0, 24], sizes = [4, 448], strides = [1, 1]} : vector<4x511xf32> to vector<4x448xf32>
    %27 = vector.extract_strided_slice %1 {offsets = [0, 25], sizes = [4, 448], strides = [1, 1]} : vector<4x511xf32> to vector<4x448xf32>
    %28 = vector.extract_strided_slice %1 {offsets = [0, 26], sizes = [4, 448], strides = [1, 1]} : vector<4x511xf32> to vector<4x448xf32>
    %29 = vector.extract_strided_slice %1 {offsets = [0, 27], sizes = [4, 448], strides = [1, 1]} : vector<4x511xf32> to vector<4x448xf32>
    %30 = vector.extract_strided_slice %1 {offsets = [0, 28], sizes = [4, 448], strides = [1, 1]} : vector<4x511xf32> to vector<4x448xf32>
    %31 = vector.extract_strided_slice %1 {offsets = [0, 29], sizes = [4, 448], strides = [1, 1]} : vector<4x511xf32> to vector<4x448xf32>
    %32 = vector.extract_strided_slice %1 {offsets = [0, 30], sizes = [4, 448], strides = [1, 1]} : vector<4x511xf32> to vector<4x448xf32>
    %33 = vector.extract_strided_slice %1 {offsets = [0, 31], sizes = [4, 448], strides = [1, 1]} : vector<4x511xf32> to vector<4x448xf32>
    %34 = vector.extract_strided_slice %1 {offsets = [0, 32], sizes = [4, 448], strides = [1, 1]} : vector<4x511xf32> to vector<4x448xf32>
    %35 = vector.extract_strided_slice %1 {offsets = [0, 33], sizes = [4, 448], strides = [1, 1]} : vector<4x511xf32> to vector<4x448xf32>
    %36 = vector.extract_strided_slice %1 {offsets = [0, 34], sizes = [4, 448], strides = [1, 1]} : vector<4x511xf32> to vector<4x448xf32>
    %37 = vector.extract_strided_slice %1 {offsets = [0, 35], sizes = [4, 448], strides = [1, 1]} : vector<4x511xf32> to vector<4x448xf32>
    %38 = vector.extract_strided_slice %1 {offsets = [0, 36], sizes = [4, 448], strides = [1, 1]} : vector<4x511xf32> to vector<4x448xf32>
    %39 = vector.extract_strided_slice %1 {offsets = [0, 37], sizes = [4, 448], strides = [1, 1]} : vector<4x511xf32> to vector<4x448xf32>
    %40 = vector.extract_strided_slice %1 {offsets = [0, 38], sizes = [4, 448], strides = [1, 1]} : vector<4x511xf32> to vector<4x448xf32>
    %41 = vector.extract_strided_slice %1 {offsets = [0, 39], sizes = [4, 448], strides = [1, 1]} : vector<4x511xf32> to vector<4x448xf32>
    %42 = vector.extract_strided_slice %1 {offsets = [0, 40], sizes = [4, 448], strides = [1, 1]} : vector<4x511xf32> to vector<4x448xf32>
    %43 = vector.extract_strided_slice %1 {offsets = [0, 41], sizes = [4, 448], strides = [1, 1]} : vector<4x511xf32> to vector<4x448xf32>
    %44 = vector.extract_strided_slice %1 {offsets = [0, 42], sizes = [4, 448], strides = [1, 1]} : vector<4x511xf32> to vector<4x448xf32>
    %45 = vector.extract_strided_slice %1 {offsets = [0, 43], sizes = [4, 448], strides = [1, 1]} : vector<4x511xf32> to vector<4x448xf32>
    %46 = vector.extract_strided_slice %1 {offsets = [0, 44], sizes = [4, 448], strides = [1, 1]} : vector<4x511xf32> to vector<4x448xf32>
    %47 = vector.extract_strided_slice %1 {offsets = [0, 45], sizes = [4, 448], strides = [1, 1]} : vector<4x511xf32> to vector<4x448xf32>
    %48 = vector.extract_strided_slice %1 {offsets = [0, 46], sizes = [4, 448], strides = [1, 1]} : vector<4x511xf32> to vector<4x448xf32>
    %49 = vector.extract_strided_slice %1 {offsets = [0, 47], sizes = [4, 448], strides = [1, 1]} : vector<4x511xf32> to vector<4x448xf32>
    %50 = vector.extract_strided_slice %1 {offsets = [0, 48], sizes = [4, 448], strides = [1, 1]} : vector<4x511xf32> to vector<4x448xf32>
    %51 = vector.extract_strided_slice %1 {offsets = [0, 49], sizes = [4, 448], strides = [1, 1]} : vector<4x511xf32> to vector<4x448xf32>
    %52 = vector.extract_strided_slice %1 {offsets = [0, 50], sizes = [4, 448], strides = [1, 1]} : vector<4x511xf32> to vector<4x448xf32>
    %53 = vector.extract_strided_slice %1 {offsets = [0, 51], sizes = [4, 448], strides = [1, 1]} : vector<4x511xf32> to vector<4x448xf32>
    %54 = vector.extract_strided_slice %1 {offsets = [0, 52], sizes = [4, 448], strides = [1, 1]} : vector<4x511xf32> to vector<4x448xf32>
    %55 = vector.extract_strided_slice %1 {offsets = [0, 53], sizes = [4, 448], strides = [1, 1]} : vector<4x511xf32> to vector<4x448xf32>
    %56 = vector.extract_strided_slice %1 {offsets = [0, 54], sizes = [4, 448], strides = [1, 1]} : vector<4x511xf32> to vector<4x448xf32>
    %57 = vector.extract_strided_slice %1 {offsets = [0, 55], sizes = [4, 448], strides = [1, 1]} : vector<4x511xf32> to vector<4x448xf32>
    %58 = vector.extract_strided_slice %1 {offsets = [0, 56], sizes = [4, 448], strides = [1, 1]} : vector<4x511xf32> to vector<4x448xf32>
    %59 = vector.extract_strided_slice %1 {offsets = [0, 57], sizes = [4, 448], strides = [1, 1]} : vector<4x511xf32> to vector<4x448xf32>
    %60 = vector.extract_strided_slice %1 {offsets = [0, 58], sizes = [4, 448], strides = [1, 1]} : vector<4x511xf32> to vector<4x448xf32>
    %61 = vector.extract_strided_slice %1 {offsets = [0, 59], sizes = [4, 448], strides = [1, 1]} : vector<4x511xf32> to vector<4x448xf32>
    %62 = vector.extract_strided_slice %1 {offsets = [0, 60], sizes = [4, 448], strides = [1, 1]} : vector<4x511xf32> to vector<4x448xf32>
    %63 = vector.extract_strided_slice %1 {offsets = [0, 61], sizes = [4, 448], strides = [1, 1]} : vector<4x511xf32> to vector<4x448xf32>
    %64 = vector.extract_strided_slice %1 {offsets = [0, 62], sizes = [4, 448], strides = [1, 1]} : vector<4x511xf32> to vector<4x448xf32>
    %65 = vector.extract_strided_slice %1 {offsets = [0, 63], sizes = [4, 448], strides = [1, 1]} : vector<4x511xf32> to vector<4x448xf32>
    %66 = tpu.concatenate %2, %3, %4, %5, %6, %7, %8, %9, %10, %11, %12, %13, %14, %15, %16, %17 in 0 : vector<4x448xf32>, vector<4x448xf32>, vector<4x448xf32>, vector<4x448xf32>, vector<4x448xf32>, vector<4x448xf32>, vector<4x448xf32>, vector<4x448xf32>, vector<4x448xf32>, vector<4x448xf32>, vector<4x448xf32>, vector<4x448xf32>, vector<4x448xf32>, vector<4x448xf32>, vector<4x448xf32>, vector<4x448xf32> -> vector<64x448xf32>
    %67 = tpu.concatenate %18, %19, %20, %21, %22, %23, %24, %25, %26, %27, %28, %29, %30, %31, %32, %33 in 0 : vector<4x448xf32>, vector<4x448xf32>, vector<4x448xf32>, vector<4x448xf32>, vector<4x448xf32>, vector<4x448xf32>, vector<4x448xf32>, vector<4x448xf32>, vector<4x448xf32>, vector<4x448xf32>, vector<4x448xf32>, vector<4x448xf32>, vector<4x448xf32>, vector<4x448xf32>, vector<4x448xf32>, vector<4x448xf32> -> vector<64x448xf32>
    %68 = tpu.concatenate %34, %35, %36, %37, %38, %39, %40, %41, %42, %43, %44, %45, %46, %47, %48, %49 in 0 : vector<4x448xf32>, vector<4x448xf32>, vector<4x448xf32>, vector<4x448xf32>, vector<4x448xf32>, vector<4x448xf32>, vector<4x448xf32>, vector<4x448xf32>, vector<4x448xf32>, vector<4x448xf32>, vector<4x448xf32>, vector<4x448xf32>, vector<4x448xf32>, vector<4x448xf32>, vector<4x448xf32>, vector<4x448xf32> -> vector<64x448xf32>
    %69 = tpu.concatenate %50, %51, %52, %53, %54, %55, %56, %57, %58, %59, %60, %61, %62, %63, %64, %65 in 0 : vector<4x448xf32>, vector<4x448xf32>, vector<4x448xf32>, vector<4x448xf32>, vector<4x448xf32>, vector<4x448xf32>, vector<4x448xf32>, vector<4x448xf32>, vector<4x448xf32>, vector<4x448xf32>, vector<4x448xf32>, vector<4x448xf32>, vector<4x448xf32>, vector<4x448xf32>, vector<4x448xf32>, vector<4x448xf32> -> vector<64x448xf32>
    %70 = tpu.concatenate %66, %67, %68, %69 in 0 : vector<64x448xf32>, vector<64x448xf32>, vector<64x448xf32>, vector<64x448xf32> -> vector<256x448xf32>
    %c0_2 = arith.constant 0 : index
    %c0_3 = arith.constant 0 : index
    %71 = vector.load %arg2[%c0_2, %c0_3] : memref<32x256xf32, #tpu.memory_space<vmem>>, vector<32x256xf32>
    %cst = arith.constant dense<0.000000e+00> : vector<32x448xf32>
    %72 = tpu.matmul %71, %70, %cst {dimension_numbers = #tpu.dot_dimension_numbers<[1], [0], [0], [1], [0, 0, 1, 1], [], []>} : vector<32x256xf32>, vector<256x448xf32>, vector<32x448xf32> -> vector<32x448xf32>
    %c0_4 = arith.constant 0 : index
    %c0_5 = arith.constant 0 : index
    %73 = vector.load %arg4[%c0_4, %c0_5] : memref<32x2xf32, #tpu.memory_space<vmem>>, vector<32x1xf32>
    %74 = vector.broadcast %73 : vector<32x1xf32> to vector<32x448xf32>
    %75 = arith.addf %72, %74 : vector<32x448xf32>
    %cst_6 = arith.constant 0.000000e+00 : f32
    %76 = vector.broadcast %cst_6 : f32 to vector<32x448xf32>
    %77 = arith.cmpf ogt, %75, %76 : vector<32x448xf32>
    %cst_7 = arith.constant 0.000000e+00 : f32
    %78 = vector.broadcast %cst_7 : f32 to vector<32x448xf32>
    %79 = arith.minimumf %75, %78 : vector<32x448xf32>
    %80 = math.exp %79 : vector<32x448xf32>
    %cst_8 = arith.constant 1.000000e+00 : f32
    %81 = vector.broadcast %cst_8 : f32 to vector<32x448xf32>
    %82 = arith.subf %80, %81 : vector<32x448xf32>
    %83 = arith.select %77, %75, %82 : vector<32x448xi1>, vector<32x448xf32>
    %c0_9 = arith.constant 0 : index
    %c0_10 = arith.constant 0 : index
    %84 = vector.load %arg5[%c0_9, %c0_10] : memref<448x56xf32, #tpu.memory_space<vmem>>, vector<448x56xf32>
    %cst_11 = arith.constant dense<0.000000e+00> : vector<32x56xf32>
    %85 = tpu.matmul %83, %84, %cst_11 {dimension_numbers = #tpu.dot_dimension_numbers<[1], [0], [0], [1], [0, 0, 1, 1], [], []>} : vector<32x448xf32>, vector<448x56xf32>, vector<32x56xf32> -> vector<32x56xf32>
    %cst_12 = arith.constant 0.000000e+00 : f32
    %86 = vector.broadcast %cst_12 : f32 to vector<32x7xf32>
    %cst_13 = arith.constant 0.000000e+00 : f32
    %87 = vector.broadcast %cst_13 : f32 to vector<32x8xf32>
    %88 = tpu.concatenate %86, %85, %87 in 1 : vector<32x7xf32>, vector<32x56xf32>, vector<32x8xf32> -> vector<32x71xf32>
    %89 = vector.extract_strided_slice %88 {offsets = [0, 0], sizes = [32, 56], strides = [1, 1]} : vector<32x71xf32> to vector<32x56xf32>
    %90 = vector.extract_strided_slice %88 {offsets = [0, 1], sizes = [32, 56], strides = [1, 1]} : vector<32x71xf32> to vector<32x56xf32>
    %91 = vector.extract_strided_slice %88 {offsets = [0, 2], sizes = [32, 56], strides = [1, 1]} : vector<32x71xf32> to vector<32x56xf32>
    %92 = vector.extract_strided_slice %88 {offsets = [0, 3], sizes = [32, 56], strides = [1, 1]} : vector<32x71xf32> to vector<32x56xf32>
    %93 = vector.extract_strided_slice %88 {offsets = [0, 4], sizes = [32, 56], strides = [1, 1]} : vector<32x71xf32> to vector<32x56xf32>
    %94 = vector.extract_strided_slice %88 {offsets = [0, 5], sizes = [32, 56], strides = [1, 1]} : vector<32x71xf32> to vector<32x56xf32>
    %95 = vector.extract_strided_slice %88 {offsets = [0, 6], sizes = [32, 56], strides = [1, 1]} : vector<32x71xf32> to vector<32x56xf32>
    %96 = vector.extract_strided_slice %88 {offsets = [0, 7], sizes = [32, 56], strides = [1, 1]} : vector<32x71xf32> to vector<32x56xf32>
    %97 = vector.extract_strided_slice %88 {offsets = [0, 8], sizes = [32, 56], strides = [1, 1]} : vector<32x71xf32> to vector<32x56xf32>
    %98 = vector.extract_strided_slice %88 {offsets = [0, 9], sizes = [32, 56], strides = [1, 1]} : vector<32x71xf32> to vector<32x56xf32>
    %99 = vector.extract_strided_slice %88 {offsets = [0, 10], sizes = [32, 56], strides = [1, 1]} : vector<32x71xf32> to vector<32x56xf32>
    %100 = vector.extract_strided_slice %88 {offsets = [0, 11], sizes = [32, 56], strides = [1, 1]} : vector<32x71xf32> to vector<32x56xf32>
    %101 = vector.extract_strided_slice %88 {offsets = [0, 12], sizes = [32, 56], strides = [1, 1]} : vector<32x71xf32> to vector<32x56xf32>
    %102 = vector.extract_strided_slice %88 {offsets = [0, 13], sizes = [32, 56], strides = [1, 1]} : vector<32x71xf32> to vector<32x56xf32>
    %103 = vector.extract_strided_slice %88 {offsets = [0, 14], sizes = [32, 56], strides = [1, 1]} : vector<32x71xf32> to vector<32x56xf32>
    %104 = vector.extract_strided_slice %88 {offsets = [0, 15], sizes = [32, 56], strides = [1, 1]} : vector<32x71xf32> to vector<32x56xf32>
    %105 = tpu.concatenate %89, %90, %91, %92, %93, %94, %95, %96, %97, %98, %99, %100, %101, %102, %103, %104 in 0 : vector<32x56xf32>, vector<32x56xf32>, vector<32x56xf32>, vector<32x56xf32>, vector<32x56xf32>, vector<32x56xf32>, vector<32x56xf32>, vector<32x56xf32>, vector<32x56xf32>, vector<32x56xf32>, vector<32x56xf32>, vector<32x56xf32>, vector<32x56xf32>, vector<32x56xf32>, vector<32x56xf32>, vector<32x56xf32> -> vector<512x56xf32>
    %c0_14 = arith.constant 0 : index
    %c0_15 = arith.constant 0 : index
    %106 = vector.load %arg3[%c0_14, %c0_15] : memref<32x512xf32, #tpu.memory_space<vmem>>, vector<32x512xf32>
    %cst_16 = arith.constant dense<0.000000e+00> : vector<32x56xf32>
    %107 = tpu.matmul %106, %105, %cst_16 {dimension_numbers = #tpu.dot_dimension_numbers<[1], [0], [0], [1], [0, 0, 1, 1], [], []>} : vector<32x512xf32>, vector<512x56xf32>, vector<32x56xf32> -> vector<32x56xf32>
    %c0_17 = arith.constant 0 : index
    %c1 = arith.constant 1 : index
    %108 = vector.load %arg4[%c0_17, %c1] : memref<32x2xf32, #tpu.memory_space<vmem>>, vector<32x1xf32>
    %109 = vector.broadcast %108 : vector<32x1xf32> to vector<32x56xf32>
    %110 = arith.addf %107, %109 : vector<32x56xf32>
    %cst_18 = arith.constant 0.000000e+00 : f32
    %111 = vector.broadcast %cst_18 : f32 to vector<32x56xf32>
    %112 = arith.cmpf ogt, %110, %111 : vector<32x56xf32>
    %cst_19 = arith.constant 0.000000e+00 : f32
    %113 = vector.broadcast %cst_19 : f32 to vector<32x56xf32>
    %114 = arith.minimumf %110, %113 : vector<32x56xf32>
    %115 = math.exp %114 : vector<32x56xf32>
    %cst_20 = arith.constant 1.000000e+00 : f32
    %116 = vector.broadcast %cst_20 : f32 to vector<32x56xf32>
    %117 = arith.subf %115, %116 : vector<32x56xf32>
    %118 = arith.select %112, %110, %117 : vector<32x56xi1>, vector<32x56xf32>
    %c0_21 = arith.constant 0 : index
    %c0_22 = arith.constant 0 : index
    %119 = vector.load %arg6[%c0_21, %c0_22] : memref<56x8xf32, #tpu.memory_space<vmem>>, vector<56x8xf32>
    %cst_23 = arith.constant dense<0.000000e+00> : vector<32x8xf32>
    %120 = tpu.matmul %118, %119, %cst_23 {dimension_numbers = #tpu.dot_dimension_numbers<[1], [0], [0], [1], [0, 0, 1, 1], [], []>} : vector<32x56xf32>, vector<56x8xf32>, vector<32x8xf32> -> vector<32x8xf32>
    %c0_24 = arith.constant 0 : index
    %c0_25 = arith.constant 0 : index
    %c0_26 = arith.constant 0 : index
    %121 = vector.load %arg7[%c0_24, %c0_25, %c0_26] : memref<1x32x8xf32, #tpu.memory_space<vmem>>, vector<1x32x8xf32>
    %122 = vector.shape_cast %121 : vector<1x32x8xf32> to vector<32x8xf32>
    %123 = vector.shape_cast %120 : vector<32x8xf32> to vector<1x32x8xf32>
    tpu.vector_store %arg7[%c0_24, %c0_25, %c0_26], %123 {strides = array<i32>} : memref<1x32x8xf32, #tpu.memory_space<vmem>>, vector<1x32x8xf32>,
    return
  }
  func.func @transform_0(%arg0: i32) -> (i32, i32, i32) {
    %c0_i32 = arith.constant 0 : i32
    %c0_i32_0 = arith.constant 0 : i32
    %c0_i32_1 = arith.constant 0 : i32
    return %arg0, %c0_i32, %c0_i32_0 : i32, i32, i32
  }
  func.func @transform_1(%arg0: i32) -> (i32, i32) {
    %c0_i32 = arith.constant 0 : i32
    %c0_i32_0 = arith.constant 0 : i32
    %c0_i32_1 = arith.constant 0 : i32
    return %c0_i32, %c0_i32_0 : i32, i32
  }
  func.func @transform_2(%arg0: i32) -> (i32, i32) {
    %c0_i32 = arith.constant 0 : i32
    %c0_i32_0 = arith.constant 0 : i32
    %c0_i32_1 = arith.constant 0 : i32
    return %c0_i32, %c0_i32_0 : i32, i32
  }
  func.func @transform_3(%arg0: i32) -> (i32, i32) {
    %c0_i32 = arith.constant 0 : i32
    %c0_i32_0 = arith.constant 0 : i32
    %c0_i32_1 = arith.constant 0 : i32
    return %c0_i32, %c0_i32_0 : i32, i32
  }
  func.func @transform_4(%arg0: i32) -> (i32, i32) {
    %c0_i32 = arith.constant 0 : i32
    %c0_i32_0 = arith.constant 0 : i32
    %c0_i32_1 = arith.constant 0 : i32
    return %c0_i32, %c0_i32_0 : i32, i32
  }
  func.func @transform_5(%arg0: i32) -> (i32, i32) {
    %c0_i32 = arith.constant 0 : i32
    %c0_i32_0 = arith.constant 0 : i32
    %c0_i32_1 = arith.constant 0 : i32
    return %c0_i32, %c0_i32_0 : i32, i32
  }
  func.func @transform_6(%arg0: i32) -> (i32, i32, i32) {
    %c0_i32 = arith.constant 0 : i32
    %c0_i32_0 = arith.constant 0 : i32
    %c0_i32_1 = arith.constant 0 : i32
    return %arg0, %c0_i32, %c0_i32_0 : i32, i32, i32
  }
}

module attributes {stable_mosaic.version = 11 : i64} {
  func.func @_tail_kernel(%arg0: i32, %arg1: memref<3x8x32xf32, #tpu.memory_space<vmem>>, %arg2: memref<96x32xf32, #tpu.memory_space<vmem>>, %arg3: memref<32x32xf32, #tpu.memory_space<vmem>>, %arg4: memref<128x128xf32, #tpu.memory_space<vmem>>, %arg5: memref<10x32xf32, #tpu.memory_space<vmem>>, %arg6: memref<1x3x32xf32, #tpu.memory_space<vmem>>) attributes {dimension_semantics = [#tpu.dimension_semantics<parallel>], iteration_bounds = array<i64: 2>, scalar_prefetch = 0 : i64, scratch_operands = 0 : i64, tpu.core_type = #tpu.core_type<tc>, window_params = [{transform_indices = @transform_0, window_bounds = array<i64: 3, 8, 32>}, {pipeline_mode = #tpu.pipeline_mode<synchronous>, transform_indices = @transform_1, window_bounds = array<i64: 96, 32>}, {pipeline_mode = #tpu.pipeline_mode<synchronous>, transform_indices = @transform_2, window_bounds = array<i64: 32, 32>}, {pipeline_mode = #tpu.pipeline_mode<synchronous>, transform_indices = @transform_3, window_bounds = array<i64: 128, 128>}, {pipeline_mode = #tpu.pipeline_mode<synchronous>, transform_indices = @transform_4, window_bounds = array<i64: 10, 32>}, {transform_indices = @transform_5, window_bounds = array<i64: 1, 3, 32>}]} {
    %c0 = arith.constant 0 : index
    %c0_0 = arith.constant 0 : index
    %c0_1 = arith.constant 0 : index
    %0 = vector.load %arg1[%c0, %c0_0, %c0_1] : memref<3x8x32xf32, #tpu.memory_space<vmem>>, vector<3x8x32xf32>
    %1 = vector.shape_cast %0 : vector<3x8x32xf32> to vector<24x32xf32>
    %cst = arith.constant dense<0.000000e+00> : vector<24xf32>
    %2 = vector.multi_reduction <add>, %1, %cst [1] : vector<24x32xf32> to vector<24xf32>
    %3 = vector.shape_cast %2 : vector<24xf32> to vector<24x1xf32>
    %cst_2 = arith.constant 3.200000e+01 : f32
    %4 = vector.broadcast %cst_2 : f32 to vector<24x1xf32>
    %5 = arith.divf %3, %4 : vector<24x1xf32>
    %6 = vector.broadcast %5 : vector<24x1xf32> to vector<24x32xf32>
    %7 = arith.subf %1, %6 : vector<24x32xf32>
    %8 = arith.mulf %7, %7 : vector<24x32xf32>
    %cst_3 = arith.constant dense<0.000000e+00> : vector<24xf32>
    %9 = vector.multi_reduction <add>, %8, %cst_3 [1] : vector<24x32xf32> to vector<24xf32>
    %10 = vector.shape_cast %9 : vector<24xf32> to vector<24x1xf32>
    %cst_4 = arith.constant 3.200000e+01 : f32
    %11 = vector.broadcast %cst_4 : f32 to vector<24x1xf32>
    %12 = arith.divf %10, %11 : vector<24x1xf32>
    %13 = vector.broadcast %5 : vector<24x1xf32> to vector<24x32xf32>
    %14 = arith.subf %1, %13 : vector<24x32xf32>
    %cst_5 = arith.constant 9.99999997E-7 : f32
    %15 = vector.broadcast %cst_5 : f32 to vector<24x1xf32>
    %16 = arith.addf %12, %15 : vector<24x1xf32>
    %17 = math.rsqrt %16 : vector<24x1xf32>
    %18 = vector.broadcast %17 : vector<24x1xf32> to vector<24x32xf32>
    %19 = arith.mulf %14, %18 : vector<24x32xf32>
    %c0_6 = arith.constant 0 : index
    %c0_7 = arith.constant 0 : index
    %20 = vector.load %arg5[%c0_6, %c0_7] : memref<10x32xf32, #tpu.memory_space<vmem>>, vector<1x32xf32>
    %21 = vector.broadcast %20 : vector<1x32xf32> to vector<24x32xf32>
    %22 = arith.mulf %19, %21 : vector<24x32xf32>
    %c1 = arith.constant 1 : index
    %c0_8 = arith.constant 0 : index
    %23 = vector.load %arg5[%c1, %c0_8] : memref<10x32xf32, #tpu.memory_space<vmem>>, vector<1x32xf32>
    %24 = vector.broadcast %23 : vector<1x32xf32> to vector<24x32xf32>
    %25 = arith.addf %22, %24 : vector<24x32xf32>
    %c0_9 = arith.constant 0 : index
    %c0_10 = arith.constant 0 : index
    %26 = vector.load %arg2[%c0_9, %c0_10] : memref<96x32xf32, #tpu.memory_space<vmem>>, vector<96x32xf32>
    %cst_11 = arith.constant dense<0.000000e+00> : vector<24x96xf32>
    %27 = tpu.matmul %25, %26, %cst_11 {dimension_numbers = #tpu.dot_dimension_numbers<[1], [1], [0], [0], [0, 0, 1, 0], [], []>} : vector<24x32xf32>, vector<96x32xf32>, vector<24x96xf32> -> vector<24x96xf32>
    %28 = vector.extract_strided_slice %27 {offsets = [0, 0], sizes = [24, 32], strides = [1, 1]} : vector<24x96xf32> to vector<24x32xf32>
    %c2 = arith.constant 2 : index
    %c0_12 = arith.constant 0 : index
    %29 = vector.load %arg5[%c2, %c0_12] : memref<10x32xf32, #tpu.memory_space<vmem>>, vector<1x32xf32>
    %30 = vector.broadcast %29 : vector<1x32xf32> to vector<24x32xf32>
    %31 = arith.addf %28, %30 : vector<24x32xf32>
    %32 = vector.shape_cast %31 : vector<24x32xf32> to vector<3x8x32xf32>
    %33 = vector.extract_strided_slice %27 {offsets = [0, 32], sizes = [24, 32], strides = [1, 1]} : vector<24x96xf32> to vector<24x32xf32>
    %c3 = arith.constant 3 : index
    %c0_13 = arith.constant 0 : index
    %34 = vector.load %arg5[%c3, %c0_13] : memref<10x32xf32, #tpu.memory_space<vmem>>, vector<1x32xf32>
    %35 = vector.broadcast %34 : vector<1x32xf32> to vector<24x32xf32>
    %36 = arith.addf %33, %35 : vector<24x32xf32>
    %37 = vector.shape_cast %36 : vector<24x32xf32> to vector<3x8x32xf32>
    %38 = vector.extract_strided_slice %27 {offsets = [0, 64], sizes = [24, 32], strides = [1, 1]} : vector<24x96xf32> to vector<24x32xf32>
    %c4 = arith.constant 4 : index
    %c0_14 = arith.constant 0 : index
    %39 = vector.load %arg5[%c4, %c0_14] : memref<10x32xf32, #tpu.memory_space<vmem>>, vector<1x32xf32>
    %40 = vector.broadcast %39 : vector<1x32xf32> to vector<24x32xf32>
    %41 = arith.addf %38, %40 : vector<24x32xf32>
    %42 = vector.shape_cast %41 : vector<24x32xf32> to vector<3x8x32xf32>
    %43 = tpu.iota {dimensions = array<i32: 2>} : vector<3x8x8xi32>
    %cst_15 = arith.constant 0.000000e+00 : f32
    %44 = vector.broadcast %cst_15 : f32 to vector<24x32xf32>
    %45 = vector.extract_strided_slice %32 {offsets = [0, 0, 0], sizes = [3, 8, 16], strides = [1, 1, 1]} : vector<3x8x32xf32> to vector<3x8x16xf32>
    %46 = vector.extract_strided_slice %37 {offsets = [0, 0, 0], sizes = [3, 8, 16], strides = [1, 1, 1]} : vector<3x8x32xf32> to vector<3x8x16xf32>
    "tpu.trace_start"() <{level = 10 : i32, message = "gqd,gkd->gqk"}> : () -> ()
    %cst_16 = arith.constant dense<0.000000e+00> : vector<3x8x8xf32>
    %47 = tpu.matmul %45, %46, %cst_16 {dimension_numbers = #tpu.dot_dimension_numbers<[2], [2], [1], [1], [0, 0, 0, 1, 1, 1], [0], [0]>} : vector<3x8x16xf32>, vector<3x8x16xf32>, vector<3x8x8xf32> -> vector<3x8x8xf32>
    "tpu.trace_stop"() : () -> ()
    %cst_17 = arith.constant 2.500000e-01 : f32
    %48 = vector.broadcast %cst_17 : f32 to vector<3x8x8xf32>
    %49 = arith.mulf %47, %48 : vector<3x8x8xf32>
    %c6_i32 = arith.constant 6 : i32
    %50 = vector.broadcast %c6_i32 : i32 to vector<3x8x8xi32>
    %51 = arith.cmpi slt, %43, %50 : vector<3x8x8xi32>
    %cst_18 = arith.constant -1.000000e+30 : f32
    %52 = vector.broadcast %cst_18 : f32 to vector<3x8x8xf32>
    %53 = arith.select %51, %49, %52 : vector<3x8x8xi1>, vector<3x8x8xf32>
    %cst_19 = arith.constant dense<0xFF800000> : vector<3x8xf32>
    %54 = vector.multi_reduction <maximumf>, %53, %cst_19 [2] : vector<3x8x8xf32> to vector<3x8xf32>
    %55 = vector.shape_cast %54 : vector<3x8xf32> to vector<3x8x1xf32>
    %56 = vector.broadcast %55 : vector<3x8x1xf32> to vector<3x8x8xf32>
    %57 = arith.subf %53, %56 : vector<3x8x8xf32>
    %58 = math.exp %57 : vector<3x8x8xf32>
    %cst_20 = arith.constant dense<0.000000e+00> : vector<3x8xf32>
    %59 = vector.multi_reduction <add>, %58, %cst_20 [2] : vector<3x8x8xf32> to vector<3x8xf32>
    %60 = vector.shape_cast %59 : vector<3x8xf32> to vector<3x8x1xf32>
    %61 = vector.broadcast %60 : vector<3x8x1xf32> to vector<3x8x8xf32>
    %62 = arith.divf %58, %61 : vector<3x8x8xf32>
    %63 = vector.extract_strided_slice %42 {offsets = [0, 0, 0], sizes = [3, 8, 16], strides = [1, 1, 1]} : vector<3x8x32xf32> to vector<3x8x16xf32>
    "tpu.trace_start"() <{level = 10 : i32, message = "gqk,gkd->gqd"}> : () -> ()
    %cst_21 = arith.constant dense<0.000000e+00> : vector<3x8x16xf32>
    %64 = tpu.matmul %62, %63, %cst_21 {dimension_numbers = #tpu.dot_dimension_numbers<[2], [1], [1], [2], [0, 0, 0, 1, 1, 2], [0], [0]>} : vector<3x8x8xf32>, vector<3x8x16xf32>, vector<3x8x16xf32> -> vector<3x8x16xf32>
    "tpu.trace_stop"() : () -> ()
    %65 = vector.shape_cast %64 : vector<3x8x16xf32> to vector<24x16xf32>
    %c0_22 = arith.constant 0 : index
    %c0_23 = arith.constant 0 : index
    %66 = vector.load %arg3[%c0_22, %c0_23] : memref<32x32xf32, #tpu.memory_space<vmem>>, vector<32x16xf32>
    %cst_24 = arith.constant dense<0.000000e+00> : vector<24x32xf32>
    %67 = tpu.matmul %65, %66, %cst_24 {dimension_numbers = #tpu.dot_dimension_numbers<[1], [1], [0], [0], [0, 0, 1, 0], [], []>} : vector<24x16xf32>, vector<32x16xf32>, vector<24x32xf32> -> vector<24x32xf32>
    %68 = arith.addf %44, %67 : vector<24x32xf32>
    %69 = vector.extract_strided_slice %32 {offsets = [0, 0, 16], sizes = [3, 8, 16], strides = [1, 1, 1]} : vector<3x8x32xf32> to vector<3x8x16xf32>
    %70 = vector.extract_strided_slice %37 {offsets = [0, 0, 16], sizes = [3, 8, 16], strides = [1, 1, 1]} : vector<3x8x32xf32> to vector<3x8x16xf32>
    "tpu.trace_start"() <{level = 10 : i32, message = "gqd,gkd->gqk"}> : () -> ()
    %cst_25 = arith.constant dense<0.000000e+00> : vector<3x8x8xf32>
    %71 = tpu.matmul %69, %70, %cst_25 {dimension_numbers = #tpu.dot_dimension_numbers<[2], [2], [1], [1], [0, 0, 0, 1, 1, 1], [0], [0]>} : vector<3x8x16xf32>, vector<3x8x16xf32>, vector<3x8x8xf32> -> vector<3x8x8xf32>
    "tpu.trace_stop"() : () -> ()
    %cst_26 = arith.constant 2.500000e-01 : f32
    %72 = vector.broadcast %cst_26 : f32 to vector<3x8x8xf32>
    %73 = arith.mulf %71, %72 : vector<3x8x8xf32>
    %c6_i32_27 = arith.constant 6 : i32
    %74 = vector.broadcast %c6_i32_27 : i32 to vector<3x8x8xi32>
    %75 = arith.cmpi slt, %43, %74 : vector<3x8x8xi32>
    %cst_28 = arith.constant -1.000000e+30 : f32
    %76 = vector.broadcast %cst_28 : f32 to vector<3x8x8xf32>
    %77 = arith.select %75, %73, %76 : vector<3x8x8xi1>, vector<3x8x8xf32>
    %cst_29 = arith.constant dense<0xFF800000> : vector<3x8xf32>
    %78 = vector.multi_reduction <maximumf>, %77, %cst_29 [2] : vector<3x8x8xf32> to vector<3x8xf32>
    %79 = vector.shape_cast %78 : vector<3x8xf32> to vector<3x8x1xf32>
    %80 = vector.broadcast %79 : vector<3x8x1xf32> to vector<3x8x8xf32>
    %81 = arith.subf %77, %80 : vector<3x8x8xf32>
    %82 = math.exp %81 : vector<3x8x8xf32>
    %cst_30 = arith.constant dense<0.000000e+00> : vector<3x8xf32>
    %83 = vector.multi_reduction <add>, %82, %cst_30 [2] : vector<3x8x8xf32> to vector<3x8xf32>
    %84 = vector.shape_cast %83 : vector<3x8xf32> to vector<3x8x1xf32>
    %85 = vector.broadcast %84 : vector<3x8x1xf32> to vector<3x8x8xf32>
    %86 = arith.divf %82, %85 : vector<3x8x8xf32>
    %87 = vector.extract_strided_slice %42 {offsets = [0, 0, 16], sizes = [3, 8, 16], strides = [1, 1, 1]} : vector<3x8x32xf32> to vector<3x8x16xf32>
    "tpu.trace_start"() <{level = 10 : i32, message = "gqk,gkd->gqd"}> : () -> ()
    %cst_31 = arith.constant dense<0.000000e+00> : vector<3x8x16xf32>
    %88 = tpu.matmul %86, %87, %cst_31 {dimension_numbers = #tpu.dot_dimension_numbers<[2], [1], [1], [2], [0, 0, 0, 1, 1, 2], [0], [0]>} : vector<3x8x8xf32>, vector<3x8x16xf32>, vector<3x8x16xf32> -> vector<3x8x16xf32>
    "tpu.trace_stop"() : () -> ()
    %89 = vector.shape_cast %88 : vector<3x8x16xf32> to vector<24x16xf32>
    %c0_32 = arith.constant 0 : index
    %c16 = arith.constant 16 : index
    %90 = vector.load %arg3[%c0_32, %c16] : memref<32x32xf32, #tpu.memory_space<vmem>>, vector<32x16xf32>
    %cst_33 = arith.constant dense<0.000000e+00> : vector<24x32xf32>
    %91 = tpu.matmul %89, %90, %cst_33 {dimension_numbers = #tpu.dot_dimension_numbers<[1], [1], [0], [0], [0, 0, 1, 0], [], []>} : vector<24x16xf32>, vector<32x16xf32>, vector<24x32xf32> -> vector<24x32xf32>
    %92 = arith.addf %68, %91 : vector<24x32xf32>
    %93 = arith.addf %1, %92 : vector<24x32xf32>
    %c5 = arith.constant 5 : index
    %c0_34 = arith.constant 0 : index
    %94 = vector.load %arg5[%c5, %c0_34] : memref<10x32xf32, #tpu.memory_space<vmem>>, vector<1x32xf32>
    %95 = vector.broadcast %94 : vector<1x32xf32> to vector<24x32xf32>
    %96 = arith.addf %93, %95 : vector<24x32xf32>
    %c0_35 = arith.constant 0 : index
    %c0_36 = arith.constant 0 : index
    %97 = vector.load %arg4[%c0_35, %c0_36] : memref<128x128xf32, #tpu.memory_space<vmem>>, vector<32x128xf32>
    %c6 = arith.constant 6 : index
    %c0_37 = arith.constant 0 : index
    %98 = vector.load %arg5[%c6, %c0_37] : memref<10x32xf32, #tpu.memory_space<vmem>>, vector<1x32xf32>
    %99 = vector.shape_cast %96 : vector<24x32xf32> to vector<3x8x32xf32>
    %cst_38 = arith.constant 0.000000e+00 : f32
    %100 = vector.broadcast %cst_38 : f32 to vector<3x3x32xf32>
    %101 = tpu.concatenate %100, %99 in 1 : vector<3x3x32xf32>, vector<3x8x32xf32> -> vector<3x11x32xf32>
    %102 = vector.extract_strided_slice %101 {offsets = [0, 0, 0], sizes = [3, 8, 32], strides = [1, 1, 1]} : vector<3x11x32xf32> to vector<3x8x32xf32>
    %103 = vector.extract_strided_slice %101 {offsets = [0, 1, 0], sizes = [3, 8, 32], strides = [1, 1, 1]} : vector<3x11x32xf32> to vector<3x8x32xf32>
    %104 = vector.extract_strided_slice %101 {offsets = [0, 2, 0], sizes = [3, 8, 32], strides = [1, 1, 1]} : vector<3x11x32xf32> to vector<3x8x32xf32>
    %105 = vector.extract_strided_slice %101 {offsets = [0, 3, 0], sizes = [3, 8, 32], strides = [1, 1, 1]} : vector<3x11x32xf32> to vector<3x8x32xf32>
    %106 = tpu.concatenate %102, %103, %104, %105 in 2 : vector<3x8x32xf32>, vector<3x8x32xf32>, vector<3x8x32xf32>, vector<3x8x32xf32> -> vector<3x8x128xf32>
    %107 = vector.shape_cast %106 : vector<3x8x128xf32> to vector<24x128xf32>
    %cst_39 = arith.constant dense<0.000000e+00> : vector<24x32xf32>
    %108 = tpu.matmul %107, %97, %cst_39 {dimension_numbers = #tpu.dot_dimension_numbers<[1], [1], [0], [0], [0, 0, 1, 0], [], []>} : vector<24x128xf32>, vector<32x128xf32>, vector<24x32xf32> -> vector<24x32xf32>
    %109 = vector.broadcast %98 : vector<1x32xf32> to vector<24x32xf32>
    %110 = arith.addf %108, %109 : vector<24x32xf32>
    %cst_40 = arith.constant 0.000000e+00 : f32
    %111 = vector.broadcast %cst_40 : f32 to vector<24x32xf32>
    %112 = arith.cmpf ogt, %110, %111 : vector<24x32xf32>
    %cst_41 = arith.constant 0.000000e+00 : f32
    %113 = vector.broadcast %cst_41 : f32 to vector<24x32xf32>
    %114 = arith.minimumf %110, %113 : vector<24x32xf32>
    %115 = math.exp %114 : vector<24x32xf32>
    %cst_42 = arith.constant 1.000000e+00 : f32
    %116 = vector.broadcast %cst_42 : f32 to vector<24x32xf32>
    %117 = arith.subf %115, %116 : vector<24x32xf32>
    %118 = arith.select %112, %110, %117 : vector<24x32xi1>, vector<24x32xf32>
    %c32 = arith.constant 32 : index
    %c0_43 = arith.constant 0 : index
    %119 = vector.load %arg4[%c32, %c0_43] : memref<128x128xf32, #tpu.memory_space<vmem>>, vector<32x128xf32>
    %c7 = arith.constant 7 : index
    %c0_44 = arith.constant 0 : index
    %120 = vector.load %arg5[%c7, %c0_44] : memref<10x32xf32, #tpu.memory_space<vmem>>, vector<1x32xf32>
    %121 = vector.shape_cast %118 : vector<24x32xf32> to vector<3x8x32xf32>
    %cst_45 = arith.constant 0.000000e+00 : f32
    %122 = vector.broadcast %cst_45 : f32 to vector<3x3x32xf32>
    %123 = tpu.concatenate %122, %121 in 1 : vector<3x3x32xf32>, vector<3x8x32xf32> -> vector<3x11x32xf32>
    %124 = vector.extract_strided_slice %123 {offsets = [0, 0, 0], sizes = [3, 8, 32], strides = [1, 1, 1]} : vector<3x11x32xf32> to vector<3x8x32xf32>
    %125 = vector.extract_strided_slice %123 {offsets = [0, 1, 0], sizes = [3, 8, 32], strides = [1, 1, 1]} : vector<3x11x32xf32> to vector<3x8x32xf32>
    %126 = vector.extract_strided_slice %123 {offsets = [0, 2, 0], sizes = [3, 8, 32], strides = [1, 1, 1]} : vector<3x11x32xf32> to vector<3x8x32xf32>
    %127 = vector.extract_strided_slice %123 {offsets = [0, 3, 0], sizes = [3, 8, 32], strides = [1, 1, 1]} : vector<3x11x32xf32> to vector<3x8x32xf32>
    %128 = tpu.concatenate %124, %125, %126, %127 in 2 : vector<3x8x32xf32>, vector<3x8x32xf32>, vector<3x8x32xf32>, vector<3x8x32xf32> -> vector<3x8x128xf32>
    %129 = vector.shape_cast %128 : vector<3x8x128xf32> to vector<24x128xf32>
    %cst_46 = arith.constant dense<0.000000e+00> : vector<24x32xf32>
    %130 = tpu.matmul %129, %119, %cst_46 {dimension_numbers = #tpu.dot_dimension_numbers<[1], [1], [0], [0], [0, 0, 1, 0], [], []>} : vector<24x128xf32>, vector<32x128xf32>, vector<24x32xf32> -> vector<24x32xf32>
    %131 = vector.broadcast %120 : vector<1x32xf32> to vector<24x32xf32>
    %132 = arith.addf %130, %131 : vector<24x32xf32>
    %cst_47 = arith.constant 0.000000e+00 : f32
    %133 = vector.broadcast %cst_47 : f32 to vector<24x32xf32>
    %134 = arith.cmpf ogt, %132, %133 : vector<24x32xf32>
    %cst_48 = arith.constant 0.000000e+00 : f32
    %135 = vector.broadcast %cst_48 : f32 to vector<24x32xf32>
    %136 = arith.minimumf %132, %135 : vector<24x32xf32>
    %137 = math.exp %136 : vector<24x32xf32>
    %cst_49 = arith.constant 1.000000e+00 : f32
    %138 = vector.broadcast %cst_49 : f32 to vector<24x32xf32>
    %139 = arith.subf %137, %138 : vector<24x32xf32>
    %140 = arith.select %134, %132, %139 : vector<24x32xi1>, vector<24x32xf32>
    %141 = arith.addf %140, %96 : vector<24x32xf32>
    %cst_50 = arith.constant 0.000000e+00 : f32
    %142 = vector.broadcast %cst_50 : f32 to vector<24x32xf32>
    %143 = arith.cmpf ogt, %141, %142 : vector<24x32xf32>
    %cst_51 = arith.constant 0.000000e+00 : f32
    %144 = vector.broadcast %cst_51 : f32 to vector<24x32xf32>
    %145 = arith.minimumf %141, %144 : vector<24x32xf32>
    %146 = math.exp %145 : vector<24x32xf32>
    %cst_52 = arith.constant 1.000000e+00 : f32
    %147 = vector.broadcast %cst_52 : f32 to vector<24x32xf32>
    %148 = arith.subf %146, %147 : vector<24x32xf32>
    %149 = arith.select %143, %141, %148 : vector<24x32xi1>, vector<24x32xf32>
    %c64 = arith.constant 64 : index
    %c0_53 = arith.constant 0 : index
    %150 = vector.load %arg4[%c64, %c0_53] : memref<128x128xf32, #tpu.memory_space<vmem>>, vector<32x128xf32>
    %c8 = arith.constant 8 : index
    %c0_54 = arith.constant 0 : index
    %151 = vector.load %arg5[%c8, %c0_54] : memref<10x32xf32, #tpu.memory_space<vmem>>, vector<1x32xf32>
    %152 = vector.shape_cast %149 : vector<24x32xf32> to vector<3x8x32xf32>
    %cst_55 = arith.constant 0.000000e+00 : f32
    %153 = vector.broadcast %cst_55 : f32 to vector<3x6x32xf32>
    %154 = tpu.concatenate %153, %152 in 1 : vector<3x6x32xf32>, vector<3x8x32xf32> -> vector<3x14x32xf32>
    %155 = vector.extract_strided_slice %154 {offsets = [0, 0, 0], sizes = [3, 8, 32], strides = [1, 1, 1]} : vector<3x14x32xf32> to vector<3x8x32xf32>
    %156 = vector.extract_strided_slice %154 {offsets = [0, 2, 0], sizes = [3, 8, 32], strides = [1, 1, 1]} : vector<3x14x32xf32> to vector<3x8x32xf32>
    %157 = vector.extract_strided_slice %154 {offsets = [0, 4, 0], sizes = [3, 8, 32], strides = [1, 1, 1]} : vector<3x14x32xf32> to vector<3x8x32xf32>
    %158 = vector.extract_strided_slice %154 {offsets = [0, 6, 0], sizes = [3, 8, 32], strides = [1, 1, 1]} : vector<3x14x32xf32> to vector<3x8x32xf32>
    %159 = tpu.concatenate %155, %156, %157, %158 in 2 : vector<3x8x32xf32>, vector<3x8x32xf32>, vector<3x8x32xf32>, vector<3x8x32xf32> -> vector<3x8x128xf32>
    %160 = vector.shape_cast %159 : vector<3x8x128xf32> to vector<24x128xf32>
    %cst_56 = arith.constant dense<0.000000e+00> : vector<24x32xf32>
    %161 = tpu.matmul %160, %150, %cst_56 {dimension_numbers = #tpu.dot_dimension_numbers<[1], [1], [0], [0], [0, 0, 1, 0], [], []>} : vector<24x128xf32>, vector<32x128xf32>, vector<24x32xf32> -> vector<24x32xf32>
    %162 = vector.broadcast %151 : vector<1x32xf32> to vector<24x32xf32>
    %163 = arith.addf %161, %162 : vector<24x32xf32>
    %cst_57 = arith.constant 0.000000e+00 : f32
    %164 = vector.broadcast %cst_57 : f32 to vector<24x32xf32>
    %165 = arith.cmpf ogt, %163, %164 : vector<24x32xf32>
    %cst_58 = arith.constant 0.000000e+00 : f32
    %166 = vector.broadcast %cst_58 : f32 to vector<24x32xf32>
    %167 = arith.minimumf %163, %166 : vector<24x32xf32>
    %168 = math.exp %167 : vector<24x32xf32>
    %cst_59 = arith.constant 1.000000e+00 : f32
    %169 = vector.broadcast %cst_59 : f32 to vector<24x32xf32>
    %170 = arith.subf %168, %169 : vector<24x32xf32>
    %171 = arith.select %165, %163, %170 : vector<24x32xi1>, vector<24x32xf32>
    %c96 = arith.constant 96 : index
    %c0_60 = arith.constant 0 : index
    %172 = vector.load %arg4[%c96, %c0_60] : memref<128x128xf32, #tpu.memory_space<vmem>>, vector<32x128xf32>
    %c9 = arith.constant 9 : index
    %c0_61 = arith.constant 0 : index
    %173 = vector.load %arg5[%c9, %c0_61] : memref<10x32xf32, #tpu.memory_space<vmem>>, vector<1x32xf32>
    %174 = vector.shape_cast %171 : vector<24x32xf32> to vector<3x8x32xf32>
    %cst_62 = arith.constant 0.000000e+00 : f32
    %175 = vector.broadcast %cst_62 : f32 to vector<3x6x32xf32>
    %176 = tpu.concatenate %175, %174 in 1 : vector<3x6x32xf32>, vector<3x8x32xf32> -> vector<3x14x32xf32>
    %177 = vector.extract_strided_slice %176 {offsets = [0, 0, 0], sizes = [3, 8, 32], strides = [1, 1, 1]} : vector<3x14x32xf32> to vector<3x8x32xf32>
    %178 = vector.extract_strided_slice %176 {offsets = [0, 2, 0], sizes = [3, 8, 32], strides = [1, 1, 1]} : vector<3x14x32xf32> to vector<3x8x32xf32>
    %179 = vector.extract_strided_slice %176 {offsets = [0, 4, 0], sizes = [3, 8, 32], strides = [1, 1, 1]} : vector<3x14x32xf32> to vector<3x8x32xf32>
    %180 = vector.extract_strided_slice %176 {offsets = [0, 6, 0], sizes = [3, 8, 32], strides = [1, 1, 1]} : vector<3x14x32xf32> to vector<3x8x32xf32>
    %181 = tpu.concatenate %177, %178, %179, %180 in 2 : vector<3x8x32xf32>, vector<3x8x32xf32>, vector<3x8x32xf32>, vector<3x8x32xf32> -> vector<3x8x128xf32>
    %182 = vector.shape_cast %181 : vector<3x8x128xf32> to vector<24x128xf32>
    %cst_63 = arith.constant dense<0.000000e+00> : vector<24x32xf32>
    %183 = tpu.matmul %182, %172, %cst_63 {dimension_numbers = #tpu.dot_dimension_numbers<[1], [1], [0], [0], [0, 0, 1, 0], [], []>} : vector<24x128xf32>, vector<32x128xf32>, vector<24x32xf32> -> vector<24x32xf32>
    %184 = vector.broadcast %173 : vector<1x32xf32> to vector<24x32xf32>
    %185 = arith.addf %183, %184 : vector<24x32xf32>
    %cst_64 = arith.constant 0.000000e+00 : f32
    %186 = vector.broadcast %cst_64 : f32 to vector<24x32xf32>
    %187 = arith.cmpf ogt, %185, %186 : vector<24x32xf32>
    %cst_65 = arith.constant 0.000000e+00 : f32
    %188 = vector.broadcast %cst_65 : f32 to vector<24x32xf32>
    %189 = arith.minimumf %185, %188 : vector<24x32xf32>
    %190 = math.exp %189 : vector<24x32xf32>
    %cst_66 = arith.constant 1.000000e+00 : f32
    %191 = vector.broadcast %cst_66 : f32 to vector<24x32xf32>
    %192 = arith.subf %190, %191 : vector<24x32xf32>
    %193 = arith.select %187, %185, %192 : vector<24x32xi1>, vector<24x32xf32>
    %194 = arith.addf %193, %149 : vector<24x32xf32>
    %cst_67 = arith.constant 0.000000e+00 : f32
    %195 = vector.broadcast %cst_67 : f32 to vector<24x32xf32>
    %196 = arith.cmpf ogt, %194, %195 : vector<24x32xf32>
    %cst_68 = arith.constant 0.000000e+00 : f32
    %197 = vector.broadcast %cst_68 : f32 to vector<24x32xf32>
    %198 = arith.minimumf %194, %197 : vector<24x32xf32>
    %199 = math.exp %198 : vector<24x32xf32>
    %cst_69 = arith.constant 1.000000e+00 : f32
    %200 = vector.broadcast %cst_69 : f32 to vector<24x32xf32>
    %201 = arith.subf %199, %200 : vector<24x32xf32>
    %202 = arith.select %196, %194, %201 : vector<24x32xi1>, vector<24x32xf32>
    %203 = vector.shape_cast %202 : vector<24x32xf32> to vector<3x8x32xf32>
    %204 = vector.extract_strided_slice %203 {offsets = [0, 5, 0], sizes = [3, 1, 32], strides = [1, 1, 1]} : vector<3x8x32xf32> to vector<3x1x32xf32>
    %205 = vector.shape_cast %204 : vector<3x1x32xf32> to vector<3x32xf32>
    %c0_70 = arith.constant 0 : index
    %c0_71 = arith.constant 0 : index
    %c0_72 = arith.constant 0 : index
    %206 = vector.load %arg6[%c0_70, %c0_71, %c0_72] : memref<1x3x32xf32, #tpu.memory_space<vmem>>, vector<1x3x32xf32>
    %207 = vector.shape_cast %206 : vector<1x3x32xf32> to vector<3x32xf32>
    %208 = vector.shape_cast %205 : vector<3x32xf32> to vector<1x3x32xf32>
    tpu.vector_store %arg6[%c0_70, %c0_71, %c0_72], %208 {strides = array<i32>} : memref<1x3x32xf32, #tpu.memory_space<vmem>>, vector<1x3x32xf32>,
    return
  }
  func.func @transform_0(%arg0: i32) -> (i32, i32, i32) {
    %c0_i32 = arith.constant 0 : i32
    %c0_i32_0 = arith.constant 0 : i32
    %c0_i32_1 = arith.constant 0 : i32
    return %arg0, %c0_i32, %c0_i32_0 : i32, i32, i32
  }
  func.func @transform_1(%arg0: i32) -> (i32, i32) {
    %c0_i32 = arith.constant 0 : i32
    %c0_i32_0 = arith.constant 0 : i32
    %c0_i32_1 = arith.constant 0 : i32
    return %c0_i32, %c0_i32_0 : i32, i32
  }
  func.func @transform_2(%arg0: i32) -> (i32, i32) {
    %c0_i32 = arith.constant 0 : i32
    %c0_i32_0 = arith.constant 0 : i32
    %c0_i32_1 = arith.constant 0 : i32
    return %c0_i32, %c0_i32_0 : i32, i32
  }
  func.func @transform_3(%arg0: i32) -> (i32, i32) {
    %c0_i32 = arith.constant 0 : i32
    %c0_i32_0 = arith.constant 0 : i32
    %c0_i32_1 = arith.constant 0 : i32
    return %c0_i32, %c0_i32_0 : i32, i32
  }
  func.func @transform_4(%arg0: i32) -> (i32, i32) {
    %c0_i32 = arith.constant 0 : i32
    %c0_i32_0 = arith.constant 0 : i32
    %c0_i32_1 = arith.constant 0 : i32
    return %c0_i32, %c0_i32_0 : i32, i32
  }
  func.func @transform_5(%arg0: i32) -> (i32, i32, i32) {
    %c0_i32 = arith.constant 0 : i32
    %c0_i32_0 = arith.constant 0 : i32
    %c0_i32_1 = arith.constant 0 : i32
    return %arg0, %c0_i32, %c0_i32_0 : i32, i32, i32
  }
}

</mosaic_0001>

<llo_original>
// kernel: atcnet_forward_pallas.3
$region0: #{atcnet_forward_pallas.3}
  #allocation0 [shape = 'u32[]', space=smem, size = 0x4, offset = 0x4, fixed_abs, tag = 'smem constant byte address 0x4 - core index']
  #allocation1 [shape = 'u32[72,128]{1,0:T(1,128)}', space=vmem, size = 0x9000, scoped, tag = 'internal scratch']
  %s0 = inlined_call_operand.vmem [shape: f32[6,8,32], index: 0, kind: input, shape index: {}]
  %s1 = inlined_call_operand.vmem [shape: f32[96,32], index: 1, kind: input, shape index: {}]
  %s2 = inlined_call_operand.vmem [shape: f32[32,32], index: 2, kind: input, shape index: {}]
  %s3 = inlined_call_operand.vmem [shape: f32[128,128], index: 3, kind: input, shape index: {}]
  %s4 = inlined_call_operand.vmem [shape: f32[10,32], index: 4, kind: input, shape index: {}]
  %s5 = inlined_call_operand.vmem [shape: f32[2,3,32], index: 5, kind: output, shape index: {}]
  %s6 = sld [smem:[#allocation0]]
  $region53: #{atcnet_forward_pallas.3} parent=0
    _
  %s8 = ssub.s32 1, %s6
  %s9 = scalar_select 0, %s8, %s6
  loop: start=0, step=1, limit=4
  $region2: #{atcnet_forward_pallas.3} parent=0 // loop_pre_header
    _
  $region3: #{atcnet_forward_pallas.3} parent=0 // loop_header
    %s11 = sphi 0, %s15
    %p12 = scmp.ge.s32.totalorder %s11, 4
    %s21 = sphi 0, %s23
    %s24 = sphi 0, %s21
    %s25 = sphi 0, %s24
    %s41 = sphi 0, %s25
    %s45 = sphi 0, %s45
    %s47 = sphi 0, %s45
    %s48 = sphi 0, %s47
    %s62 = sphi 0, %s48
    %s66 = sphi 0, %s66
    %s68 = sphi 0, %s66
    %s69 = sphi 0, %s68
    %s83 = sphi 0, %s69
    %s87 = sphi 0, %s87
    %s89 = sphi 0, %s87
    %s90 = sphi 0, %s89
    %s104 = sphi 0, %s90
    %s108 = sphi 0, %s108
    %s110 = sphi 0, %s108
    %s111 = sphi 0, %s110
    %s125 = sphi 0, %s111
    %s131 = sphi 0, %s133
    %s134 = sphi 0, %s131
    %s135 = sphi 0, %s134
    %s151 = sphi 0, %s135
  $region4: #{atcnet_forward_pallas.3} parent=0 // loop_header_branch
    %14 = sbr.rel (%p12) target = $region8
  $region5: #{atcnet_forward_pallas.3} parent=0 // loop_body
    %s16 = ssub.s32 %s11, 1
    %s17 = ssub.s32 %s11, 2
    %s18 = sadd.s32 %s11, 1
    %s19 = ssub.s32 %s11, %s18
    %p20 = scmp.eq.s32.totalorder %s19, 0
    %s22 = sadd.s32 %s21, 1
    %s23 = scalar_select %p20, %s21, %s22
    %p26 = pneg %p20
    %p27 = scmp.eq.s32.totalorder %s11, 1
    %p28 = por %p26, %p27
    %p29 = scmp.ne.s32.totalorder %s21, %s24
    %p30 = scmp.eq.s32.totalorder %s11, 0
    %p31 = por %p29, %p30
    %p32 = scmp.ne.s32.totalorder %s21, %s24
    %p33 = scmp.eq.s32.totalorder %s16, 1
    %p34 = por %p32, %p33
    %p35 = scmp.ne.s32.totalorder %s24, %s25
    %p36 = scmp.eq.s32.totalorder %s16, 0
    %p37 = por %p35, %p36
    %p38 = scmp.ne.s32.totalorder %s24, %s25
    %p39 = scmp.eq.s32.totalorder %s17, 1
    %p40 = por %p38, %p39
    %p42 = scmp.ne.s32.totalorder %s25, %s41
    %p43 = scmp.eq.s32.totalorder %s17, 0
    %p44 = por %p42, %p43
    %s46 = sadd.s32 %s45, 1
    %p49 = scmp.eq.s32.totalorder %s11, 1
    %p50 = scmp.ne.s32.totalorder %s45, %s47
    %p51 = scmp.eq.s32.totalorder %s11, 0
    %p52 = por %p50, %p51
    %p53 = scmp.ne.s32.totalorder %s45, %s47
    %p54 = scmp.eq.s32.totalorder %s16, 1
    %p55 = por %p53, %p54
    %p56 = scmp.ne.s32.totalorder %s47, %s48
    %p57 = scmp.eq.s32.totalorder %s16, 0
    %p58 = por %p56, %p57
    %p59 = scmp.ne.s32.totalorder %s47, %s48
    %p60 = scmp.eq.s32.totalorder %s17, 1
    %p61 = por %p59, %p60
    %p63 = scmp.ne.s32.totalorder %s48, %s62
    %p64 = scmp.eq.s32.totalorder %s17, 0
    %p65 = por %p63, %p64
    %s67 = sadd.s32 %s66, 1
    %p70 = scmp.eq.s32.totalorder %s11, 1
    %p71 = scmp.ne.s32.totalorder %s66, %s68
    %p72 = scmp.eq.s32.totalorder %s11, 0
    %p73 = por %p71, %p72
    %p74 = scmp.ne.s32.totalorder %s66, %s68
    %p75 = scmp.eq.s32.totalorder %s16, 1
    %p76 = por %p74, %p75
    %p77 = scmp.ne.s32.totalorder %s68, %s69
    %p78 = scmp.eq.s32.totalorder %s16, 0
    %p79 = por %p77, %p78
    %p80 = scmp.ne.s32.totalorder %s68, %s69
    %p81 = scmp.eq.s32.totalorder %s17, 1
    %p82 = por %p80, %p81
    %p84 = scmp.ne.s32.totalorder %s69, %s83
    %p85 = scmp.eq.s32.totalorder %s17, 0
    %p86 = por %p84, %p85
    %s88 = sadd.s32 %s87, 1
    %p91 = scmp.eq.s32.totalorder %s11, 1
    %p92 = scmp.ne.s32.totalorder %s87, %s89
    %p93 = scmp.eq.s32.totalorder %s11, 0
    %p94 = por %p92, %p93
    %p95 = scmp.ne.s32.totalorder %s87, %s89
    %p96 = scmp.eq.s32.totalorder %s16, 1
    %p97 = por %p95, %p96
    %p98 = scmp.ne.s32.totalorder %s89, %s90
    %p99 = scmp.eq.s32.totalorder %s16, 0
    %p100 = por %p98, %p99
    %p101 = scmp.ne.s32.totalorder %s89, %s90
    %p102 = scmp.eq.s32.totalorder %s17, 1
    %p103 = por %p101, %p102
    %p105 = scmp.ne.s32.totalorder %s90, %s104
    %p106 = scmp.eq.s32.totalorder %s17, 0
    %p107 = por %p105, %p106
    %s109 = sadd.s32 %s108, 1
    %p112 = scmp.eq.s32.totalorder %s11, 1
    %p113 = scmp.ne.s32.totalorder %s108, %s110
    %p114 = scmp.eq.s32.totalorder %s11, 0
    %p115 = por %p113, %p114
    %p116 = scmp.ne.s32.totalorder %s108, %s110
    %p117 = scmp.eq.s32.totalorder %s16, 1
    %p118 = por %p116, %p117
    %p119 = scmp.ne.s32.totalorder %s110, %s111
    %p120 = scmp.eq.s32.totalorder %s16, 0
    %p121 = por %p119, %p120
    %p122 = scmp.ne.s32.totalorder %s110, %s111
    %p123 = scmp.eq.s32.totalorder %s17, 1
    %p124 = por %p122, %p123
    %p126 = scmp.ne.s32.totalorder %s111, %s125
    %p127 = scmp.eq.s32.totalorder %s17, 0
    %p128 = por %p126, %p127
    %s129 = ssub.s32 %s11, %s18
    %p130 = scmp.eq.s32.totalorder %s129, 0
    %s132 = sadd.s32 %s131, 1
    %s133 = scalar_select %p130, %s131, %s132
    %p136 = pneg %p130
    %p137 = scmp.eq.s32.totalorder %s11, 1
    %p138 = por %p136, %p137
    %p139 = scmp.ne.s32.totalorder %s131, %s134
    %p140 = scmp.eq.s32.totalorder %s11, 0
    %p141 = por %p139, %p140
    %p142 = scmp.ne.s32.totalorder %s131, %s134
    %p143 = scmp.eq.s32.totalorder %s16, 1
    %p144 = por %p142, %p143
    %p145 = scmp.ne.s32.totalorder %s134, %s135
    %p146 = scmp.eq.s32.totalorder %s16, 0
    %p147 = por %p145, %p146
    %p148 = scmp.ne.s32.totalorder %s134, %s135
    %p149 = scmp.eq.s32.totalorder %s17, 1
    %p150 = por %p148, %p149
    %p152 = scmp.ne.s32.totalorder %s135, %s151
    %p153 = scmp.eq.s32.totalorder %s17, 0
    %p154 = por %p152, %p153
    %p155 = scmp.le.s32.totalorder 1, %s11
    %p156 = scmp.lt.s32.totalorder %s11, 3
    %p157 = pnand %p155, %p156
    %p158 = pneg %p157
    // Predicated region
    $region9: #{atcnet_forward_pallas.3} parent=5 // pred_check
      _
    $region10: #{atcnet_forward_pallas.3} parent=5 // pred_check_branch
      %160 = sbr.rel (%p157) target = $region12
    $region11: #{atcnet_forward_pallas.3} parent=5 // pred_region
      %s161 = ssub.s32 %s11, 1
      // Predicated region
      $region13: #{atcnet_forward_pallas.3} parent=11 // pred_check
        %p162 = pneg %p58
      $region14: #{atcnet_forward_pallas.3} parent=11 // pred_check_branch
        %164 = sbr.rel (%p162) target = $region16
      $region15: #{atcnet_forward_pallas.3} parent=11 // pred_region
        _
      $region16: #{atcnet_forward_pallas.3} parent=11 // pred_fallthru
        _
      // Predicated region
      $region17: #{atcnet_forward_pallas.3} parent=11 // pred_check
        %p165 = pneg %p79
      $region18: #{atcnet_forward_pallas.3} parent=11 // pred_check_branch
        %167 = sbr.rel (%p165) target = $region20
      $region19: #{atcnet_forward_pallas.3} parent=11 // pred_region
        _
      $region20: #{atcnet_forward_pallas.3} parent=11 // pred_fallthru
        _
      // Predicated region
      $region21: #{atcnet_forward_pallas.3} parent=11 // pred_check
        %p168 = pneg %p100
      $region22: #{atcnet_forward_pallas.3} parent=11 // pred_check_branch
        %170 = sbr.rel (%p168) target = $region24
      $region23: #{atcnet_forward_pallas.3} parent=11 // pred_region
        _
      $region24: #{atcnet_forward_pallas.3} parent=11 // pred_fallthru
        _
      // Predicated region
      $region25: #{atcnet_forward_pallas.3} parent=11 // pred_check
        %p171 = pneg %p121
      $region26: #{atcnet_forward_pallas.3} parent=11 // pred_check_branch
        %173 = sbr.rel (%p171) target = $region28
      $region27: #{atcnet_forward_pallas.3} parent=11 // pred_region
        _
      $region28: #{atcnet_forward_pallas.3} parent=11 // pred_fallthru
        _
    $region12: #{atcnet_forward_pallas.3} parent=5 // pred_fallthru
      _
    %p174 = scmp.lt.s32.totalorder %s11, 2
    // Predicated region
    $region29: #{atcnet_forward_pallas.3} parent=5 // pred_check
      %p175 = pneg %p174
    $region30: #{atcnet_forward_pallas.3} parent=5 // pred_check_branch
      %177 = sbr.rel (%p175) target = $region32
    $region31: #{atcnet_forward_pallas.3} parent=5 // pred_region
      // Predicated region
      $region33: #{atcnet_forward_pallas.3} parent=31 // pred_check
        %p178 = pneg %p31
      $region34: #{atcnet_forward_pallas.3} parent=31 // pred_check_branch
        %180 = sbr.rel (%p178) target = $region36
      $region35: #{atcnet_forward_pallas.3} parent=31 // pred_region
        %s181 = smul.u32 3, %s11
        %p182 = scmp.lt.s32.totalorder %s181, 5
        %s183 = scalar_select %p182, %s181, 5
        %s184 = smul.addr %s183, 8
        %s185 = scalar_lea.vmem %s0, %s184
        %s186 = smul.u32 3, %s11
      $region36: #{atcnet_forward_pallas.3} parent=31 // pred_fallthru
        _
    $region32: #{atcnet_forward_pallas.3} parent=5 // pred_fallthru
      _
    %p187 = scmp.le.s32.totalorder 1, %s11
    %p188 = scmp.lt.s32.totalorder %s11, 3
    %p189 = pnand %p187, %p188
    %p190 = pneg %p189
    // Predicated region
    $region37: #{atcnet_forward_pallas.3} parent=5 // pred_check
      _
    $region38: #{atcnet_forward_pallas.3} parent=5 // pred_check_branch
      %192 = sbr.rel (%p189) target = $region40
    $region39: #{atcnet_forward_pallas.3} parent=5 // pred_region
      %s193 = ssub.s32 %s11, 1
      %s194 = smul.u32 3, %s16
      %p195 = scmp.lt.s32.totalorder %s194, 5
      %s196 = scalar_select %p195, %s194, 5
      %s197 = smul.addr %s196, 8
      %s198 = scalar_lea.vmem %s0, %s197
      %p199 = pneg %p37
      %p200 = pneg %p34
      %p201 = pneg %p58
      %p202 = pneg %p55
      %p203 = pneg %p79
      %p204 = pneg %p76
      %p205 = pneg %p100
      %p206 = pneg %p97
      %p207 = pneg %p121
      %p208 = pneg %p118
      %p209 = pneg %p147
      %p210 = pneg %p144
      %p211 = scmp.lt.s32.totalorder %s16, 1
      %s212 = scalar_select %p211, %s16, 1
      %s213 = smul.addr %s212, 4
      %s214 = scalar_lea.vmem %s5, %s213
      %s215 = smul.u32 3, %s16
      %p216 = scmp.lt.s32.totalorder %s215, 5
      %s217 = scalar_select %p216, %s215, 5
      %s218 = smul.addr %s217, 8
      %s219 = scalar_lea.vmem %s0, %s218
      %s220 = smul.u32 3, %s16
      %p221 = scmp.lt.s32.totalorder %s16, 1
      %s222 = scalar_select %p221, %s16, 1
      %s223 = smul.addr %s222, 4
      %s224 = scalar_lea.vmem %s5, %s223
      %v225 = vld [vmem:[%s219] sm:$0xff]
      %v226 = vld [vmem:[%s219 + $0x8] sm:$0xff]
      %v227 = vld [vmem:[%s219 + $0x10] sm:$0xff]
      %vm228 = vcmask 261120
      %v229 = vsel %vm228, %v225, 0.0
      %230 = vadd.xlane.f32.xlu0 %v229
      %v231 = vpop.xlane.xlu0 %230
      %v232 = vsel %vm228, %v226, 0.0
      %233 = vadd.xlane.f32.xlu0 %v232
      %v234 = vpop.xlane.xlu0 %233
      %v235 = vsel %vm228, %v227, 0.0
      %236 = vadd.xlane.f32.xlu0 %v235
      %v237 = vpop.xlane.xlu0 %236
      %v238 = vrcp.pop 32.0
      %v239 = vmul.f32 32.0, %v238
      %v240 = vsub.f32 1.0, %v239
      %v241 = vmul.f32 %v238, %v240
      %v242 = vadd.f32 %v238, %v241
      %vm243 = vweird.f32 %v238
      %v244 = vsel %vm243, %v238, %v242
      %v245 = vmul.f32 %v231, %v244
      %v246 = vmul.f32 %v234, %v244
      %v247 = vmul.f32 %v237, %v244
      %v248 = vsub.f32 %v225, %v245
      %v249 = vsub.f32 %v226, %v246
      %v250 = vsub.f32 %v227, %v247
      %v251 = vmul.f32 %v248, %v248
      %v252 = vmul.f32 %v249, %v249
      %v253 = vmul.f32 %v250, %v250
      %v254 = vsel %vm228, %v251, 0.0
      %255 = vadd.xlane.f32.xlu0 %v254
      %v256 = vpop.xlane.xlu0 %255
      %v257 = vsel %vm228, %v252, 0.0
      %258 = vadd.xlane.f32.xlu0 %v257
      %v259 = vpop.xlane.xlu0 %258
      %v260 = vsel %vm228, %v253, 0.0
      %261 = vadd.xlane.f32.xlu0 %v260
      %v262 = vpop.xlane.xlu0 %261
      %v263 = vmul.f32 %v256, %v244
      %v264 = vmul.f32 %v259, %v244
      %v265 = vmul.f32 %v262, %v244
      %v266 = vadd.f32 %v263, 1e-06
      %v267 = vadd.f32 %v264, 1e-06
      %v268 = vadd.f32 %v265, 1e-06
      %v269 = vrsqrt.pop %v266
      %v270 = vmul.f32 %v269, %v266
      %v271 = vmul.f32 %v270, %v269
      %v272 = vmul.f32 0.5, %v271
      %v273 = vsub.f32 1.5, %v272
      %v274 = vmul.f32 %v269, %v273
      %vm275 = vweird.f32 %v266
      %vm276 = vweird.f32 %v269
      %vm277 = vmor %vm275, %vm276
      %v278 = vsel %vm277, %v269, %v274
      %v279 = vrsqrt.pop %v267
      %v280 = vmul.f32 %v279, %v267
      %v281 = vmul.f32 %v280, %v279
      %v282 = vmul.f32 0.5, %v281
      %v283 = vsub.f32 1.5, %v282
      %v284 = vmul.f32 %v279, %v283
      %vm285 = vweird.f32 %v267
      %vm286 = vweird.f32 %v279
      %vm287 = vmor %vm285, %vm286
      %v288 = vsel %vm287, %v279, %v284
      %v289 = vrsqrt.pop %v268
      %v290 = vmul.f32 %v289, %v268
      %v291 = vmul.f32 %v290, %v289
      %v292 = vmul.f32 0.5, %v291
      %v293 = vsub.f32 1.5, %v292
      %v294 = vmul.f32 %v289, %v293
      %vm295 = vweird.f32 %v268
      %vm296 = vweird.f32 %v289
      %vm297 = vmor %vm295, %vm296
      %v298 = vsel %vm297, %v289, %v294
      %v299 = vmul.f32 %v248, %v278
      %v300 = vmul.f32 %v249, %v288
      %v301 = vmul.f32 %v250, %v298
      %v302 = vld [vmem:[%s4] sm:$0x1]
      %v303 = vperm.slane %v302, 0
      %v304 = vmul.f32 %v299, %v303
      %v305 = vmul.f32 %v300, %v303
      %v306 = vmul.f32 %v301, %v303
      %v307 = vld [vmem:[%s4 + $0x1] sm:$0x1]
      %v308 = vperm.slane %v307, 0
      %v309 = vadd.f32 %v304, %v308
      %v310 = vadd.f32 %v305, %v308
      %v311 = vadd.f32 %v306, %v308
      %v312 = vld [vmem:[%s1] sm:$0xff]
      %v313 = vld [vmem:[%s1 + $0x8] sm:$0xff]
      %v314 = vld [vmem:[%s1 + $0x10] sm:$0xff]
      %v315 = vld [vmem:[%s1 + $0x18] sm:$0xff]
      %v316 = vld [vmem:[%s1 + $0x20] sm:$0xff]
      %v317 = vld [vmem:[%s1 + $0x28] sm:$0xff]
      %v318 = vld [vmem:[%s1 + $0x30] sm:$0xff]
      %v319 = vld [vmem:[%s1 + $0x38] sm:$0xff]
      %v320 = vld [vmem:[%s1 + $0x40] sm:$0xff]
      %v321 = vld [vmem:[%s1 + $0x48] sm:$0xff]
      %v322 = vld [vmem:[%s1 + $0x50] sm:$0xff]
      %v323 = vld [vmem:[%s1 + $0x58] sm:$0xff]
      %v325 = vsel %vm228, %v309, 0
      %v328 = vsel %vm228, %v310, 0
      %v331 = vsel %vm228, %v311, 0
      %v334 = vsel %vm228, %v312, 0
      %v337 = vsel %vm228, %v313, 0
      %v340 = vsel %vm228, %v314, 0
      %v343 = vsel %vm228, %v315, 0
      %v346 = vsel %vm228, %v316, 0
      %v349 = vsel %vm228, %v317, 0
      %v352 = vsel %vm228, %v318, 0
      %v355 = vsel %vm228, %v319, 0
      %v358 = vsel %vm228, %v320, 0
      %v361 = vsel %vm228, %v321, 0
      %v364 = vsel %vm228, %v322, 0
      %v367 = vsel %vm228, %v323, 0
      %369 = vmatpush.xpose.msra.mxu0 0.0
      %370 = vmatpush.xpose.msra.mxu0 0.0
      %371 = vmatpush.xpose.msra.mxu0 0.0
      %372 = vmatpush.xpose.msra.mxu0 0.0
      %373 = vmatpush.xpose.msra.mxu0 %v367
      %374 = vmatpush.xpose.msra.mxu0 %v364
      %375 = vmatpush.xpose.msra.mxu0 %v361
      %376 = vmatpush.xpose.msra.mxu0 %v358
      %377 = vmatpush.xpose.msra.mxu0 %v355
      %378 = vmatpush.xpose.msra.mxu0 %v352
      %379 = vmatpush.xpose.msra.mxu0 %v349
      %380 = vmatpush.xpose.msra.mxu0 %v346
      %381 = vmatpush.xpose.msra.mxu0 %v343
      %382 = vmatpush.xpose.msra.mxu0 %v340
      %383 = vmatpush.xpose.msra.mxu0 %v337
      %384 = vmatpush.xpose.msra.mxu0 %v334
      %385 = vmatmul.f32.gmra.mxu0 %v325
      %v386 = vpop.f32.mrf.mxu0
      %v387 = vadd.f32 0.0, %v386
      %388 = vmatmul.f32.gmra.mxu0 %v328
      %v389 = vpop.f32.mrf.mxu0
      %v390 = vadd.f32 0.0, %v389
      %391 = vmatmul.f32.gmra.mxu0 %v331
      %v392 = vpop.f32.mrf.mxu0
      %v393 = vadd.f32 0.0, %v392
      %394 = vdwg.mxu0
      %v395 = vld [vmem:[%s4 + $0x2] sm:$0x1]
      %v396 = vperm.slane %v395, 0
      %v397 = vadd.f32 %v387, %v396
      %v398 = vadd.f32 %v390, %v396
      %v399 = vadd.f32 %v393, %v396
      %v400 = vld [vmem:[%s4 + $0x3] sm:$0x1]
      %v401 = vperm.slane %v400, 0
      %403 = vrot.lane.b32.xlu0 %v401, 32
      %v404 = vpop.permute.xlu0 %403
      %v406 = vadd.f32 %v387, %v404
      %v407 = vadd.f32 %v390, %v404
      %v408 = vadd.f32 %v393, %v404
      %v409 = vld [vmem:[%s4 + $0x4] sm:$0x1]
      %v410 = vperm.slane %v409, 0
      %412 = vrot.lane.b32.xlu0 %v410, 64
      %v413 = vpop.permute.xlu0 %412
      %v415 = vadd.f32 %v387, %v413
      %v416 = vadd.f32 %v390, %v413
      %v417 = vadd.f32 %v393, %v413
      %v418 = vlaneseq
      %v419 = vand.u32 %v418, 127
      %421 = vrot.lane.b32.xlu0 %v406, 96
      %v422 = vpop.permute.xlu0 %421
      %vm423 = vcmask 130048
      %v425 = vsel %vm423, %v397, 0
      %v427 = vsel %vm423, %v422, 0
      %429 = vmatpush.xpose.msra.mxu0 0.0
      %430 = vmatpush.xpose.msra.mxu0 0.0
      %431 = vmatpush.xpose.msra.mxu0 0.0
      %432 = vmatpush.xpose.msra.mxu0 0.0
      %433 = vmatpush.xpose.msra.mxu0 0.0
      %434 = vmatpush.xpose.msra.mxu0 0.0
      %435 = vmatpush.xpose.msra.mxu0 0.0
      %436 = vmatpush.xpose.msra.mxu0 0.0
      %437 = vmatpush.xpose.msra.mxu0 0.0
      %438 = vmatpush.xpose.msra.mxu0 0.0
      %439 = vmatpush.xpose.msra.mxu0 0.0
      %440 = vmatpush.xpose.msra.mxu0 0.0
      %441 = vmatpush.xpose.msra.mxu0 0.0
      %442 = vmatpush.xpose.msra.mxu0 0.0
      %443 = vmatpush.xpose.msra.mxu0 0.0
      %444 = vmatpush.xpose.msra.mxu0 %v427
      %445 = vmatmul.f32.gmra.mxu0 %v425
      %v446 = vpop.f32.mrf.mxu0
      %v447 = vadd.f32 0.0, %v446
      %448 = vdwg.mxu0
      %450 = vrot.lane.b32.xlu0 %v407, 96
      %v451 = vpop.permute.xlu0 %450
      %v453 = vsel %vm423, %v398, 0
      %v455 = vsel %vm423, %v451, 0
      %457 = vmatpush.xpose.msra.mxu0 0.0
      %458 = vmatpush.xpose.msra.mxu0 0.0
      %459 = vmatpush.xpose.msra.mxu0 0.0
      %460 = vmatpush.xpose.msra.mxu0 0.0
      %461 = vmatpush.xpose.msra.mxu0 0.0
      %462 = vmatpush.xpose.msra.mxu0 0.0
      %463 = vmatpush.xpose.msra.mxu0 0.0
      %464 = vmatpush.xpose.msra.mxu0 0.0
      %465 = vmatpush.xpose.msra.mxu0 0.0
      %466 = vmatpush.xpose.msra.mxu0 0.0
      %467 = vmatpush.xpose.msra.mxu0 0.0
      %468 = vmatpush.xpose.msra.mxu0 0.0
      %469 = vmatpush.xpose.msra.mxu0 0.0
      %470 = vmatpush.xpose.msra.mxu0 0.0
      %471 = vmatpush.xpose.msra.mxu0 0.0
      %472 = vmatpush.xpose.msra.mxu0 %v455
      %473 = vmatmul.f32.gmra.mxu0 %v453
      %v474 = vpop.f32.mrf.mxu0
      %v475 = vadd.f32 0.0, %v474
      %476 = vdwg.mxu0
      %478 = vrot.lane.b32.xlu0 %v408, 96
      %v479 = vpop.permute.xlu0 %478
      %v481 = vsel %vm423, %v399, 0
      %v483 = vsel %vm423, %v479, 0
      %485 = vmatpush.xpose.msra.mxu0 0.0
      %486 = vmatpush.xpose.msra.mxu0 0.0
      %487 = vmatpush.xpose.msra.mxu0 0.0
      %488 = vmatpush.xpose.msra.mxu0 0.0
      %489 = vmatpush.xpose.msra.mxu0 0.0
      %490 = vmatpush.xpose.msra.mxu0 0.0
      %491 = vmatpush.xpose.msra.mxu0 0.0
      %492 = vmatpush.xpose.msra.mxu0 0.0
      %493 = vmatpush.xpose.msra.mxu0 0.0
      %494 = vmatpush.xpose.msra.mxu0 0.0
      %495 = vmatpush.xpose.msra.mxu0 0.0
      %496 = vmatpush.xpose.msra.mxu0 0.0
      %497 = vmatpush.xpose.msra.mxu0 0.0
      %498 = vmatpush.xpose.msra.mxu0 0.0
      %499 = vmatpush.xpose.msra.mxu0 0.0
      %500 = vmatpush.xpose.msra.mxu0 %v483
      %501 = vmatmul.f32.gmra.mxu0 %v481
      %v502 = vpop.f32.mrf.mxu0
      %v503 = vadd.f32 0.0, %v502
      %504 = vdwg.mxu0
      %v505 = vmul.f32 %v447, 0.25
      %v506 = vmul.f32 %v475, 0.25
      %v507 = vmul.f32 %v503, 0.25
      %vm508 = vcmp.lt.s32.totalorder %v419, 6
      %v509 = vsel %vm508, %v505, -1e+30
      %v510 = vsel %vm508, %v506, -1e+30
      %v511 = vsel %vm508, %v507, -1e+30
      %vm512 = vcmask 64512
      %v513 = vsel %vm512, %v509, -inf
      %514 = vmax.xlane.f32.xlu0 %v513
      %v515 = vpop.xlane.xlu0 %514
      %v516 = vsel %vm512, %v510, -inf
      %517 = vmax.xlane.f32.xlu0 %v516
      %v518 = vpop.xlane.xlu0 %517
      %v519 = vsel %vm512, %v511, -inf
      %520 = vmax.xlane.f32.xlu0 %v519
      %v521 = vpop.xlane.xlu0 %520
      %v522 = vsub.f32 %v509, %v515
      %v523 = vsub.f32 %v510, %v518
      %v524 = vsub.f32 %v511, %v521
      %v525 = vmul.f32 %v522, 1.442695
      %v526 = vpow.pop %v525
      %v527 = vmul.f32 %v523, 1.442695
      %v528 = vpow.pop %v527
      %v529 = vmul.f32 %v524, 1.442695
      %v530 = vpow.pop %v529
      %v531 = vsel %vm512, %v526, 0.0
      %532 = vadd.xlane.f32.xlu0 %v531
      %v533 = vpop.xlane.xlu0 %532
      %v534 = vsel %vm512, %v528, 0.0
      %535 = vadd.xlane.f32.xlu0 %v534
      %v536 = vpop.xlane.xlu0 %535
      %v537 = vsel %vm512, %v530, 0.0
      %538 = vadd.xlane.f32.xlu0 %v537
      %v539 = vpop.xlane.xlu0 %538
      %v540 = vrcp.pop %v533
      %v541 = vmul.f32 %v533, %v540
      %v542 = vsub.f32 1.0, %v541
      %v543 = vmul.f32 %v540, %v542
      %v544 = vadd.f32 %v540, %v543
      %vm545 = vweird.f32 %v533
      %vm546 = vweird.f32 %v540
      %vm547 = vmor %vm545, %vm546
      %v548 = vsel %vm547, %v540, %v544
      %v549 = vand.u32 2147483647, %v533
      %vm550 = vcmp.eq.f32.partialorder %v549, 8.507059e+37
      %v551 = vand.u32 %v533, 2147483648
      %v552 = vor.u32 1.1754944e-38, %v551
      %v553 = vsel %vm550, %v552, %v548
      %v554 = vmul.f32 %v526, %v553
      %v555 = vrcp.pop %v536
      %v556 = vmul.f32 %v536, %v555
      %v557 = vsub.f32 1.0, %v556
      %v558 = vmul.f32 %v555, %v557
      %v559 = vadd.f32 %v555, %v558
      %vm560 = vweird.f32 %v536
      %vm561 = vweird.f32 %v555
      %vm562 = vmor %vm560, %vm561
      %v563 = vsel %vm562, %v555, %v559
      %v564 = vand.u32 2147483647, %v536
      %vm565 = vcmp.eq.f32.partialorder %v564, 8.507059e+37
      %v566 = vand.u32 %v536, 2147483648
      %v567 = vor.u32 1.1754944e-38, %v566
      %v568 = vsel %vm565, %v567, %v563
      %v569 = vmul.f32 %v528, %v568
      %v570 = vrcp.pop %v539
      %v571 = vmul.f32 %v539, %v570
      %v572 = vsub.f32 1.0, %v571
      %v573 = vmul.f32 %v570, %v572
      %v574 = vadd.f32 %v570, %v573
      %vm575 = vweird.f32 %v539
      %vm576 = vweird.f32 %v570
      %vm577 = vmor %vm575, %vm576
      %v578 = vsel %vm577, %v570, %v574
      %v579 = vand.u32 2147483647, %v539
      %vm580 = vcmp.eq.f32.partialorder %v579, 8.507059e+37
      %v581 = vand.u32 %v539, 2147483648
      %v582 = vor.u32 1.1754944e-38, %v581
      %v583 = vsel %vm580, %v582, %v578
      %v584 = vmul.f32 %v530, %v583
      %586 = vrot.lane.b32.xlu0 %v415, 64
      %v587 = vpop.permute.xlu0 %586
      %v590 = vsel %vm512, %v554, 0
      %592 = vmatpush.msra.mxu0 0.0
      %593 = vmatpush.msra.mxu0 0.0
      %594 = vmatpush.msra.mxu0 0.0
      %595 = vmatpush.msra.mxu0 0.0
      %596 = vmatpush.msra.mxu0 0.0
      %597 = vmatpush.msra.mxu0 0.0
      %598 = vmatpush.msra.mxu0 0.0
      %599 = vmatpush.msra.mxu0 0.0
      %600 = vmatpush.msra.mxu0 0.0
      %601 = vmatpush.msra.mxu0 0.0
      %602 = vmatpush.msra.mxu0 0.0
      %603 = vmatpush.msra.mxu0 0.0
      %604 = vmatpush.msra.mxu0 0.0
      %605 = vmatpush.msra.mxu0 0.0
      %606 = vmatpush.msra.mxu0 0.0
      %607 = vmatpush.msra.mxu0 %v587
      %608 = vmatmul.f32.gmra.mxu0 %v590
      %v609 = vpop.f32.mrf.mxu0
      %v610 = vadd.f32 0.0, %v609
      %611 = vdwg.mxu0
      %613 = vrot.lane.b32.xlu0 %v416, 64
      %v614 = vpop.permute.xlu0 %613
      %v617 = vsel %vm512, %v569, 0
      %619 = vmatpush.msra.mxu0 0.0
      %620 = vmatpush.msra.mxu0 0.0
      %621 = vmatpush.msra.mxu0 0.0
      %622 = vmatpush.msra.mxu0 0.0
      %623 = vmatpush.msra.mxu0 0.0
      %624 = vmatpush.msra.mxu0 0.0
      %625 = vmatpush.msra.mxu0 0.0
      %626 = vmatpush.msra.mxu0 0.0
      %627 = vmatpush.msra.mxu0 0.0
      %628 = vmatpush.msra.mxu0 0.0
      %629 = vmatpush.msra.mxu0 0.0
      %630 = vmatpush.msra.mxu0 0.0
      %631 = vmatpush.msra.mxu0 0.0
      %632 = vmatpush.msra.mxu0 0.0
      %633 = vmatpush.msra.mxu0 0.0
      %634 = vmatpush.msra.mxu0 %v614
      %635 = vmatmul.f32.gmra.mxu0 %v617
      %v636 = vpop.f32.mrf.mxu0
      %v637 = vadd.f32 0.0, %v636
      %638 = vdwg.mxu0
      %640 = vrot.lane.b32.xlu0 %v417, 64
      %v641 = vpop.permute.xlu0 %640
      %v644 = vsel %vm512, %v584, 0
      %646 = vmatpush.msra.mxu0 0.0
      %647 = vmatpush.msra.mxu0 0.0
      %648 = vmatpush.msra.mxu0 0.0
      %649 = vmatpush.msra.mxu0 0.0
      %650 = vmatpush.msra.mxu0 0.0
      %651 = vmatpush.msra.mxu0 0.0
      %652 = vmatpush.msra.mxu0 0.0
      %653 = vmatpush.msra.mxu0 0.0
      %654 = vmatpush.msra.mxu0 0.0
      %655 = vmatpush.msra.mxu0 0.0
      %656 = vmatpush.msra.mxu0 0.0
      %657 = vmatpush.msra.mxu0 0.0
      %658 = vmatpush.msra.mxu0 0.0
      %659 = vmatpush.msra.mxu0 0.0
      %660 = vmatpush.msra.mxu0 0.0
      %661 = vmatpush.msra.mxu0 %v641
      %662 = vmatmul.f32.gmra.mxu0 %v644
      %v663 = vpop.f32.mrf.mxu0
      %v664 = vadd.f32 0.0, %v663
      %665 = vdwg.mxu0
      %v666 = vld [vmem:[%s2] sm:$0xff]
      %v667 = vld [vmem:[%s2 + $0x8] sm:$0xff]
      %v668 = vld [vmem:[%s2 + $0x10] sm:$0xff]
      %v669 = vld [vmem:[%s2 + $0x18] sm:$0xff]
      %670 = vrot.lane.b32.xlu0 %v397, 112
      %v671 = vpop.permute.xlu0 %670
      %672 = vrot.lane.b32.xlu0 %v406, 80
      %v673 = vpop.permute.xlu0 %672
      %v674 = vsel %vm423, %v671, 0
      %v676 = vsel %vm423, %v673, 0
      %678 = vmatpush.xpose.msra.mxu0 0.0
      %679 = vmatpush.xpose.msra.mxu0 0.0
      %680 = vmatpush.xpose.msra.mxu0 0.0
      %681 = vmatpush.xpose.msra.mxu0 0.0
      %682 = vmatpush.xpose.msra.mxu0 0.0
      %683 = vmatpush.xpose.msra.mxu0 0.0
      %684 = vmatpush.xpose.msra.mxu0 0.0
      %685 = vmatpush.xpose.msra.mxu0 0.0
      %686 = vmatpush.xpose.msra.mxu0 0.0
      %687 = vmatpush.xpose.msra.mxu0 0.0
      %688 = vmatpush.xpose.msra.mxu0 0.0
      %689 = vmatpush.xpose.msra.mxu0 0.0
      %690 = vmatpush.xpose.msra.mxu0 0.0
      %691 = vmatpush.xpose.msra.mxu0 0.0
      %692 = vmatpush.xpose.msra.mxu0 0.0
      %693 = vmatpush.xpose.msra.mxu0 %v676
      %694 = vmatmul.f32.gmra.mxu0 %v674
      %v695 = vpop.f32.mrf.mxu0
      %v696 = vadd.f32 0.0, %v695
      %697 = vdwg.mxu0
      %698 = vrot.lane.b32.xlu0 %v398, 112
      %v699 = vpop.permute.xlu0 %698
      %700 = vrot.lane.b32.xlu0 %v407, 80
      %v701 = vpop.permute.xlu0 %700
      %v702 = vsel %vm423, %v699, 0
      %v704 = vsel %vm423, %v701, 0
      %706 = vmatpush.xpose.msra.mxu0 0.0
      %707 = vmatpush.xpose.msra.mxu0 0.0
      %708 = vmatpush.xpose.msra.mxu0 0.0
      %709 = vmatpush.xpose.msra.mxu0 0.0
      %710 = vmatpush.xpose.msra.mxu0 0.0
      %711 = vmatpush.xpose.msra.mxu0 0.0
      %712 = vmatpush.xpose.msra.mxu0 0.0
      %713 = vmatpush.xpose.msra.mxu0 0.0
      %714 = vmatpush.xpose.msra.mxu0 0.0
      %715 = vmatpush.xpose.msra.mxu0 0.0
      %716 = vmatpush.xpose.msra.mxu0 0.0
      %717 = vmatpush.xpose.msra.mxu0 0.0
      %718 = vmatpush.xpose.msra.mxu0 0.0
      %719 = vmatpush.xpose.msra.mxu0 0.0
      %720 = vmatpush.xpose.msra.mxu0 0.0
      %721 = vmatpush.xpose.msra.mxu0 %v704
      %722 = vmatmul.f32.gmra.mxu0 %v702
      %v723 = vpop.f32.mrf.mxu0
      %v724 = vadd.f32 0.0, %v723
      %725 = vdwg.mxu0
      %726 = vrot.lane.b32.xlu0 %v399, 112
      %v727 = vpop.permute.xlu0 %726
      %728 = vrot.lane.b32.xlu0 %v408, 80
      %v729 = vpop.permute.xlu0 %728
      %v730 = vsel %vm423, %v727, 0
      %v732 = vsel %vm423, %v729, 0
      %734 = vmatpush.xpose.msra.mxu0 0.0
      %735 = vmatpush.xpose.msra.mxu0 0.0
      %736 = vmatpush.xpose.msra.mxu0 0.0
      %737 = vmatpush.xpose.msra.mxu0 0.0
      %738 = vmatpush.xpose.msra.mxu0 0.0
      %739 = vmatpush.xpose.msra.mxu0 0.0
      %740 = vmatpush.xpose.msra.mxu0 0.0
      %741 = vmatpush.xpose.msra.mxu0 0.0
      %742 = vmatpush.xpose.msra.mxu0 0.0
      %743 = vmatpush.xpose.msra.mxu0 0.0
      %744 = vmatpush.xpose.msra.mxu0 0.0
      %745 = vmatpush.xpose.msra.mxu0 0.0
      %746 = vmatpush.xpose.msra.mxu0 0.0
      %747 = vmatpush.xpose.msra.mxu0 0.0
      %748 = vmatpush.xpose.msra.mxu0 0.0
      %749 = vmatpush.xpose.msra.mxu0 %v732
      %750 = vmatmul.f32.gmra.mxu0 %v730
      %v751 = vpop.f32.mrf.mxu0
      %v752 = vadd.f32 0.0, %v751
      %753 = vdwg.mxu0
      %v754 = vmul.f32 %v696, 0.25
      %v755 = vmul.f32 %v724, 0.25
      %v756 = vmul.f32 %v752, 0.25
      %v757 = vsel %vm508, %v754, -1e+30
      %v758 = vsel %vm508, %v755, -1e+30
      %v759 = vsel %vm508, %v756, -1e+30
      %v760 = vsel %vm512, %v757, -inf
      %761 = vmax.xlane.f32.xlu0 %v760
      %v762 = vpop.xlane.xlu0 %761
      %v763 = vsel %vm512, %v758, -inf
      %764 = vmax.xlane.f32.xlu0 %v763
      %v765 = vpop.xlane.xlu0 %764
      %v766 = vsel %vm512, %v759, -inf
      %767 = vmax.xlane.f32.xlu0 %v766
      %v768 = vpop.xlane.xlu0 %767
      %v769 = vsub.f32 %v757, %v762
      %v770 = vsub.f32 %v758, %v765
      %v771 = vsub.f32 %v759, %v768
      %v772 = vmul.f32 %v769, 1.442695
      %v773 = vpow.pop %v772
      %v774 = vmul.f32 %v770, 1.442695
      %v775 = vpow.pop %v774
      %v776 = vmul.f32 %v771, 1.442695
      %v777 = vpow.pop %v776
      %v778 = vsel %vm512, %v773, 0.0
      %779 = vadd.xlane.f32.xlu0 %v778
      %v780 = vpop.xlane.xlu0 %779
      %v781 = vsel %vm512, %v775, 0.0
      %782 = vadd.xlane.f32.xlu0 %v781
      %v783 = vpop.xlane.xlu0 %782
      %v784 = vsel %vm512, %v777, 0.0
      %785 = vadd.xlane.f32.xlu0 %v784
      %v786 = vpop.xlane.xlu0 %785
      %v787 = vrcp.pop %v780
      %v788 = vmul.f32 %v780, %v787
      %v789 = vsub.f32 1.0, %v788
      %v790 = vmul.f32 %v787, %v789
      %v791 = vadd.f32 %v787, %v790
      %vm792 = vweird.f32 %v780
      %vm793 = vweird.f32 %v787
      %vm794 = vmor %vm792, %vm793
      %v795 = vsel %vm794, %v787, %v791
      %v796 = vand.u32 2147483647, %v780
      %vm797 = vcmp.eq.f32.partialorder %v796, 8.507059e+37
      %v798 = vand.u32 %v780, 2147483648
      %v799 = vor.u32 1.1754944e-38, %v798
      %v800 = vsel %vm797, %v799, %v795
      %v801 = vmul.f32 %v773, %v800
      %v802 = vrcp.pop %v783
      %v803 = vmul.f32 %v783, %v802
      %v804 = vsub.f32 1.0, %v803
      %v805 = vmul.f32 %v802, %v804
      %v806 = vadd.f32 %v802, %v805
      %vm807 = vweird.f32 %v783
      %vm808 = vweird.f32 %v802
      %vm809 = vmor %vm807, %vm808
      %v810 = vsel %vm809, %v802, %v806
      %v811 = vand.u32 2147483647, %v783
      %vm812 = vcmp.eq.f32.partialorder %v811, 8.507059e+37
      %v813 = vand.u32 %v783, 2147483648
      %v814 = vor.u32 1.1754944e-38, %v813
      %v815 = vsel %vm812, %v814, %v810
      %v816 = vmul.f32 %v775, %v815
      %v817 = vrcp.pop %v786
      %v818 = vmul.f32 %v786, %v817
      %v819 = vsub.f32 1.0, %v818
      %v820 = vmul.f32 %v817, %v819
      %v821 = vadd.f32 %v817, %v820
      %vm822 = vweird.f32 %v786
      %vm823 = vweird.f32 %v817
      %vm824 = vmor %vm822, %vm823
      %v825 = vsel %vm824, %v817, %v821
      %v826 = vand.u32 2147483647, %v786
      %vm827 = vcmp.eq.f32.partialorder %v826, 8.507059e+37
      %v828 = vand.u32 %v786, 2147483648
      %v829 = vor.u32 1.1754944e-38, %v828
      %v830 = vsel %vm827, %v829, %v825
      %v831 = vmul.f32 %v777, %v830
      %832 = vrot.lane.b32.xlu0 %v415, 48
      %v833 = vpop.permute.xlu0 %832
      %v836 = vsel %vm512, %v801, 0
      %838 = vmatpush.msra.mxu0 0.0
      %839 = vmatpush.msra.mxu0 0.0
      %840 = vmatpush.msra.mxu0 0.0
      %841 = vmatpush.msra.mxu0 0.0
      %842 = vmatpush.msra.mxu0 0.0
      %843 = vmatpush.msra.mxu0 0.0
      %844 = vmatpush.msra.mxu0 0.0
      %845 = vmatpush.msra.mxu0 0.0
      %846 = vmatpush.msra.mxu0 0.0
      %847 = vmatpush.msra.mxu0 0.0
      %848 = vmatpush.msra.mxu0 0.0
      %849 = vmatpush.msra.mxu0 0.0
      %850 = vmatpush.msra.mxu0 0.0
      %851 = vmatpush.msra.mxu0 0.0
      %852 = vmatpush.msra.mxu0 0.0
      %853 = vmatpush.msra.mxu0 %v833
      %854 = vmatmul.f32.gmra.mxu0 %v836
      %v855 = vpop.f32.mrf.mxu0
      %v856 = vadd.f32 0.0, %v855
      %857 = vdwg.mxu0
      %858 = vrot.lane.b32.xlu0 %v416, 48
      %v859 = vpop.permute.xlu0 %858
      %v862 = vsel %vm512, %v816, 0
      %864 = vmatpush.msra.mxu0 0.0
      %865 = vmatpush.msra.mxu0 0.0
      %866 = vmatpush.msra.mxu0 0.0
      %867 = vmatpush.msra.mxu0 0.0
      %868 = vmatpush.msra.mxu0 0.0
      %869 = vmatpush.msra.mxu0 0.0
      %870 = vmatpush.msra.mxu0 0.0
      %871 = vmatpush.msra.mxu0 0.0
      %872 = vmatpush.msra.mxu0 0.0
      %873 = vmatpush.msra.mxu0 0.0
      %874 = vmatpush.msra.mxu0 0.0
      %875 = vmatpush.msra.mxu0 0.0
      %876 = vmatpush.msra.mxu0 0.0
      %877 = vmatpush.msra.mxu0 0.0
      %878 = vmatpush.msra.mxu0 0.0
      %879 = vmatpush.msra.mxu0 %v859
      %880 = vmatmul.f32.gmra.mxu0 %v862
      %v881 = vpop.f32.mrf.mxu0
      %v882 = vadd.f32 0.0, %v881
      %883 = vdwg.mxu0
      %884 = vrot.lane.b32.xlu0 %v417, 48
      %v885 = vpop.permute.xlu0 %884
      %v888 = vsel %vm512, %v831, 0
      %890 = vmatpush.msra.mxu0 0.0
      %891 = vmatpush.msra.mxu0 0.0
      %892 = vmatpush.msra.mxu0 0.0
      %893 = vmatpush.msra.mxu0 0.0
      %894 = vmatpush.msra.mxu0 0.0
      %895 = vmatpush.msra.mxu0 0.0
      %896 = vmatpush.msra.mxu0 0.0
      %897 = vmatpush.msra.mxu0 0.0
      %898 = vmatpush.msra.mxu0 0.0
      %899 = vmatpush.msra.mxu0 0.0
      %900 = vmatpush.msra.mxu0 0.0
      %901 = vmatpush.msra.mxu0 0.0
      %902 = vmatpush.msra.mxu0 0.0
      %903 = vmatpush.msra.mxu0 0.0
      %904 = vmatpush.msra.mxu0 0.0
      %905 = vmatpush.msra.mxu0 %v885
      %906 = vmatmul.f32.gmra.mxu0 %v888
      %v907 = vpop.f32.mrf.mxu0
      %v908 = vadd.f32 0.0, %v907
      %909 = vdwg.mxu0
      %v910 = vld [vmem:[%s2] sm:$0xff]
      %v911 = vld [vmem:[%s2 + $0x8] sm:$0xff]
      %v912 = vld [vmem:[%s2 + $0x10] sm:$0xff]
      %v913 = vld [vmem:[%s2 + $0x18] sm:$0xff]
      %918 = vrot.lane.b32.xlu0 %v910, 112
      %v919 = vpop.permute.xlu0 %918
      %920 = vrot.lane.b32.xlu0 %v911, 112
      %v921 = vpop.permute.xlu0 %920
      %922 = vrot.lane.b32.xlu0 %v912, 112
      %v923 = vpop.permute.xlu0 %922
      %924 = vrot.lane.b32.xlu0 %v913, 112
      %v925 = vpop.permute.xlu0 %924
      %v927 = vsel %vm423, %v856, 0
      %v930 = vsel %vm423, %v882, 0
      %v933 = vsel %vm423, %v908, 0
      %v935 = vsel %vm423, %v919, 0
      %v937 = vsel %vm423, %v921, 0
      %v939 = vsel %vm423, %v923, 0
      %v941 = vsel %vm423, %v925, 0
      %943 = vmatpush.xpose.msra.mxu0 0.0
      %944 = vmatpush.xpose.msra.mxu0 0.0
      %945 = vmatpush.xpose.msra.mxu0 0.0
      %946 = vmatpush.xpose.msra.mxu0 0.0
      %947 = vmatpush.xpose.msra.mxu0 0.0
      %948 = vmatpush.xpose.msra.mxu0 0.0
      %949 = vmatpush.xpose.msra.mxu0 0.0
      %950 = vmatpush.xpose.msra.mxu0 0.0
      %951 = vmatpush.xpose.msra.mxu0 0.0
      %952 = vmatpush.xpose.msra.mxu0 0.0
      %953 = vmatpush.xpose.msra.mxu0 0.0
      %954 = vmatpush.xpose.msra.mxu0 0.0
      %955 = vmatpush.xpose.msra.mxu0 %v941
      %956 = vmatpush.xpose.msra.mxu0 %v939
      %957 = vmatpush.xpose.msra.mxu0 %v937
      %958 = vmatpush.xpose.msra.mxu0 %v935
      %959 = vmatmul.f32.gmra.mxu0 %v927
      %v960 = vpop.f32.mrf.mxu0
      %v961 = vadd.f32 0.0, %v960
      %962 = vmatmul.f32.gmra.mxu0 %v930
      %v963 = vpop.f32.mrf.mxu0
      %v964 = vadd.f32 0.0, %v963
      %965 = vmatmul.f32.gmra.mxu0 %v933
      %v966 = vpop.f32.mrf.mxu0
      %v967 = vadd.f32 0.0, %v966
      %968 = vdwg.mxu0
      %v970 = vsel %vm423, %v610, 0
      %v973 = vsel %vm423, %v637, 0
      %v976 = vsel %vm423, %v664, 0
      %v979 = vsel %vm423, %v666, 0
      %v982 = vsel %vm423, %v667, 0
      %v985 = vsel %vm423, %v668, 0
      %v988 = vsel %vm423, %v669, 0
      %990 = vmatpush.xpose.msra.mxu0 0.0
      %991 = vmatpush.xpose.msra.mxu0 0.0
      %992 = vmatpush.xpose.msra.mxu0 0.0
      %993 = vmatpush.xpose.msra.mxu0 0.0
      %994 = vmatpush.xpose.msra.mxu0 0.0
      %995 = vmatpush.xpose.msra.mxu0 0.0
      %996 = vmatpush.xpose.msra.mxu0 0.0
      %997 = vmatpush.xpose.msra.mxu0 0.0
      %998 = vmatpush.xpose.msra.mxu0 0.0
      %999 = vmatpush.xpose.msra.mxu0 0.0
      %1000 = vmatpush.xpose.msra.mxu0 0.0
      %1001 = vmatpush.xpose.msra.mxu0 0.0
      %1002 = vmatpush.xpose.msra.mxu0 %v988
      %1003 = vmatpush.xpose.msra.mxu0 %v985
      %1004 = vmatpush.xpose.msra.mxu0 %v982
      %1005 = vmatpush.xpose.msra.mxu0 %v979
      %1006 = vmatmul.f32.gmra.mxu0 %v970
      %v1007 = vpop.f32.mrf.mxu0
      %v1008 = vadd.f32 %v961, %v1007
      %1009 = vmatmul.f32.gmra.mxu0 %v973
      %v1010 = vpop.f32.mrf.mxu0
      %v1011 = vadd.f32 %v964, %v1010
      %1012 = vmatmul.f32.gmra.mxu0 %v976
      %v1013 = vpop.f32.mrf.mxu0
      %v1014 = vadd.f32 %v967, %v1013
      %1015 = vdwg.mxu0
      %v1016 = vadd.f32 %v225, %v1008
      %v1017 = vadd.f32 %v226, %v1011
      %v1018 = vadd.f32 %v227, %v1014
      %v1019 = vld [vmem:[%s4 + $0x5] sm:$0x1]
      %v1020 = vperm.slane %v1019, 0
      %v1021 = vadd.f32 %v1016, %v1020
      %v1022 = vadd.f32 %v1017, %v1020
      %v1023 = vadd.f32 %v1018, %v1020
      %v1024 = vld [vmem:[%s3] sm:$0xff]
      %v1025 = vld [vmem:[%s3 + $0x8] sm:$0xff]
      %v1026 = vld [vmem:[%s3 + $0x10] sm:$0xff]
      %v1027 = vld [vmem:[%s3 + $0x18] sm:$0xff]
      %v1028 = vld [vmem:[%s4 + $0x6] sm:$0x1]
      %v1032 = vrot.slane %v1021, 5
      %v1033 = vrot.slane %v1022, 5
      %v1034 = vrot.slane %v1023, 5
      %vm1038 = vcmask 1042432
      %v1039 = vsel %vm1038, 0.0, %v1032
      %v1040 = vsel %vm1038, 0.0, %v1033
      %v1041 = vsel %vm1038, 0.0, %v1034
      %vm1045 = vcmask 1046528
      %v1046 = vrot.slane %v1039, 1
      %v1047 = vrot.slane %v1032, 1
      %v1048 = vsel %vm1045, %v1046, %v1047
      %v1049 = vrot.slane %v1040, 1
      %v1050 = vrot.slane %v1033, 1
      %v1051 = vsel %vm1045, %v1049, %v1050
      %v1052 = vrot.slane %v1041, 1
      %v1053 = vrot.slane %v1034, 1
      %v1054 = vsel %vm1045, %v1052, %v1053
      %1055 = vrot.lane.b32.xlu0 %v1048, 32
      %v1056 = vpop.permute.xlu0 %1055
      %1057 = vrot.lane.b32.xlu0 %v1051, 32
      %v1058 = vpop.permute.xlu0 %1057
      %1059 = vrot.lane.b32.xlu0 %v1054, 32
      %v1060 = vpop.permute.xlu0 %1059
      %vm1064 = vcmask 1045504
      %v1065 = vrot.slane %v1039, 2
      %v1066 = vrot.slane %v1032, 2
      %v1067 = vsel %vm1064, %v1065, %v1066
      %v1068 = vrot.slane %v1040, 2
      %v1069 = vrot.slane %v1033, 2
      %v1070 = vsel %vm1064, %v1068, %v1069
      %v1071 = vrot.slane %v1041, 2
      %v1072 = vrot.slane %v1034, 2
      %v1073 = vsel %vm1064, %v1071, %v1072
      %1074 = vrot.lane.b32.xlu0 %v1067, 64
      %v1075 = vpop.permute.xlu0 %1074
      %1076 = vrot.lane.b32.xlu0 %v1070, 64
      %v1077 = vpop.permute.xlu0 %1076
      %1078 = vrot.lane.b32.xlu0 %v1073, 64
      %v1079 = vpop.permute.xlu0 %1078
      %vm1083 = vcmask 1044480
      %v1084 = vrot.slane %v1039, 3
      %v1085 = vrot.slane %v1032, 3
      %v1086 = vsel %vm1083, %v1084, %v1085
      %v1087 = vrot.slane %v1040, 3
      %v1088 = vrot.slane %v1033, 3
      %v1089 = vsel %vm1083, %v1087, %v1088
      %v1090 = vrot.slane %v1041, 3
      %v1091 = vrot.slane %v1034, 3
      %v1092 = vsel %vm1083, %v1090, %v1091
      %1093 = vrot.lane.b32.xlu0 %v1086, 96
      %v1094 = vpop.permute.xlu0 %1093
      %1095 = vrot.lane.b32.xlu0 %v1089, 96
      %v1096 = vpop.permute.xlu0 %1095
      %1097 = vrot.lane.b32.xlu0 %v1092, 96
      %v1098 = vpop.permute.xlu0 %1097
      %v1102 = vsel %vm228, %v1039, %v1056
      %v1103 = vsel %vm228, %v1040, %v1058
      %v1104 = vsel %vm228, %v1041, %v1060
      %vm1105 = vcmask 523264
      %v1106 = vsel %vm1105, %v1102, %v1075
      %v1107 = vsel %vm1105, %v1103, %v1077
      %v1108 = vsel %vm1105, %v1104, %v1079
      %vm1109 = vcmask 785408
      %v1110 = vsel %vm1109, %v1106, %v1094
      %v1111 = vsel %vm1109, %v1107, %v1096
      %v1112 = vsel %vm1109, %v1108, %v1098
      %v1113 = vperm.slane %v1028, 0
      %1114 = vmatpush.xpose.msra.mxu0 0.0
      %1115 = vmatpush.xpose.msra.mxu0 0.0
      %1116 = vmatpush.xpose.msra.mxu0 0.0
      %1117 = vmatpush.xpose.msra.mxu0 0.0
      %1118 = vmatpush.xpose.msra.mxu0 0.0
      %1119 = vmatpush.xpose.msra.mxu0 0.0
      %1120 = vmatpush.xpose.msra.mxu0 0.0
      %1121 = vmatpush.xpose.msra.mxu0 0.0
      %1122 = vmatpush.xpose.msra.mxu0 0.0
      %1123 = vmatpush.xpose.msra.mxu0 0.0
      %1124 = vmatpush.xpose.msra.mxu0 0.0
      %1125 = vmatpush.xpose.msra.mxu0 0.0
      %1126 = vmatpush.xpose.msra.mxu0 %v1027
      %1127 = vmatpush.xpose.msra.mxu0 %v1026
      %1128 = vmatpush.xpose.msra.mxu0 %v1025
      %1129 = vmatpush.xpose.msra.mxu0 %v1024
      %1130 = vmatmul.f32.gmra.mxu0 %v1110
      %v1131 = vpop.f32.mrf.mxu0
      %v1132 = vadd.f32 %v1113, %v1131
      %1133 = vmatmul.f32.gmra.mxu0 %v1111
      %v1134 = vpop.f32.mrf.mxu0
      %v1135 = vadd.f32 %v1113, %v1134
      %1136 = vmatmul.f32.gmra.mxu0 %v1112
      %v1137 = vpop.f32.mrf.mxu0
      %v1138 = vadd.f32 %v1113, %v1137
      %1139 = vdwg.mxu0
      %vm1140 = vcmp.gt.f32.partialorder %v1132, 0.0
      %vm1141 = vcmp.gt.f32.partialorder %v1135, 0.0
      %vm1142 = vcmp.gt.f32.partialorder %v1138, 0.0
      %v1143 = vmin.f32 %v1132, 0.0
      %v1144 = vmin.f32 %v1135, 0.0
      %v1145 = vmin.f32 %v1138, 0.0
      %v1146 = vmul.f32 %v1143, 1.442695
      %v1147 = vpow.pop %v1146
      %v1148 = vmul.f32 %v1144, 1.442695
      %v1149 = vpow.pop %v1148
      %v1150 = vmul.f32 %v1145, 1.442695
      %v1151 = vpow.pop %v1150
      %v1152 = vsub.f32 %v1147, 1.0
      %v1153 = vsub.f32 %v1149, 1.0
      %v1154 = vsub.f32 %v1151, 1.0
      %v1155 = vsel %vm1140, %v1132, %v1152
      %v1156 = vsel %vm1141, %v1135, %v1153
      %v1157 = vsel %vm1142, %v1138, %v1154
      %v1158 = vld [vmem:[%s3 + $0x20] sm:$0xff]
      %v1159 = vld [vmem:[%s3 + $0x28] sm:$0xff]
      %v1160 = vld [vmem:[%s3 + $0x30] sm:$0xff]
      %v1161 = vld [vmem:[%s3 + $0x38] sm:$0xff]
      %v1162 = vld [vmem:[%s4 + $0x7] sm:$0x1]
      %v1166 = vrot.slane %v1155, 5
      %v1167 = vrot.slane %v1156, 5
      %v1168 = vrot.slane %v1157, 5
      %v1172 = vsel %vm1038, 0.0, %v1166
      %v1173 = vsel %vm1038, 0.0, %v1167
      %v1174 = vsel %vm1038, 0.0, %v1168
      %v1178 = vrot.slane %v1172, 1
      %v1179 = vrot.slane %v1166, 1
      %v1180 = vsel %vm1045, %v1178, %v1179
      %v1181 = vrot.slane %v1173, 1
      %v1182 = vrot.slane %v1167, 1
      %v1183 = vsel %vm1045, %v1181, %v1182
      %v1184 = vrot.slane %v1174, 1
      %v1185 = vrot.slane %v1168, 1
      %v1186 = vsel %vm1045, %v1184, %v1185
      %1187 = vrot.lane.b32.xlu0 %v1180, 32
      %v1188 = vpop.permute.xlu0 %1187
      %1189 = vrot.lane.b32.xlu0 %v1183, 32
      %v1190 = vpop.permute.xlu0 %1189
      %1191 = vrot.lane.b32.xlu0 %v1186, 32
      %v1192 = vpop.permute.xlu0 %1191
      %v1196 = vrot.slane %v1172, 2
      %v1197 = vrot.slane %v1166, 2
      %v1198 = vsel %vm1064, %v1196, %v1197
      %v1199 = vrot.slane %v1173, 2
      %v1200 = vrot.slane %v1167, 2
      %v1201 = vsel %vm1064, %v1199, %v1200
      %v1202 = vrot.slane %v1174, 2
      %v1203 = vrot.slane %v1168, 2
      %v1204 = vsel %vm1064, %v1202, %v1203
      %1205 = vrot.lane.b32.xlu0 %v1198, 64
      %v1206 = vpop.permute.xlu0 %1205
      %1207 = vrot.lane.b32.xlu0 %v1201, 64
      %v1208 = vpop.permute.xlu0 %1207
      %1209 = vrot.lane.b32.xlu0 %v1204, 64
      %v1210 = vpop.permute.xlu0 %1209
      %v1214 = vrot.slane %v1172, 3
      %v1215 = vrot.slane %v1166, 3
      %v1216 = vsel %vm1083, %v1214, %v1215
      %v1217 = vrot.slane %v1173, 3
      %v1218 = vrot.slane %v1167, 3
      %v1219 = vsel %vm1083, %v1217, %v1218
      %v1220 = vrot.slane %v1174, 3
      %v1221 = vrot.slane %v1168, 3
      %v1222 = vsel %vm1083, %v1220, %v1221
      %1223 = vrot.lane.b32.xlu0 %v1216, 96
      %v1224 = vpop.permute.xlu0 %1223
      %1225 = vrot.lane.b32.xlu0 %v1219, 96
      %v1226 = vpop.permute.xlu0 %1225
      %1227 = vrot.lane.b32.xlu0 %v1222, 96
      %v1228 = vpop.permute.xlu0 %1227
      %v1232 = vsel %vm228, %v1172, %v1188
      %v1233 = vsel %vm228, %v1173, %v1190
      %v1234 = vsel %vm228, %v1174, %v1192
      %v1235 = vsel %vm1105, %v1232, %v1206
      %v1236 = vsel %vm1105, %v1233, %v1208
      %v1237 = vsel %vm1105, %v1234, %v1210
      %v1238 = vsel %vm1109, %v1235, %v1224
      %v1239 = vsel %vm1109, %v1236, %v1226
      %v1240 = vsel %vm1109, %v1237, %v1228
      %v1241 = vperm.slane %v1162, 0
      %1242 = vmatpush.xpose.msra.mxu0 0.0
      %1243 = vmatpush.xpose.msra.mxu0 0.0
      %1244 = vmatpush.xpose.msra.mxu0 0.0
      %1245 = vmatpush.xpose.msra.mxu0 0.0
      %1246 = vmatpush.xpose.msra.mxu0 0.0
      %1247 = vmatpush.xpose.msra.mxu0 0.0
      %1248 = vmatpush.xpose.msra.mxu0 0.0
      %1249 = vmatpush.xpose.msra.mxu0 0.0
      %1250 = vmatpush.xpose.msra.mxu0 0.0
      %1251 = vmatpush.xpose.msra.mxu0 0.0
      %1252 = vmatpush.xpose.msra.mxu0 0.0
      %1253 = vmatpush.xpose.msra.mxu0 0.0
      %1254 = vmatpush.xpose.msra.mxu0 %v1161
      %1255 = vmatpush.xpose.msra.mxu0 %v1160
      %1256 = vmatpush.xpose.msra.mxu0 %v1159
      %1257 = vmatpush.xpose.msra.mxu0 %v1158
      %1258 = vmatmul.f32.gmra.mxu0 %v1238
      %v1259 = vpop.f32.mrf.mxu0
      %v1260 = vadd.f32 %v1241, %v1259
      %1261 = vmatmul.f32.gmra.mxu0 %v1239
      %v1262 = vpop.f32.mrf.mxu0
      %v1263 = vadd.f32 %v1241, %v1262
      %1264 = vmatmul.f32.gmra.mxu0 %v1240
      %v1265 = vpop.f32.mrf.mxu0
      %v1266 = vadd.f32 %v1241, %v1265
      %1267 = vdwg.mxu0
      %vm1268 = vcmp.gt.f32.partialorder %v1260, 0.0
      %vm1269 = vcmp.gt.f32.partialorder %v1263, 0.0
      %vm1270 = vcmp.gt.f32.partialorder %v1266, 0.0
      %v1271 = vmin.f32 %v1260, 0.0
      %v1272 = vmin.f32 %v1263, 0.0
      %v1273 = vmin.f32 %v1266, 0.0
      %v1274 = vmul.f32 %v1271, 1.442695
      %v1275 = vpow.pop %v1274
      %v1276 = vmul.f32 %v1272, 1.442695
      %v1277 = vpow.pop %v1276
      %v1278 = vmul.f32 %v1273, 1.442695
      %v1279 = vpow.pop %v1278
      %v1280 = vsub.f32 %v1275, 1.0
      %v1281 = vsub.f32 %v1277, 1.0
      %v1282 = vsub.f32 %v1279, 1.0
      %v1283 = vsel %vm1268, %v1260, %v1280
      %v1284 = vsel %vm1269, %v1263, %v1281
      %v1285 = vsel %vm1270, %v1266, %v1282
      %v1286 = vadd.f32 %v1283, %v1021
      %v1287 = vadd.f32 %v1284, %v1022
      %v1288 = vadd.f32 %v1285, %v1023
      %vm1289 = vcmp.gt.f32.partialorder %v1286, 0.0
      %vm1290 = vcmp.gt.f32.partialorder %v1287, 0.0
      %vm1291 = vcmp.gt.f32.partialorder %v1288, 0.0
      %v1292 = vmin.f32 %v1286, 0.0
      %v1293 = vmin.f32 %v1287, 0.0
      %v1294 = vmin.f32 %v1288, 0.0
      %v1295 = vmul.f32 %v1292, 1.442695
      %v1296 = vpow.pop %v1295
      %v1297 = vmul.f32 %v1293, 1.442695
      %v1298 = vpow.pop %v1297
      %v1299 = vmul.f32 %v1294, 1.442695
      %v1300 = vpow.pop %v1299
      %v1301 = vsub.f32 %v1296, 1.0
      %v1302 = vsub.f32 %v1298, 1.0
      %v1303 = vsub.f32 %v1300, 1.0
      %v1304 = vsel %vm1289, %v1286, %v1301
      %v1305 = vsel %vm1290, %v1287, %v1302
      %v1306 = vsel %vm1291, %v1288, %v1303
      %v1307 = vld [vmem:[%s3 + $0x40] sm:$0xff]
      %v1308 = vld [vmem:[%s3 + $0x48] sm:$0xff]
      %v1309 = vld [vmem:[%s3 + $0x50] sm:$0xff]
      %v1310 = vld [vmem:[%s3 + $0x58] sm:$0xff]
      %v1311 = vld [vmem:[%s4 + $0x8] sm:$0x1]
      %v1315 = vrot.slane %v1304, 2
      %v1316 = vrot.slane %v1305, 2
      %v1317 = vrot.slane %v1306, 2
      %v1321 = vsel %vm1064, 0.0, %v1315
      %v1322 = vsel %vm1064, 0.0, %v1316
      %v1323 = vsel %vm1064, 0.0, %v1317
      %v1327 = vrot.slane %v1321, 2
      %v1328 = vrot.slane %v1315, 2
      %v1329 = vsel %vm1064, %v1327, %v1328
      %v1330 = vrot.slane %v1322, 2
      %v1331 = vrot.slane %v1316, 2
      %v1332 = vsel %vm1064, %v1330, %v1331
      %v1333 = vrot.slane %v1323, 2
      %v1334 = vrot.slane %v1317, 2
      %v1335 = vsel %vm1064, %v1333, %v1334
      %1336 = vrot.lane.b32.xlu0 %v1329, 32
      %v1337 = vpop.permute.xlu0 %1336
      %1338 = vrot.lane.b32.xlu0 %v1332, 32
      %v1339 = vpop.permute.xlu0 %1338
      %1340 = vrot.lane.b32.xlu0 %v1335, 32
      %v1341 = vpop.permute.xlu0 %1340
      %vm1345 = vcmask 1043456
      %v1346 = vrot.slane %v1321, 4
      %v1347 = vrot.slane %v1315, 4
      %v1348 = vsel %vm1345, %v1346, %v1347
      %v1349 = vrot.slane %v1322, 4
      %v1350 = vrot.slane %v1316, 4
      %v1351 = vsel %vm1345, %v1349, %v1350
      %v1352 = vrot.slane %v1323, 4
      %v1353 = vrot.slane %v1317, 4
      %v1354 = vsel %vm1345, %v1352, %v1353
      %1355 = vrot.lane.b32.xlu0 %v1348, 64
      %v1356 = vpop.permute.xlu0 %1355
      %1357 = vrot.lane.b32.xlu0 %v1351, 64
      %v1358 = vpop.permute.xlu0 %1357
      %1359 = vrot.lane.b32.xlu0 %v1354, 64
      %v1360 = vpop.permute.xlu0 %1359
      %vm1364 = vcmask 1041408
      %v1365 = vrot.slane %v1321, 6
      %v1366 = vrot.slane %v1315, 6
      %v1367 = vsel %vm1364, %v1365, %v1366
      %v1368 = vrot.slane %v1322, 6
      %v1369 = vrot.slane %v1316, 6
      %v1370 = vsel %vm1364, %v1368, %v1369
      %v1371 = vrot.slane %v1323, 6
      %v1372 = vrot.slane %v1317, 6
      %v1373 = vsel %vm1364, %v1371, %v1372
      %1374 = vrot.lane.b32.xlu0 %v1367, 96
      %v1375 = vpop.permute.xlu0 %1374
      %1376 = vrot.lane.b32.xlu0 %v1370, 96
      %v1377 = vpop.permute.xlu0 %1376
      %1378 = vrot.lane.b32.xlu0 %v1373, 96
      %v1379 = vpop.permute.xlu0 %1378
      %v1383 = vsel %vm228, %v1321, %v1337
      %v1384 = vsel %vm228, %v1322, %v1339
      %v1385 = vsel %vm228, %v1323, %v1341
      %v1386 = vsel %vm1105, %v1383, %v1356
      %v1387 = vsel %vm1105, %v1384, %v1358
      %v1388 = vsel %vm1105, %v1385, %v1360
      %v1389 = vsel %vm1109, %v1386, %v1375
      %v1390 = vsel %vm1109, %v1387, %v1377
      %v1391 = vsel %vm1109, %v1388, %v1379
      %v1392 = vperm.slane %v1311, 0
      %1393 = vmatpush.xpose.msra.mxu0 0.0
      %1394 = vmatpush.xpose.msra.mxu0 0.0
      %1395 = vmatpush.xpose.msra.mxu0 0.0
      %1396 = vmatpush.xpose.msra.mxu0 0.0
      %1397 = vmatpush.xpose.msra.mxu0 0.0
      %1398 = vmatpush.xpose.msra.mxu0 0.0
      %1399 = vmatpush.xpose.msra.mxu0 0.0
      %1400 = vmatpush.xpose.msra.mxu0 0.0
      %1401 = vmatpush.xpose.msra.mxu0 0.0
      %1402 = vmatpush.xpose.msra.mxu0 0.0
      %1403 = vmatpush.xpose.msra.mxu0 0.0
      %1404 = vmatpush.xpose.msra.mxu0 0.0
      %1405 = vmatpush.xpose.msra.mxu0 %v1310
      %1406 = vmatpush.xpose.msra.mxu0 %v1309
      %1407 = vmatpush.xpose.msra.mxu0 %v1308
      %1408 = vmatpush.xpose.msra.mxu0 %v1307
      %1409 = vmatmul.f32.gmra.mxu0 %v1389
      %v1410 = vpop.f32.mrf.mxu0
      %v1411 = vadd.f32 %v1392, %v1410
      %1412 = vmatmul.f32.gmra.mxu0 %v1390
      %v1413 = vpop.f32.mrf.mxu0
      %v1414 = vadd.f32 %v1392, %v1413
      %1415 = vmatmul.f32.gmra.mxu0 %v1391
      %v1416 = vpop.f32.mrf.mxu0
      %v1417 = vadd.f32 %v1392, %v1416
      %1418 = vdwg.mxu0
      %vm1419 = vcmp.gt.f32.partialorder %v1411, 0.0
      %vm1420 = vcmp.gt.f32.partialorder %v1414, 0.0
      %vm1421 = vcmp.gt.f32.partialorder %v1417, 0.0
      %v1422 = vmin.f32 %v1411, 0.0
      %v1423 = vmin.f32 %v1414, 0.0
      %v1424 = vmin.f32 %v1417, 0.0
      %v1425 = vmul.f32 %v1422, 1.442695
      %v1426 = vpow.pop %v1425
      %v1427 = vmul.f32 %v1423, 1.442695
      %v1428 = vpow.pop %v1427
      %v1429 = vmul.f32 %v1424, 1.442695
      %v1430 = vpow.pop %v1429
      %v1431 = vsub.f32 %v1426, 1.0
      %v1432 = vsub.f32 %v1428, 1.0
      %v1433 = vsub.f32 %v1430, 1.0
      %v1434 = vsel %vm1419, %v1411, %v1431
      %v1435 = vsel %vm1420, %v1414, %v1432
      %v1436 = vsel %vm1421, %v1417, %v1433
      %v1437 = vld [vmem:[%s3 + $0x60] sm:$0xff]
      %v1438 = vld [vmem:[%s3 + $0x68] sm:$0xff]
      %v1439 = vld [vmem:[%s3 + $0x70] sm:$0xff]
      %v1440 = vld [vmem:[%s3 + $0x78] sm:$0xff]
      %v1441 = vld [vmem:[%s4 + $0x9] sm:$0x1]
      %v1445 = vrot.slane %v1434, 2
      %v1446 = vrot.slane %v1435, 2
      %v1447 = vrot.slane %v1436, 2
      %v1451 = vsel %vm1064, 0.0, %v1445
      %v1452 = vsel %vm1064, 0.0, %v1446
      %v1453 = vsel %vm1064, 0.0, %v1447
      %v1457 = vrot.slane %v1451, 2
      %v1458 = vrot.slane %v1445, 2
      %v1459 = vsel %vm1064, %v1457, %v1458
      %v1460 = vrot.slane %v1452, 2
      %v1461 = vrot.slane %v1446, 2
      %v1462 = vsel %vm1064, %v1460, %v1461
      %v1463 = vrot.slane %v1453, 2
      %v1464 = vrot.slane %v1447, 2
      %v1465 = vsel %vm1064, %v1463, %v1464
      %1466 = vrot.lane.b32.xlu0 %v1459, 32
      %v1467 = vpop.permute.xlu0 %1466
      %1468 = vrot.lane.b32.xlu0 %v1462, 32
      %v1469 = vpop.permute.xlu0 %1468
      %1470 = vrot.lane.b32.xlu0 %v1465, 32
      %v1471 = vpop.permute.xlu0 %1470
      %v1475 = vrot.slane %v1451, 4
      %v1476 = vrot.slane %v1445, 4
      %v1477 = vsel %vm1345, %v1475, %v1476
      %v1478 = vrot.slane %v1452, 4
      %v1479 = vrot.slane %v1446, 4
      %v1480 = vsel %vm1345, %v1478, %v1479
      %v1481 = vrot.slane %v1453, 4
      %v1482 = vrot.slane %v1447, 4
      %v1483 = vsel %vm1345, %v1481, %v1482
      %1484 = vrot.lane.b32.xlu0 %v1477, 64
      %v1485 = vpop.permute.xlu0 %1484
      %1486 = vrot.lane.b32.xlu0 %v1480, 64
      %v1487 = vpop.permute.xlu0 %1486
      %1488 = vrot.lane.b32.xlu0 %v1483, 64
      %v1489 = vpop.permute.xlu0 %1488
      %v1493 = vrot.slane %v1451, 6
      %v1494 = vrot.slane %v1445, 6
      %v1495 = vsel %vm1364, %v1493, %v1494
      %v1496 = vrot.slane %v1452, 6
      %v1497 = vrot.slane %v1446, 6
      %v1498 = vsel %vm1364, %v1496, %v1497
      %v1499 = vrot.slane %v1453, 6
      %v1500 = vrot.slane %v1447, 6
      %v1501 = vsel %vm1364, %v1499, %v1500
      %1502 = vrot.lane.b32.xlu0 %v1495, 96
      %v1503 = vpop.permute.xlu0 %1502
      %1504 = vrot.lane.b32.xlu0 %v1498, 96
      %v1505 = vpop.permute.xlu0 %1504
      %1506 = vrot.lane.b32.xlu0 %v1501, 96
      %v1507 = vpop.permute.xlu0 %1506
      %v1511 = vsel %vm228, %v1451, %v1467
      %v1512 = vsel %vm228, %v1452, %v1469
      %v1513 = vsel %vm228, %v1453, %v1471
      %v1514 = vsel %vm1105, %v1511, %v1485
      %v1515 = vsel %vm1105, %v1512, %v1487
      %v1516 = vsel %vm1105, %v1513, %v1489
      %v1517 = vsel %vm1109, %v1514, %v1503
      %v1518 = vsel %vm1109, %v1515, %v1505
      %v1519 = vsel %vm1109, %v1516, %v1507
      %v1520 = vperm.slane %v1441, 0
      %1521 = vmatpush.xpose.msra.mxu0 0.0
      %1522 = vmatpush.xpose.msra.mxu0 0.0
      %1523 = vmatpush.xpose.msra.mxu0 0.0
      %1524 = vmatpush.xpose.msra.mxu0 0.0
      %1525 = vmatpush.xpose.msra.mxu0 0.0
      %1526 = vmatpush.xpose.msra.mxu0 0.0
      %1527 = vmatpush.xpose.msra.mxu0 0.0
      %1528 = vmatpush.xpose.msra.mxu0 0.0
      %1529 = vmatpush.xpose.msra.mxu0 0.0
      %1530 = vmatpush.xpose.msra.mxu0 0.0
      %1531 = vmatpush.xpose.msra.mxu0 0.0
      %1532 = vmatpush.xpose.msra.mxu0 0.0
      %1533 = vmatpush.xpose.msra.mxu0 %v1440
      %1534 = vmatpush.xpose.msra.mxu0 %v1439
      %1535 = vmatpush.xpose.msra.mxu0 %v1438
      %1536 = vmatpush.xpose.msra.mxu0 %v1437
      %1537 = vmatmul.f32.gmra.mxu0 %v1517
      %v1538 = vpop.f32.mrf.mxu0
      %v1539 = vadd.f32 %v1520, %v1538
      %1540 = vmatmul.f32.gmra.mxu0 %v1518
      %v1541 = vpop.f32.mrf.mxu0
      %v1542 = vadd.f32 %v1520, %v1541
      %1543 = vmatmul.f32.gmra.mxu0 %v1519
      %v1544 = vpop.f32.mrf.mxu0
      %v1545 = vadd.f32 %v1520, %v1544
      %1546 = vdwg.mxu0
      %vm1547 = vcmp.gt.f32.partialorder %v1539, 0.0
      %vm1548 = vcmp.gt.f32.partialorder %v1542, 0.0
      %vm1549 = vcmp.gt.f32.partialorder %v1545, 0.0
      %v1550 = vmin.f32 %v1539, 0.0
      %v1551 = vmin.f32 %v1542, 0.0
      %v1552 = vmin.f32 %v1545, 0.0
      %v1553 = vmul.f32 %v1550, 1.442695
      %v1554 = vpow.pop %v1553
      %v1555 = vmul.f32 %v1551, 1.442695
      %v1556 = vpow.pop %v1555
      %v1557 = vmul.f32 %v1552, 1.442695
      %v1558 = vpow.pop %v1557
      %v1559 = vsub.f32 %v1554, 1.0
      %v1560 = vsub.f32 %v1556, 1.0
      %v1561 = vsub.f32 %v1558, 1.0
      %v1562 = vsel %vm1547, %v1539, %v1559
      %v1563 = vsel %vm1548, %v1542, %v1560
      %v1564 = vsel %vm1549, %v1545, %v1561
      %v1565 = vadd.f32 %v1562, %v1304
      %v1566 = vadd.f32 %v1563, %v1305
      %v1567 = vadd.f32 %v1564, %v1306
      %vm1568 = vcmp.gt.f32.partialorder %v1565, 0.0
      %vm1569 = vcmp.gt.f32.partialorder %v1566, 0.0
      %vm1570 = vcmp.gt.f32.partialorder %v1567, 0.0
      %v1571 = vmin.f32 %v1565, 0.0
      %v1572 = vmin.f32 %v1566, 0.0
      %v1573 = vmin.f32 %v1567, 0.0
      %v1574 = vmul.f32 %v1571, 1.442695
      %v1575 = vpow.pop %v1574
      %v1576 = vmul.f32 %v1572, 1.442695
      %v1577 = vpow.pop %v1576
      %v1578 = vmul.f32 %v1573, 1.442695
      %v1579 = vpow.pop %v1578
      %v1580 = vsub.f32 %v1575, 1.0
      %v1581 = vsub.f32 %v1577, 1.0
      %v1582 = vsub.f32 %v1579, 1.0
      %v1583 = vsel %vm1568, %v1565, %v1580
      %v1584 = vsel %vm1569, %v1566, %v1581
      %v1585 = vsel %vm1570, %v1567, %v1582
      %v1589 = vrot.slane %v1584, 7
      %vm1590 = vcmask 1046534
      %v1591 = vsel %vm1590, %v1589, %v1583
      %v1592 = vrot.slane %v1585, 6
      %vm1593 = vcmask 1047559
      %v1594 = vsel %vm1593, %v1592, %v1591
      %vm1596 = vcmask 261125
      %1597 = vst.msk [vmem:[%s224 - $0x5] sm:$0xe0] %vm1596, %v1594
      %p1598 = scmp.lt.s32.totalorder %s16, 1
      %s1599 = scalar_select %p1598, %s16, 1
      %s1600 = smul.addr %s1599, 4
      %s1601 = scalar_lea.vmem %s5, %s1600
      // Predicated region
      $region41: #{atcnet_forward_pallas.3} parent=39 // pred_check
        %p1602 = pneg %p144
      $region42: #{atcnet_forward_pallas.3} parent=39 // pred_check_branch
        %1604 = sbr.rel (%p1602) target = $region44
      $region43: #{atcnet_forward_pallas.3} parent=39 // pred_region
        _
      $region44: #{atcnet_forward_pallas.3} parent=39 // pred_fallthru
        _
    $region40: #{atcnet_forward_pallas.3} parent=5 // pred_fallthru
      _
    %p1605 = scmp.le.s32.totalorder 2, %s11
    // Predicated region
    $region45: #{atcnet_forward_pallas.3} parent=5 // pred_check
      %p1606 = pneg %p1605
    $region46: #{atcnet_forward_pallas.3} parent=5 // pred_check_branch
      %1608 = sbr.rel (%p1606) target = $region48
    $region47: #{atcnet_forward_pallas.3} parent=5 // pred_region
      %s1609 = ssub.s32 %s11, 2
      // Predicated region
      $region49: #{atcnet_forward_pallas.3} parent=47 // pred_check
        %p1610 = pneg %p150
      $region50: #{atcnet_forward_pallas.3} parent=47 // pred_check_branch
        %1612 = sbr.rel (%p1610) target = $region52
      $region51: #{atcnet_forward_pallas.3} parent=47 // pred_region
        %p1613 = scmp.lt.s32.totalorder %s17, 1
        %s1614 = scalar_select %p1613, %s17, 1
        %s1615 = smul.addr %s1614, 4
        %s1616 = scalar_lea.vmem %s5, %s1615
      $region52: #{atcnet_forward_pallas.3} parent=47 // pred_fallthru
        _
    $region48: #{atcnet_forward_pallas.3} parent=5 // pred_fallthru
      _
  $region6: #{atcnet_forward_pallas.3} parent=0 // loop_footer
    %s15 = sadd.s32 1, %s11
  $region7: #{atcnet_forward_pallas.3} parent=0 // loop_footer_branch
    %10 = sbr.rel target = $region3
  $region8: #{atcnet_forward_pallas.3} parent=0 // loop_exit
    _

// kernel: atcnet_forward_pallas.2
$region0: #{atcnet_forward_pallas.2}
  #allocation0 [shape = 'u32[]', space=smem, size = 0x4, offset = 0x4, fixed_abs, tag = 'smem constant byte address 0x4 - core index']
  #allocation1 [shape = 'u32[72,128]{1,0:T(1,128)}', space=vmem, size = 0x9000, scoped, tag = 'internal scratch']
  %s0 = inlined_call_operand.vmem [shape: f32[2,4,511], index: 0, kind: input, shape index: {}]
  %s1 = inlined_call_operand.vmem [shape: f32[32,256], index: 1, kind: input, shape index: {}]
  %s2 = inlined_call_operand.vmem [shape: f32[32,512], index: 2, kind: input, shape index: {}]
  %s3 = inlined_call_operand.vmem [shape: f32[32,2], index: 3, kind: input, shape index: {}]
  %s4 = inlined_call_operand.vmem [shape: f32[448,56], index: 4, kind: input, shape index: {}]
  %s5 = inlined_call_operand.vmem [shape: f32[56,8], index: 5, kind: input, shape index: {}]
  %s6 = inlined_call_operand.vmem [shape: f32[2,32,8], index: 6, kind: output, shape index: {}]
  %s7 = sld [smem:[#allocation0]]
  $region57: #{atcnet_forward_pallas.2} parent=0
    _
  %s9 = ssub.s32 1, %s7
  %s10 = scalar_select 0, %s9, %s7
  loop: start=0, step=1, limit=4
  $region2: #{atcnet_forward_pallas.2} parent=0 // loop_pre_header
    _
  $region3: #{atcnet_forward_pallas.2} parent=0 // loop_header
    %s12 = sphi 0, %s16
    %p13 = scmp.ge.s32.totalorder %s12, 4
    %s22 = sphi 0, %s24
    %s25 = sphi 0, %s22
    %s26 = sphi 0, %s25
    %s42 = sphi 0, %s26
    %s46 = sphi 0, %s46
    %s48 = sphi 0, %s46
    %s49 = sphi 0, %s48
    %s63 = sphi 0, %s49
    %s67 = sphi 0, %s67
    %s69 = sphi 0, %s67
    %s70 = sphi 0, %s69
    %s84 = sphi 0, %s70
    %s88 = sphi 0, %s88
    %s90 = sphi 0, %s88
    %s91 = sphi 0, %s90
    %s105 = sphi 0, %s91
    %s109 = sphi 0, %s109
    %s111 = sphi 0, %s109
    %s112 = sphi 0, %s111
    %s126 = sphi 0, %s112
    %s130 = sphi 0, %s130
    %s132 = sphi 0, %s130
    %s133 = sphi 0, %s132
    %s147 = sphi 0, %s133
    %s153 = sphi 0, %s155
    %s156 = sphi 0, %s153
    %s157 = sphi 0, %s156
    %s173 = sphi 0, %s157
  $region4: #{atcnet_forward_pallas.2} parent=0 // loop_header_branch
    %15 = sbr.rel (%p13) target = $region8
  $region5: #{atcnet_forward_pallas.2} parent=0 // loop_body
    %s17 = ssub.s32 %s12, 1
    %s18 = ssub.s32 %s12, 2
    %s19 = sadd.s32 %s12, 1
    %s20 = ssub.s32 %s12, %s19
    %p21 = scmp.eq.s32.totalorder %s20, 0
    %s23 = sadd.s32 %s22, 1
    %s24 = scalar_select %p21, %s22, %s23
    %p27 = pneg %p21
    %p28 = scmp.eq.s32.totalorder %s12, 1
    %p29 = por %p27, %p28
    %p30 = scmp.ne.s32.totalorder %s22, %s25
    %p31 = scmp.eq.s32.totalorder %s12, 0
    %p32 = por %p30, %p31
    %p33 = scmp.ne.s32.totalorder %s22, %s25
    %p34 = scmp.eq.s32.totalorder %s17, 1
    %p35 = por %p33, %p34
    %p36 = scmp.ne.s32.totalorder %s25, %s26
    %p37 = scmp.eq.s32.totalorder %s17, 0
    %p38 = por %p36, %p37
    %p39 = scmp.ne.s32.totalorder %s25, %s26
    %p40 = scmp.eq.s32.totalorder %s18, 1
    %p41 = por %p39, %p40
    %p43 = scmp.ne.s32.totalorder %s26, %s42
    %p44 = scmp.eq.s32.totalorder %s18, 0
    %p45 = por %p43, %p44
    %s47 = sadd.s32 %s46, 1
    %p50 = scmp.eq.s32.totalorder %s12, 1
    %p51 = scmp.ne.s32.totalorder %s46, %s48
    %p52 = scmp.eq.s32.totalorder %s12, 0
    %p53 = por %p51, %p52
    %p54 = scmp.ne.s32.totalorder %s46, %s48
    %p55 = scmp.eq.s32.totalorder %s17, 1
    %p56 = por %p54, %p55
    %p57 = scmp.ne.s32.totalorder %s48, %s49
    %p58 = scmp.eq.s32.totalorder %s17, 0
    %p59 = por %p57, %p58
    %p60 = scmp.ne.s32.totalorder %s48, %s49
    %p61 = scmp.eq.s32.totalorder %s18, 1
    %p62 = por %p60, %p61
    %p64 = scmp.ne.s32.totalorder %s49, %s63
    %p65 = scmp.eq.s32.totalorder %s18, 0
    %p66 = por %p64, %p65
    %s68 = sadd.s32 %s67, 1
    %p71 = scmp.eq.s32.totalorder %s12, 1
    %p72 = scmp.ne.s32.totalorder %s67, %s69
    %p73 = scmp.eq.s32.totalorder %s12, 0
    %p74 = por %p72, %p73
    %p75 = scmp.ne.s32.totalorder %s67, %s69
    %p76 = scmp.eq.s32.totalorder %s17, 1
    %p77 = por %p75, %p76
    %p78 = scmp.ne.s32.totalorder %s69, %s70
    %p79 = scmp.eq.s32.totalorder %s17, 0
    %p80 = por %p78, %p79
    %p81 = scmp.ne.s32.totalorder %s69, %s70
    %p82 = scmp.eq.s32.totalorder %s18, 1
    %p83 = por %p81, %p82
    %p85 = scmp.ne.s32.totalorder %s70, %s84
    %p86 = scmp.eq.s32.totalorder %s18, 0
    %p87 = por %p85, %p86
    %s89 = sadd.s32 %s88, 1
    %p92 = scmp.eq.s32.totalorder %s12, 1
    %p93 = scmp.ne.s32.totalorder %s88, %s90
    %p94 = scmp.eq.s32.totalorder %s12, 0
    %p95 = por %p93, %p94
    %p96 = scmp.ne.s32.totalorder %s88, %s90
    %p97 = scmp.eq.s32.totalorder %s17, 1
    %p98 = por %p96, %p97
    %p99 = scmp.ne.s32.totalorder %s90, %s91
    %p100 = scmp.eq.s32.totalorder %s17, 0
    %p101 = por %p99, %p100
    %p102 = scmp.ne.s32.totalorder %s90, %s91
    %p103 = scmp.eq.s32.totalorder %s18, 1
    %p104 = por %p102, %p103
    %p106 = scmp.ne.s32.totalorder %s91, %s105
    %p107 = scmp.eq.s32.totalorder %s18, 0
    %p108 = por %p106, %p107
    %s110 = sadd.s32 %s109, 1
    %p113 = scmp.eq.s32.totalorder %s12, 1
    %p114 = scmp.ne.s32.totalorder %s109, %s111
    %p115 = scmp.eq.s32.totalorder %s12, 0
    %p116 = por %p114, %p115
    %p117 = scmp.ne.s32.totalorder %s109, %s111
    %p118 = scmp.eq.s32.totalorder %s17, 1
    %p119 = por %p117, %p118
    %p120 = scmp.ne.s32.totalorder %s111, %s112
    %p121 = scmp.eq.s32.totalorder %s17, 0
    %p122 = por %p120, %p121
    %p123 = scmp.ne.s32.totalorder %s111, %s112
    %p124 = scmp.eq.s32.totalorder %s18, 1
    %p125 = por %p123, %p124
    %p127 = scmp.ne.s32.totalorder %s112, %s126
    %p128 = scmp.eq.s32.totalorder %s18, 0
    %p129 = por %p127, %p128
    %s131 = sadd.s32 %s130, 1
    %p134 = scmp.eq.s32.totalorder %s12, 1
    %p135 = scmp.ne.s32.totalorder %s130, %s132
    %p136 = scmp.eq.s32.totalorder %s12, 0
    %p137 = por %p135, %p136
    %p138 = scmp.ne.s32.totalorder %s130, %s132
    %p139 = scmp.eq.s32.totalorder %s17, 1
    %p140 = por %p138, %p139
    %p141 = scmp.ne.s32.totalorder %s132, %s133
    %p142 = scmp.eq.s32.totalorder %s17, 0
    %p143 = por %p141, %p142
    %p144 = scmp.ne.s32.totalorder %s132, %s133
    %p145 = scmp.eq.s32.totalorder %s18, 1
    %p146 = por %p144, %p145
    %p148 = scmp.ne.s32.totalorder %s133, %s147
    %p149 = scmp.eq.s32.totalorder %s18, 0
    %p150 = por %p148, %p149
    %s151 = ssub.s32 %s12, %s19
    %p152 = scmp.eq.s32.totalorder %s151, 0
    %s154 = sadd.s32 %s153, 1
    %s155 = scalar_select %p152, %s153, %s154
    %p158 = pneg %p152
    %p159 = scmp.eq.s32.totalorder %s12, 1
    %p160 = por %p158, %p159
    %p161 = scmp.ne.s32.totalorder %s153, %s156
    %p162 = scmp.eq.s32.totalorder %s12, 0
    %p163 = por %p161, %p162
    %p164 = scmp.ne.s32.totalorder %s153, %s156
    %p165 = scmp.eq.s32.totalorder %s17, 1
    %p166 = por %p164, %p165
    %p167 = scmp.ne.s32.totalorder %s156, %s157
    %p168 = scmp.eq.s32.totalorder %s17, 0
    %p169 = por %p167, %p168
    %p170 = scmp.ne.s32.totalorder %s156, %s157
    %p171 = scmp.eq.s32.totalorder %s18, 1
    %p172 = por %p170, %p171
    %p174 = scmp.ne.s32.totalorder %s157, %s173
    %p175 = scmp.eq.s32.totalorder %s18, 0
    %p176 = por %p174, %p175
    %p177 = scmp.le.s32.totalorder 1, %s12
    %p178 = scmp.lt.s32.totalorder %s12, 3
    %p179 = pnand %p177, %p178
    %p180 = pneg %p179
    // Predicated region
    $region9: #{atcnet_forward_pallas.2} parent=5 // pred_check
      _
    $region10: #{atcnet_forward_pallas.2} parent=5 // pred_check_branch
      %182 = sbr.rel (%p179) target = $region12
    $region11: #{atcnet_forward_pallas.2} parent=5 // pred_region
      %s183 = ssub.s32 %s12, 1
      // Predicated region
      $region13: #{atcnet_forward_pallas.2} parent=11 // pred_check
        %p184 = pneg %p59
      $region14: #{atcnet_forward_pallas.2} parent=11 // pred_check_branch
        %186 = sbr.rel (%p184) target = $region16
      $region15: #{atcnet_forward_pallas.2} parent=11 // pred_region
        _
      $region16: #{atcnet_forward_pallas.2} parent=11 // pred_fallthru
        _
      // Predicated region
      $region17: #{atcnet_forward_pallas.2} parent=11 // pred_check
        %p187 = pneg %p80
      $region18: #{atcnet_forward_pallas.2} parent=11 // pred_check_branch
        %189 = sbr.rel (%p187) target = $region20
      $region19: #{atcnet_forward_pallas.2} parent=11 // pred_region
        _
      $region20: #{atcnet_forward_pallas.2} parent=11 // pred_fallthru
        _
      // Predicated region
      $region21: #{atcnet_forward_pallas.2} parent=11 // pred_check
        %p190 = pneg %p101
      $region22: #{atcnet_forward_pallas.2} parent=11 // pred_check_branch
        %192 = sbr.rel (%p190) target = $region24
      $region23: #{atcnet_forward_pallas.2} parent=11 // pred_region
        _
      $region24: #{atcnet_forward_pallas.2} parent=11 // pred_fallthru
        _
      // Predicated region
      $region25: #{atcnet_forward_pallas.2} parent=11 // pred_check
        %p193 = pneg %p122
      $region26: #{atcnet_forward_pallas.2} parent=11 // pred_check_branch
        %195 = sbr.rel (%p193) target = $region28
      $region27: #{atcnet_forward_pallas.2} parent=11 // pred_region
        _
      $region28: #{atcnet_forward_pallas.2} parent=11 // pred_fallthru
        _
      // Predicated region
      $region29: #{atcnet_forward_pallas.2} parent=11 // pred_check
        %p196 = pneg %p143
      $region30: #{atcnet_forward_pallas.2} parent=11 // pred_check_branch
        %198 = sbr.rel (%p196) target = $region32
      $region31: #{atcnet_forward_pallas.2} parent=11 // pred_region
        _
      $region32: #{atcnet_forward_pallas.2} parent=11 // pred_fallthru
        _
    $region12: #{atcnet_forward_pallas.2} parent=5 // pred_fallthru
      _
    %p199 = scmp.lt.s32.totalorder %s12, 2
    // Predicated region
    $region33: #{atcnet_forward_pallas.2} parent=5 // pred_check
      %p200 = pneg %p199
    $region34: #{atcnet_forward_pallas.2} parent=5 // pred_check_branch
      %202 = sbr.rel (%p200) target = $region36
    $region35: #{atcnet_forward_pallas.2} parent=5 // pred_region
      // Predicated region
      $region37: #{atcnet_forward_pallas.2} parent=35 // pred_check
        %p203 = pneg %p32
      $region38: #{atcnet_forward_pallas.2} parent=35 // pred_check_branch
        %205 = sbr.rel (%p203) target = $region40
      $region39: #{atcnet_forward_pallas.2} parent=35 // pred_region
        %p206 = scmp.lt.s32.totalorder %s12, 1
        %s207 = scalar_select %p206, %s12, 1
        %s208 = smul.addr %s207, 4
        %s209 = smul.addr %s208, 4
        %s210 = scalar_lea.vmem %s0, %s209
      $region40: #{atcnet_forward_pallas.2} parent=35 // pred_fallthru
        _
    $region36: #{atcnet_forward_pallas.2} parent=5 // pred_fallthru
      _
    %p211 = scmp.le.s32.totalorder 1, %s12
    %p212 = scmp.lt.s32.totalorder %s12, 3
    %p213 = pnand %p211, %p212
    %p214 = pneg %p213
    // Predicated region
    $region41: #{atcnet_forward_pallas.2} parent=5 // pred_check
      _
    $region42: #{atcnet_forward_pallas.2} parent=5 // pred_check_branch
      %216 = sbr.rel (%p213) target = $region44
    $region43: #{atcnet_forward_pallas.2} parent=5 // pred_region
      %s217 = ssub.s32 %s12, 1
      %p218 = scmp.lt.s32.totalorder %s17, 1
      %s219 = scalar_select %p218, %s17, 1
      %s220 = smul.addr %s219, 4
      %s221 = smul.addr %s220, 4
      %s222 = scalar_lea.vmem %s0, %s221
      %p223 = pneg %p38
      %p224 = pneg %p35
      %p225 = pneg %p59
      %p226 = pneg %p56
      %p227 = pneg %p80
      %p228 = pneg %p77
      %p229 = pneg %p101
      %p230 = pneg %p98
      %p231 = pneg %p122
      %p232 = pneg %p119
      %p233 = pneg %p143
      %p234 = pneg %p140
      %p235 = pneg %p169
      %p236 = pneg %p166
      %p237 = scmp.lt.s32.totalorder %s17, 1
      %s238 = scalar_select %p237, %s17, 1
      %s239 = smul.addr %s238, 4
      %s240 = smul.addr %s239, 8
      %s241 = scalar_lea.vmem %s6, %s240
      %p242 = scmp.lt.s32.totalorder %s17, 1
      %s243 = scalar_select %p242, %s17, 1
      %s244 = smul.addr %s243, 4
      %s245 = smul.addr %s244, 4
      %s246 = scalar_lea.vmem %s0, %s245
      %p247 = scmp.lt.s32.totalorder %s17, 1
      %s248 = scalar_select %p247, %s17, 1
      %s249 = smul.addr %s248, 4
      %s250 = smul.addr %s249, 8
      %s251 = scalar_lea.vmem %s6, %s250
      %v252 = vld [vmem:[%s246] sm:$0xff]
      %v253 = vld [vmem:[%s246 + $0x8] sm:$0xff]
      %256 = vst [vmem:[#allocation1] ss:$2 sm:$0xff] %v252
      %s257 = scalar_lea.vmem [#allocation1], 16
      %258 = vst [vmem:[%s257] ss:$2 sm:$0xff] %v253
      %v259 = vld.sshfl [vmem:[#allocation1] sm:$0xff pattern:$0x75316420]
      %v260 = vld.sshfl [vmem:[#allocation1 + $0x8] sm:$0xff pattern:$0x75316420]
      %v261 = vld.sshfl [vmem:[#allocation1 + $0x10] sm:$0xff pattern:$0x75316420]
      %v262 = vld.sshfl [vmem:[#allocation1 + $0x18] sm:$0xff pattern:$0x75316420]
      %s267 = scalar_lea.vmem [#allocation1], 1
      %268 = vst [vmem:[%s267] ss:$2 sm:$0xff] %v252
      %s269 = scalar_lea.vmem [#allocation1], 17
      %270 = vst [vmem:[%s269] ss:$2 sm:$0xff] %v253
      %v271 = vld.sshfl [vmem:[#allocation1] sm:$0xff pattern:$0x75316420]
      %v272 = vld.sshfl [vmem:[#allocation1 + $0x8] sm:$0xff pattern:$0x75316420]
      %v273 = vld.sshfl [vmem:[#allocation1 + $0x10] sm:$0xff pattern:$0x75316420]
      %v274 = vld.sshfl [vmem:[#allocation1 + $0x18] sm:$0xff pattern:$0x75316420]
      %275 = vrot.lane.b32.xlu0 %v271, 127
      %v276 = vpop.permute.xlu0 %275
      %277 = vrot.lane.b32.xlu0 %v272, 127
      %v278 = vpop.permute.xlu0 %277
      %279 = vrot.lane.b32.xlu0 %v273, 127
      %v280 = vpop.permute.xlu0 %279
      %281 = vrot.lane.b32.xlu0 %v274, 127
      %v282 = vpop.permute.xlu0 %281
      %vm283 = vcmask 1039360
      %v284 = vsel %vm283, %v276, %v278
      %v285 = vsel %vm283, %v278, %v280
      %v286 = vsel %vm283, %v280, %v282
      %291 = vst [vmem:[#allocation1] ss:$2 sm:$0xff] %v252
      %s292 = scalar_lea.vmem [#allocation1], 16
      %293 = vst [vmem:[%s292] ss:$2 sm:$0xff] %v253
      %v294 = vld.sshfl [vmem:[#allocation1] sm:$0xff pattern:$0x75316420]
      %v295 = vld.sshfl [vmem:[#allocation1 + $0x8] sm:$0xff pattern:$0x75316420]
      %v296 = vld.sshfl [vmem:[#allocation1 + $0x10] sm:$0xff pattern:$0x75316420]
      %v297 = vld.sshfl [vmem:[#allocation1 + $0x18] sm:$0xff pattern:$0x75316420]
      %298 = vrot.lane.b32.xlu0 %v294, 126
      %v299 = vpop.permute.xlu0 %298
      %300 = vrot.lane.b32.xlu0 %v295, 126
      %v301 = vpop.permute.xlu0 %300
      %302 = vrot.lane.b32.xlu0 %v296, 126
      %v303 = vpop.permute.xlu0 %302
      %304 = vrot.lane.b32.xlu0 %v297, 126
      %v305 = vpop.permute.xlu0 %304
      %vm306 = vcmask 1031168
      %v307 = vsel %vm306, %v299, %v301
      %v308 = vsel %vm306, %v301, %v303
      %v309 = vsel %vm306, %v303, %v305
      %s314 = scalar_lea.vmem [#allocation1], 1
      %315 = vst [vmem:[%s314] ss:$2 sm:$0xff] %v252
      %s316 = scalar_lea.vmem [#allocation1], 17
      %317 = vst [vmem:[%s316] ss:$2 sm:$0xff] %v253
      %v318 = vld.sshfl [vmem:[#allocation1] sm:$0xff pattern:$0x75316420]
      %v319 = vld.sshfl [vmem:[#allocation1 + $0x8] sm:$0xff pattern:$0x75316420]
      %v320 = vld.sshfl [vmem:[#allocation1 + $0x10] sm:$0xff pattern:$0x75316420]
      %v321 = vld.sshfl [vmem:[#allocation1 + $0x18] sm:$0xff pattern:$0x75316420]
      %322 = vrot.lane.b32.xlu0 %v318, 125
      %v323 = vpop.permute.xlu0 %322
      %324 = vrot.lane.b32.xlu0 %v319, 125
      %v325 = vpop.permute.xlu0 %324
      %326 = vrot.lane.b32.xlu0 %v320, 125
      %v327 = vpop.permute.xlu0 %326
      %328 = vrot.lane.b32.xlu0 %v321, 125
      %v329 = vpop.permute.xlu0 %328
      %vm330 = vcmask 1022976
      %v331 = vsel %vm330, %v323, %v325
      %v332 = vsel %vm330, %v325, %v327
      %v333 = vsel %vm330, %v327, %v329
      %338 = vst [vmem:[#allocation1] ss:$2 sm:$0xff] %v252
      %s339 = scalar_lea.vmem [#allocation1], 16
      %340 = vst [vmem:[%s339] ss:$2 sm:$0xff] %v253
      %v341 = vld.sshfl [vmem:[#allocation1] sm:$0xff pattern:$0x75316420]
      %v342 = vld.sshfl [vmem:[#allocation1 + $0x8] sm:$0xff pattern:$0x75316420]
      %v343 = vld.sshfl [vmem:[#allocation1 + $0x10] sm:$0xff pattern:$0x75316420]
      %v344 = vld.sshfl [vmem:[#allocation1 + $0x18] sm:$0xff pattern:$0x75316420]
      %345 = vrot.lane.b32.xlu0 %v341, 124
      %v346 = vpop.permute.xlu0 %345
      %347 = vrot.lane.b32.xlu0 %v342, 124
      %v348 = vpop.permute.xlu0 %347
      %349 = vrot.lane.b32.xlu0 %v343, 124
      %v350 = vpop.permute.xlu0 %349
      %351 = vrot.lane.b32.xlu0 %v344, 124
      %v352 = vpop.permute.xlu0 %351
      %vm353 = vcmask 1014784
      %v354 = vsel %vm353, %v346, %v348
      %v355 = vsel %vm353, %v348, %v350
      %v356 = vsel %vm353, %v350, %v352
      %s361 = scalar_lea.vmem [#allocation1], 1
      %362 = vst [vmem:[%s361] ss:$2 sm:$0xff] %v252
      %s363 = scalar_lea.vmem [#allocation1], 17
      %364 = vst [vmem:[%s363] ss:$2 sm:$0xff] %v253
      %v365 = vld.sshfl [vmem:[#allocation1] sm:$0xff pattern:$0x75316420]
      %v366 = vld.sshfl [vmem:[#allocation1 + $0x8] sm:$0xff pattern:$0x75316420]
      %v367 = vld.sshfl [vmem:[#allocation1 + $0x10] sm:$0xff pattern:$0x75316420]
      %v368 = vld.sshfl [vmem:[#allocation1 + $0x18] sm:$0xff pattern:$0x75316420]
      %369 = vrot.lane.b32.xlu0 %v365, 123
      %v370 = vpop.permute.xlu0 %369
      %371 = vrot.lane.b32.xlu0 %v366, 123
      %v372 = vpop.permute.xlu0 %371
      %373 = vrot.lane.b32.xlu0 %v367, 123
      %v374 = vpop.permute.xlu0 %373
      %375 = vrot.lane.b32.xlu0 %v368, 123
      %v376 = vpop.permute.xlu0 %375
      %vm377 = vcmask 1006592
      %v378 = vsel %vm377, %v370, %v372
      %v379 = vsel %vm377, %v372, %v374
      %v380 = vsel %vm377, %v374, %v376
      %385 = vst [vmem:[#allocation1] ss:$2 sm:$0xff] %v252
      %s386 = scalar_lea.vmem [#allocation1], 16
      %387 = vst [vmem:[%s386] ss:$2 sm:$0xff] %v253
      %v388 = vld.sshfl [vmem:[#allocation1] sm:$0xff pattern:$0x75316420]
      %v389 = vld.sshfl [vmem:[#allocation1 + $0x8] sm:$0xff pattern:$0x75316420]
      %v390 = vld.sshfl [vmem:[#allocation1 + $0x10] sm:$0xff pattern:$0x75316420]
      %v391 = vld.sshfl [vmem:[#allocation1 + $0x18] sm:$0xff pattern:$0x75316420]
      %392 = vrot.lane.b32.xlu0 %v388, 122
      %v393 = vpop.permute.xlu0 %392
      %394 = vrot.lane.b32.xlu0 %v389, 122
      %v395 = vpop.permute.xlu0 %394
      %396 = vrot.lane.b32.xlu0 %v390, 122
      %v397 = vpop.permute.xlu0 %396
      %398 = vrot.lane.b32.xlu0 %v391, 122
      %v399 = vpop.permute.xlu0 %398
      %vm400 = vcmask 998400
      %v401 = vsel %vm400, %v393, %v395
      %v402 = vsel %vm400, %v395, %v397
      %v403 = vsel %vm400, %v397, %v399
      %s408 = scalar_lea.vmem [#allocation1], 1
      %409 = vst [vmem:[%s408] ss:$2 sm:$0xff] %v252
      %s410 = scalar_lea.vmem [#allocation1], 17
      %411 = vst [vmem:[%s410] ss:$2 sm:$0xff] %v253
      %v412 = vld.sshfl [vmem:[#allocation1] sm:$0xff pattern:$0x75316420]
      %v413 = vld.sshfl [vmem:[#allocation1 + $0x8] sm:$0xff pattern:$0x75316420]
      %v414 = vld.sshfl [vmem:[#allocation1 + $0x10] sm:$0xff pattern:$0x75316420]
      %v415 = vld.sshfl [vmem:[#allocation1 + $0x18] sm:$0xff pattern:$0x75316420]
      %416 = vrot.lane.b32.xlu0 %v412, 121
      %v417 = vpop.permute.xlu0 %416
      %418 = vrot.lane.b32.xlu0 %v413, 121
      %v419 = vpop.permute.xlu0 %418
      %420 = vrot.lane.b32.xlu0 %v414, 121
      %v421 = vpop.permute.xlu0 %420
      %422 = vrot.lane.b32.xlu0 %v415, 121
      %v423 = vpop.permute.xlu0 %422
      %vm424 = vcmask 990208
      %v425 = vsel %vm424, %v417, %v419
      %v426 = vsel %vm424, %v419, %v421
      %v427 = vsel %vm424, %v421, %v423
      %432 = vst [vmem:[#allocation1] ss:$2 sm:$0xff] %v252
      %s433 = scalar_lea.vmem [#allocation1], 16
      %434 = vst [vmem:[%s433] ss:$2 sm:$0xff] %v253
      %v435 = vld.sshfl [vmem:[#allocation1] sm:$0xff pattern:$0x75316420]
      %v436 = vld.sshfl [vmem:[#allocation1 + $0x8] sm:$0xff pattern:$0x75316420]
      %v437 = vld.sshfl [vmem:[#allocation1 + $0x10] sm:$0xff pattern:$0x75316420]
      %v438 = vld.sshfl [vmem:[#allocation1 + $0x18] sm:$0xff pattern:$0x75316420]
      %439 = vrot.lane.b32.xlu0 %v435, 120
      %v440 = vpop.permute.xlu0 %439
      %441 = vrot.lane.b32.xlu0 %v436, 120
      %v442 = vpop.permute.xlu0 %441
      %443 = vrot.lane.b32.xlu0 %v437, 120
      %v444 = vpop.permute.xlu0 %443
      %445 = vrot.lane.b32.xlu0 %v438, 120
      %v446 = vpop.permute.xlu0 %445
      %vm447 = vcmask 982016
      %v448 = vsel %vm447, %v440, %v442
      %v449 = vsel %vm447, %v442, %v444
      %v450 = vsel %vm447, %v444, %v446
      %s455 = scalar_lea.vmem [#allocation1], 1
      %456 = vst [vmem:[%s455] ss:$2 sm:$0xff] %v252
      %s457 = scalar_lea.vmem [#allocation1], 17
      %458 = vst [vmem:[%s457] ss:$2 sm:$0xff] %v253
      %v459 = vld.sshfl [vmem:[#allocation1] sm:$0xff pattern:$0x75316420]
      %v460 = vld.sshfl [vmem:[#allocation1 + $0x8] sm:$0xff pattern:$0x75316420]
      %v461 = vld.sshfl [vmem:[#allocation1 + $0x10] sm:$0xff pattern:$0x75316420]
      %v462 = vld.sshfl [vmem:[#allocation1 + $0x18] sm:$0xff pattern:$0x75316420]
      %463 = vrot.lane.b32.xlu0 %v459, 119
      %v464 = vpop.permute.xlu0 %463
      %465 = vrot.lane.b32.xlu0 %v460, 119
      %v466 = vpop.permute.xlu0 %465
      %467 = vrot.lane.b32.xlu0 %v461, 119
      %v468 = vpop.permute.xlu0 %467
      %469 = vrot.lane.b32.xlu0 %v462, 119
      %v470 = vpop.permute.xlu0 %469
      %vm471 = vcmask 973824
      %v472 = vsel %vm471, %v464, %v466
      %v473 = vsel %vm471, %v466, %v468
      %v474 = vsel %vm471, %v468, %v470
      %479 = vst [vmem:[#allocation1] ss:$2 sm:$0xff] %v252
      %s480 = scalar_lea.vmem [#allocation1], 16
      %481 = vst [vmem:[%s480] ss:$2 sm:$0xff] %v253
      %v482 = vld.sshfl [vmem:[#allocation1] sm:$0xff pattern:$0x75316420]
      %v483 = vld.sshfl [vmem:[#allocation1 + $0x8] sm:$0xff pattern:$0x75316420]
      %v484 = vld.sshfl [vmem:[#allocation1 + $0x10] sm:$0xff pattern:$0x75316420]
      %v485 = vld.sshfl [vmem:[#allocation1 + $0x18] sm:$0xff pattern:$0x75316420]
      %486 = vrot.lane.b32.xlu0 %v482, 118
      %v487 = vpop.permute.xlu0 %486
      %488 = vrot.lane.b32.xlu0 %v483, 118
      %v489 = vpop.permute.xlu0 %488
      %490 = vrot.lane.b32.xlu0 %v484, 118
      %v491 = vpop.permute.xlu0 %490
      %492 = vrot.lane.b32.xlu0 %v485, 118
      %v493 = vpop.permute.xlu0 %492
      %vm494 = vcmask 965632
      %v495 = vsel %vm494, %v487, %v489
      %v496 = vsel %vm494, %v489, %v491
      %v497 = vsel %vm494, %v491, %v493
      %s502 = scalar_lea.vmem [#allocation1], 1
      %503 = vst [vmem:[%s502] ss:$2 sm:$0xff] %v252
      %s504 = scalar_lea.vmem [#allocation1], 17
      %505 = vst [vmem:[%s504] ss:$2 sm:$0xff] %v253
      %v506 = vld.sshfl [vmem:[#allocation1] sm:$0xff pattern:$0x75316420]
      %v507 = vld.sshfl [vmem:[#allocation1 + $0x8] sm:$0xff pattern:$0x75316420]
      %v508 = vld.sshfl [vmem:[#allocation1 + $0x10] sm:$0xff pattern:$0x75316420]
      %v509 = vld.sshfl [vmem:[#allocation1 + $0x18] sm:$0xff pattern:$0x75316420]
      %510 = vrot.lane.b32.xlu0 %v506, 117
      %v511 = vpop.permute.xlu0 %510
      %512 = vrot.lane.b32.xlu0 %v507, 117
      %v513 = vpop.permute.xlu0 %512
      %514 = vrot.lane.b32.xlu0 %v508, 117
      %v515 = vpop.permute.xlu0 %514
      %516 = vrot.lane.b32.xlu0 %v509, 117
      %v517 = vpop.permute.xlu0 %516
      %vm518 = vcmask 957440
      %v519 = vsel %vm518, %v511, %v513
      %v520 = vsel %vm518, %v513, %v515
      %v521 = vsel %vm518, %v515, %v517
      %526 = vst [vmem:[#allocation1] ss:$2 sm:$0xff] %v252
      %s527 = scalar_lea.vmem [#allocation1], 16
      %528 = vst [vmem:[%s527] ss:$2 sm:$0xff] %v253
      %v529 = vld.sshfl [vmem:[#allocation1] sm:$0xff pattern:$0x75316420]
      %v530 = vld.sshfl [vmem:[#allocation1 + $0x8] sm:$0xff pattern:$0x75316420]
      %v531 = vld.sshfl [vmem:[#allocation1 + $0x10] sm:$0xff pattern:$0x75316420]
      %v532 = vld.sshfl [vmem:[#allocation1 + $0x18] sm:$0xff pattern:$0x75316420]
      %533 = vrot.lane.b32.xlu0 %v529, 116
      %v534 = vpop.permute.xlu0 %533
      %535 = vrot.lane.b32.xlu0 %v530, 116
      %v536 = vpop.permute.xlu0 %535
      %537 = vrot.lane.b32.xlu0 %v531, 116
      %v538 = vpop.permute.xlu0 %537
      %539 = vrot.lane.b32.xlu0 %v532, 116
      %v540 = vpop.permute.xlu0 %539
      %vm541 = vcmask 949248
      %v542 = vsel %vm541, %v534, %v536
      %v543 = vsel %vm541, %v536, %v538
      %v544 = vsel %vm541, %v538, %v540
      %s549 = scalar_lea.vmem [#allocation1], 1
      %550 = vst [vmem:[%s549] ss:$2 sm:$0xff] %v252
      %s551 = scalar_lea.vmem [#allocation1], 17
      %552 = vst [vmem:[%s551] ss:$2 sm:$0xff] %v253
      %v553 = vld.sshfl [vmem:[#allocation1] sm:$0xff pattern:$0x75316420]
      %v554 = vld.sshfl [vmem:[#allocation1 + $0x8] sm:$0xff pattern:$0x75316420]
      %v555 = vld.sshfl [vmem:[#allocation1 + $0x10] sm:$0xff pattern:$0x75316420]
      %v556 = vld.sshfl [vmem:[#allocation1 + $0x18] sm:$0xff pattern:$0x75316420]
      %557 = vrot.lane.b32.xlu0 %v553, 115
      %v558 = vpop.permute.xlu0 %557
      %559 = vrot.lane.b32.xlu0 %v554, 115
      %v560 = vpop.permute.xlu0 %559
      %561 = vrot.lane.b32.xlu0 %v555, 115
      %v562 = vpop.permute.xlu0 %561
      %563 = vrot.lane.b32.xlu0 %v556, 115
      %v564 = vpop.permute.xlu0 %563
      %vm565 = vcmask 941056
      %v566 = vsel %vm565, %v558, %v560
      %v567 = vsel %vm565, %v560, %v562
      %v568 = vsel %vm565, %v562, %v564
      %573 = vst [vmem:[#allocation1] ss:$2 sm:$0xff] %v252
      %s574 = scalar_lea.vmem [#allocation1], 16
      %575 = vst [vmem:[%s574] ss:$2 sm:$0xff] %v253
      %v576 = vld.sshfl [vmem:[#allocation1] sm:$0xff pattern:$0x75316420]
      %v577 = vld.sshfl [vmem:[#allocation1 + $0x8] sm:$0xff pattern:$0x75316420]
      %v578 = vld.sshfl [vmem:[#allocation1 + $0x10] sm:$0xff pattern:$0x75316420]
      %v579 = vld.sshfl [vmem:[#allocation1 + $0x18] sm:$0xff pattern:$0x75316420]
      %580 = vrot.lane.b32.xlu0 %v576, 114
      %v581 = vpop.permute.xlu0 %580
      %582 = vrot.lane.b32.xlu0 %v577, 114
      %v583 = vpop.permute.xlu0 %582
      %584 = vrot.lane.b32.xlu0 %v578, 114
      %v585 = vpop.permute.xlu0 %584
      %586 = vrot.lane.b32.xlu0 %v579, 114
      %v587 = vpop.permute.xlu0 %586
      %vm588 = vcmask 932864
      %v589 = vsel %vm588, %v581, %v583
      %v590 = vsel %vm588, %v583, %v585
      %v591 = vsel %vm588, %v585, %v587
      %s596 = scalar_lea.vmem [#allocation1], 1
      %597 = vst [vmem:[%s596] ss:$2 sm:$0xff] %v252
      %s598 = scalar_lea.vmem [#allocation1], 17
      %599 = vst [vmem:[%s598] ss:$2 sm:$0xff] %v253
      %v600 = vld.sshfl [vmem:[#allocation1] sm:$0xff pattern:$0x75316420]
      %v601 = vld.sshfl [vmem:[#allocation1 + $0x8] sm:$0xff pattern:$0x75316420]
      %v602 = vld.sshfl [vmem:[#allocation1 + $0x10] sm:$0xff pattern:$0x75316420]
      %v603 = vld.sshfl [vmem:[#allocation1 + $0x18] sm:$0xff pattern:$0x75316420]
      %604 = vrot.lane.b32.xlu0 %v600, 113
      %v605 = vpop.permute.xlu0 %604
      %606 = vrot.lane.b32.xlu0 %v601, 113
      %v607 = vpop.permute.xlu0 %606
      %608 = vrot.lane.b32.xlu0 %v602, 113
      %v609 = vpop.permute.xlu0 %608
      %610 = vrot.lane.b32.xlu0 %v603, 113
      %v611 = vpop.permute.xlu0 %610
      %vm612 = vcmask 924672
      %v613 = vsel %vm612, %v605, %v607
      %v614 = vsel %vm612, %v607, %v609
      %v615 = vsel %vm612, %v609, %v611
      %vm620 = vcmask 1043456
      %v621 = vsel %vm620, %v259, %v284
      %v622 = vsel %vm620, %v260, %v285
      %v623 = vsel %vm620, %v261, %v286
      %v624 = vsel %vm620, %v262, %v282
      %v625 = vsel %vm620, %v307, %v331
      %v626 = vsel %vm620, %v308, %v332
      %v627 = vsel %vm620, %v309, %v333
      %v628 = vsel %vm620, %v305, %v329
      %v629 = vsel %vm620, %v354, %v378
      %v630 = vsel %vm620, %v355, %v379
      %v631 = vsel %vm620, %v356, %v380
      %v632 = vsel %vm620, %v352, %v376
      %v633 = vsel %vm620, %v401, %v425
      %v634 = vsel %vm620, %v402, %v426
      %v635 = vsel %vm620, %v403, %v427
      %v636 = vsel %vm620, %v399, %v423
      %v637 = vsel %vm620, %v448, %v472
      %v638 = vsel %vm620, %v449, %v473
      %v639 = vsel %vm620, %v450, %v474
      %v640 = vsel %vm620, %v446, %v470
      %v641 = vsel %vm620, %v495, %v519
      %v642 = vsel %vm620, %v496, %v520
      %v643 = vsel %vm620, %v497, %v521
      %v644 = vsel %vm620, %v493, %v517
      %v645 = vsel %vm620, %v542, %v566
      %v646 = vsel %vm620, %v543, %v567
      %v647 = vsel %vm620, %v544, %v568
      %v648 = vsel %vm620, %v540, %v564
      %v649 = vsel %vm620, %v589, %v613
      %v650 = vsel %vm620, %v590, %v614
      %v651 = vsel %vm620, %v591, %v615
      %v652 = vsel %vm620, %v587, %v611
      %653 = vst [vmem:[#allocation1] ss:$2 sm:$0xff] %v252
      %s654 = scalar_lea.vmem [#allocation1], 16
      %655 = vst [vmem:[%s654] ss:$2 sm:$0xff] %v253
      %v656 = vld.sshfl [vmem:[#allocation1] sm:$0xff pattern:$0x75316420]
      %v657 = vld.sshfl [vmem:[#allocation1 + $0x8] sm:$0xff pattern:$0x75316420]
      %v658 = vld.sshfl [vmem:[#allocation1 + $0x10] sm:$0xff pattern:$0x75316420]
      %v659 = vld.sshfl [vmem:[#allocation1 + $0x18] sm:$0xff pattern:$0x75316420]
      %s664 = scalar_lea.vmem [#allocation1], 1
      %665 = vst [vmem:[%s664] ss:$2 sm:$0xff] %v252
      %s666 = scalar_lea.vmem [#allocation1], 17
      %667 = vst [vmem:[%s666] ss:$2 sm:$0xff] %v253
      %v668 = vld.sshfl [vmem:[#allocation1] sm:$0xff pattern:$0x75316420]
      %v669 = vld.sshfl [vmem:[#allocation1 + $0x8] sm:$0xff pattern:$0x75316420]
      %v670 = vld.sshfl [vmem:[#allocation1 + $0x10] sm:$0xff pattern:$0x75316420]
      %v671 = vld.sshfl [vmem:[#allocation1 + $0x18] sm:$0xff pattern:$0x75316420]
      %672 = vrot.lane.b32.xlu0 %v668, 127
      %v673 = vpop.permute.xlu0 %672
      %674 = vrot.lane.b32.xlu0 %v669, 127
      %v675 = vpop.permute.xlu0 %674
      %676 = vrot.lane.b32.xlu0 %v670, 127
      %v677 = vpop.permute.xlu0 %676
      %678 = vrot.lane.b32.xlu0 %v671, 127
      %v679 = vpop.permute.xlu0 %678
      %v680 = vsel %vm283, %v673, %v675
      %v681 = vsel %vm283, %v675, %v677
      %v682 = vsel %vm283, %v677, %v679
      %687 = vst [vmem:[#allocation1] ss:$2 sm:$0xff] %v252
      %s688 = scalar_lea.vmem [#allocation1], 16
      %689 = vst [vmem:[%s688] ss:$2 sm:$0xff] %v253
      %v690 = vld.sshfl [vmem:[#allocation1] sm:$0xff pattern:$0x75316420]
      %v691 = vld.sshfl [vmem:[#allocation1 + $0x8] sm:$0xff pattern:$0x75316420]
      %v692 = vld.sshfl [vmem:[#allocation1 + $0x10] sm:$0xff pattern:$0x75316420]
      %v693 = vld.sshfl [vmem:[#allocation1 + $0x18] sm:$0xff pattern:$0x75316420]
      %694 = vrot.lane.b32.xlu0 %v690, 126
      %v695 = vpop.permute.xlu0 %694
      %696 = vrot.lane.b32.xlu0 %v691, 126
      %v697 = vpop.permute.xlu0 %696
      %698 = vrot.lane.b32.xlu0 %v692, 126
      %v699 = vpop.permute.xlu0 %698
      %700 = vrot.lane.b32.xlu0 %v693, 126
      %v701 = vpop.permute.xlu0 %700
      %v702 = vsel %vm306, %v695, %v697
      %v703 = vsel %vm306, %v697, %v699
      %v704 = vsel %vm306, %v699, %v701
      %s709 = scalar_lea.vmem [#allocation1], 1
      %710 = vst [vmem:[%s709] ss:$2 sm:$0xff] %v252
      %s711 = scalar_lea.vmem [#allocation1], 17
      %712 = vst [vmem:[%s711] ss:$2 sm:$0xff] %v253
      %v713 = vld.sshfl [vmem:[#allocation1] sm:$0xff pattern:$0x75316420]
      %v714 = vld.sshfl [vmem:[#allocation1 + $0x8] sm:$0xff pattern:$0x75316420]
      %v715 = vld.sshfl [vmem:[#allocation1 + $0x10] sm:$0xff pattern:$0x75316420]
      %v716 = vld.sshfl [vmem:[#allocation1 + $0x18] sm:$0xff pattern:$0x75316420]
      %717 = vrot.lane.b32.xlu0 %v713, 125
      %v718 = vpop.permute.xlu0 %717
      %719 = vrot.lane.b32.xlu0 %v714, 125
      %v720 = vpop.permute.xlu0 %719
      %721 = vrot.lane.b32.xlu0 %v715, 125
      %v722 = vpop.permute.xlu0 %721
      %723 = vrot.lane.b32.xlu0 %v716, 125
      %v724 = vpop.permute.xlu0 %723
      %v725 = vsel %vm330, %v718, %v720
      %v726 = vsel %vm330, %v720, %v722
      %v727 = vsel %vm330, %v722, %v724
      %732 = vst [vmem:[#allocation1] ss:$2 sm:$0xff] %v252
      %s733 = scalar_lea.vmem [#allocation1], 16
      %734 = vst [vmem:[%s733] ss:$2 sm:$0xff] %v253
      %v735 = vld.sshfl [vmem:[#allocation1] sm:$0xff pattern:$0x75316420]
      %v736 = vld.sshfl [vmem:[#allocation1 + $0x8] sm:$0xff pattern:$0x75316420]
      %v737 = vld.sshfl [vmem:[#allocation1 + $0x10] sm:$0xff pattern:$0x75316420]
      %v738 = vld.sshfl [vmem:[#allocation1 + $0x18] sm:$0xff pattern:$0x75316420]
      %739 = vrot.lane.b32.xlu0 %v735, 124
      %v740 = vpop.permute.xlu0 %739
      %741 = vrot.lane.b32.xlu0 %v736, 124
      %v742 = vpop.permute.xlu0 %741
      %743 = vrot.lane.b32.xlu0 %v737, 124
      %v744 = vpop.permute.xlu0 %743
      %745 = vrot.lane.b32.xlu0 %v738, 124
      %v746 = vpop.permute.xlu0 %745
      %v747 = vsel %vm353, %v740, %v742
      %v748 = vsel %vm353, %v742, %v744
      %v749 = vsel %vm353, %v744, %v746
      %s754 = scalar_lea.vmem [#allocation1], 1
      %755 = vst [vmem:[%s754] ss:$2 sm:$0xff] %v252
      %s756 = scalar_lea.vmem [#allocation1], 17
      %757 = vst [vmem:[%s756] ss:$2 sm:$0xff] %v253
      %v758 = vld.sshfl [vmem:[#allocation1] sm:$0xff pattern:$0x75316420]
      %v759 = vld.sshfl [vmem:[#allocation1 + $0x8] sm:$0xff pattern:$0x75316420]
      %v760 = vld.sshfl [vmem:[#allocation1 + $0x10] sm:$0xff pattern:$0x75316420]
      %v761 = vld.sshfl [vmem:[#allocation1 + $0x18] sm:$0xff pattern:$0x75316420]
      %762 = vrot.lane.b32.xlu0 %v758, 123
      %v763 = vpop.permute.xlu0 %762
      %764 = vrot.lane.b32.xlu0 %v759, 123
      %v765 = vpop.permute.xlu0 %764
      %766 = vrot.lane.b32.xlu0 %v760, 123
      %v767 = vpop.permute.xlu0 %766
      %768 = vrot.lane.b32.xlu0 %v761, 123
      %v769 = vpop.permute.xlu0 %768
      %v770 = vsel %vm377, %v763, %v765
      %v771 = vsel %vm377, %v765, %v767
      %v772 = vsel %vm377, %v767, %v769
      %777 = vst [vmem:[#allocation1] ss:$2 sm:$0xff] %v252
      %s778 = scalar_lea.vmem [#allocation1], 16
      %779 = vst [vmem:[%s778] ss:$2 sm:$0xff] %v253
      %v780 = vld.sshfl [vmem:[#allocation1] sm:$0xff pattern:$0x75316420]
      %v781 = vld.sshfl [vmem:[#allocation1 + $0x8] sm:$0xff pattern:$0x75316420]
      %v782 = vld.sshfl [vmem:[#allocation1 + $0x10] sm:$0xff pattern:$0x75316420]
      %v783 = vld.sshfl [vmem:[#allocation1 + $0x18] sm:$0xff pattern:$0x75316420]
      %784 = vrot.lane.b32.xlu0 %v780, 122
      %v785 = vpop.permute.xlu0 %784
      %786 = vrot.lane.b32.xlu0 %v781, 122
      %v787 = vpop.permute.xlu0 %786
      %788 = vrot.lane.b32.xlu0 %v782, 122
      %v789 = vpop.permute.xlu0 %788
      %790 = vrot.lane.b32.xlu0 %v783, 122
      %v791 = vpop.permute.xlu0 %790
      %v792 = vsel %vm400, %v785, %v787
      %v793 = vsel %vm400, %v787, %v789
      %v794 = vsel %vm400, %v789, %v791
      %s799 = scalar_lea.vmem [#allocation1], 1
      %800 = vst [vmem:[%s799] ss:$2 sm:$0xff] %v252
      %s801 = scalar_lea.vmem [#allocation1], 17
      %802 = vst [vmem:[%s801] ss:$2 sm:$0xff] %v253
      %v803 = vld.sshfl [vmem:[#allocation1] sm:$0xff pattern:$0x75316420]
      %v804 = vld.sshfl [vmem:[#allocation1 + $0x8] sm:$0xff pattern:$0x75316420]
      %v805 = vld.sshfl [vmem:[#allocation1 + $0x10] sm:$0xff pattern:$0x75316420]
      %v806 = vld.sshfl [vmem:[#allocation1 + $0x18] sm:$0xff pattern:$0x75316420]
      %807 = vrot.lane.b32.xlu0 %v803, 121
      %v808 = vpop.permute.xlu0 %807
      %809 = vrot.lane.b32.xlu0 %v804, 121
      %v810 = vpop.permute.xlu0 %809
      %811 = vrot.lane.b32.xlu0 %v805, 121
      %v812 = vpop.permute.xlu0 %811
      %813 = vrot.lane.b32.xlu0 %v806, 121
      %v814 = vpop.permute.xlu0 %813
      %v815 = vsel %vm424, %v808, %v810
      %v816 = vsel %vm424, %v810, %v812
      %v817 = vsel %vm424, %v812, %v814
      %822 = vst [vmem:[#allocation1] ss:$2 sm:$0xff] %v252
      %s823 = scalar_lea.vmem [#allocation1], 16
      %824 = vst [vmem:[%s823] ss:$2 sm:$0xff] %v253
      %v825 = vld.sshfl [vmem:[#allocation1] sm:$0xff pattern:$0x75316420]
      %v826 = vld.sshfl [vmem:[#allocation1 + $0x8] sm:$0xff pattern:$0x75316420]
      %v827 = vld.sshfl [vmem:[#allocation1 + $0x10] sm:$0xff pattern:$0x75316420]
      %v828 = vld.sshfl [vmem:[#allocation1 + $0x18] sm:$0xff pattern:$0x75316420]
      %829 = vrot.lane.b32.xlu0 %v825, 120
      %v830 = vpop.permute.xlu0 %829
      %831 = vrot.lane.b32.xlu0 %v826, 120
      %v832 = vpop.permute.xlu0 %831
      %833 = vrot.lane.b32.xlu0 %v827, 120
      %v834 = vpop.permute.xlu0 %833
      %835 = vrot.lane.b32.xlu0 %v828, 120
      %v836 = vpop.permute.xlu0 %835
      %v837 = vsel %vm447, %v830, %v832
      %v838 = vsel %vm447, %v832, %v834
      %v839 = vsel %vm447, %v834, %v836
      %s844 = scalar_lea.vmem [#allocation1], 1
      %845 = vst [vmem:[%s844] ss:$2 sm:$0xff] %v252
      %s846 = scalar_lea.vmem [#allocation1], 17
      %847 = vst [vmem:[%s846] ss:$2 sm:$0xff] %v253
      %v848 = vld.sshfl [vmem:[#allocation1] sm:$0xff pattern:$0x75316420]
      %v849 = vld.sshfl [vmem:[#allocation1 + $0x8] sm:$0xff pattern:$0x75316420]
      %v850 = vld.sshfl [vmem:[#allocation1 + $0x10] sm:$0xff pattern:$0x75316420]
      %v851 = vld.sshfl [vmem:[#allocation1 + $0x18] sm:$0xff pattern:$0x75316420]
      %852 = vrot.lane.b32.xlu0 %v848, 119
      %v853 = vpop.permute.xlu0 %852
      %854 = vrot.lane.b32.xlu0 %v849, 119
      %v855 = vpop.permute.xlu0 %854
      %856 = vrot.lane.b32.xlu0 %v850, 119
      %v857 = vpop.permute.xlu0 %856
      %858 = vrot.lane.b32.xlu0 %v851, 119
      %v859 = vpop.permute.xlu0 %858
      %v860 = vsel %vm471, %v853, %v855
      %v861 = vsel %vm471, %v855, %v857
      %v862 = vsel %vm471, %v857, %v859
      %867 = vst [vmem:[#allocation1] ss:$2 sm:$0xff] %v252
      %s868 = scalar_lea.vmem [#allocation1], 16
      %869 = vst [vmem:[%s868] ss:$2 sm:$0xff] %v253
      %v870 = vld.sshfl [vmem:[#allocation1] sm:$0xff pattern:$0x75316420]
      %v871 = vld.sshfl [vmem:[#allocation1 + $0x8] sm:$0xff pattern:$0x75316420]
      %v872 = vld.sshfl [vmem:[#allocation1 + $0x10] sm:$0xff pattern:$0x75316420]
      %v873 = vld.sshfl [vmem:[#allocation1 + $0x18] sm:$0xff pattern:$0x75316420]
      %874 = vrot.lane.b32.xlu0 %v870, 118
      %v875 = vpop.permute.xlu0 %874
      %876 = vrot.lane.b32.xlu0 %v871, 118
      %v877 = vpop.permute.xlu0 %876
      %878 = vrot.lane.b32.xlu0 %v872, 118
      %v879 = vpop.permute.xlu0 %878
      %880 = vrot.lane.b32.xlu0 %v873, 118
      %v881 = vpop.permute.xlu0 %880
      %v882 = vsel %vm494, %v875, %v877
      %v883 = vsel %vm494, %v877, %v879
      %v884 = vsel %vm494, %v879, %v881
      %s889 = scalar_lea.vmem [#allocation1], 1
      %890 = vst [vmem:[%s889] ss:$2 sm:$0xff] %v252
      %s891 = scalar_lea.vmem [#allocation1], 17
      %892 = vst [vmem:[%s891] ss:$2 sm:$0xff] %v253
      %v893 = vld.sshfl [vmem:[#allocation1] sm:$0xff pattern:$0x75316420]
      %v894 = vld.sshfl [vmem:[#allocation1 + $0x8] sm:$0xff pattern:$0x75316420]
      %v895 = vld.sshfl [vmem:[#allocation1 + $0x10] sm:$0xff pattern:$0x75316420]
      %v896 = vld.sshfl [vmem:[#allocation1 + $0x18] sm:$0xff pattern:$0x75316420]
      %897 = vrot.lane.b32.xlu0 %v893, 117
      %v898 = vpop.permute.xlu0 %897
      %899 = vrot.lane.b32.xlu0 %v894, 117
      %v900 = vpop.permute.xlu0 %899
      %901 = vrot.lane.b32.xlu0 %v895, 117
      %v902 = vpop.permute.xlu0 %901
      %903 = vrot.lane.b32.xlu0 %v896, 117
      %v904 = vpop.permute.xlu0 %903
      %v905 = vsel %vm518, %v898, %v900
      %v906 = vsel %vm518, %v900, %v902
      %v907 = vsel %vm518, %v902, %v904
      %912 = vst [vmem:[#allocation1] ss:$2 sm:$0xff] %v252
      %s913 = scalar_lea.vmem [#allocation1], 16
      %914 = vst [vmem:[%s913] ss:$2 sm:$0xff] %v253
      %v915 = vld.sshfl [vmem:[#allocation1] sm:$0xff pattern:$0x75316420]
      %v916 = vld.sshfl [vmem:[#allocation1 + $0x8] sm:$0xff pattern:$0x75316420]
      %v917 = vld.sshfl [vmem:[#allocation1 + $0x10] sm:$0xff pattern:$0x75316420]
      %v918 = vld.sshfl [vmem:[#allocation1 + $0x18] sm:$0xff pattern:$0x75316420]
      %919 = vrot.lane.b32.xlu0 %v915, 116
      %v920 = vpop.permute.xlu0 %919
      %921 = vrot.lane.b32.xlu0 %v916, 116
      %v922 = vpop.permute.xlu0 %921
      %923 = vrot.lane.b32.xlu0 %v917, 116
      %v924 = vpop.permute.xlu0 %923
      %925 = vrot.lane.b32.xlu0 %v918, 116
      %v926 = vpop.permute.xlu0 %925
      %v927 = vsel %vm541, %v920, %v922
      %v928 = vsel %vm541, %v922, %v924
      %v929 = vsel %vm541, %v924, %v926
      %s934 = scalar_lea.vmem [#allocation1], 1
      %935 = vst [vmem:[%s934] ss:$2 sm:$0xff] %v252
      %s936 = scalar_lea.vmem [#allocation1], 17
      %937 = vst [vmem:[%s936] ss:$2 sm:$0xff] %v253
      %v938 = vld.sshfl [vmem:[#allocation1] sm:$0xff pattern:$0x75316420]
      %v939 = vld.sshfl [vmem:[#allocation1 + $0x8] sm:$0xff pattern:$0x75316420]
      %v940 = vld.sshfl [vmem:[#allocation1 + $0x10] sm:$0xff pattern:$0x75316420]
      %v941 = vld.sshfl [vmem:[#allocation1 + $0x18] sm:$0xff pattern:$0x75316420]
      %942 = vrot.lane.b32.xlu0 %v938, 115
      %v943 = vpop.permute.xlu0 %942
      %944 = vrot.lane.b32.xlu0 %v939, 115
      %v945 = vpop.permute.xlu0 %944
      %946 = vrot.lane.b32.xlu0 %v940, 115
      %v947 = vpop.permute.xlu0 %946
      %948 = vrot.lane.b32.xlu0 %v941, 115
      %v949 = vpop.permute.xlu0 %948
      %v950 = vsel %vm565, %v943, %v945
      %v951 = vsel %vm565, %v945, %v947
      %v952 = vsel %vm565, %v947, %v949
      %957 = vst [vmem:[#allocation1] ss:$2 sm:$0xff] %v252
      %s958 = scalar_lea.vmem [#allocation1], 16
      %959 = vst [vmem:[%s958] ss:$2 sm:$0xff] %v253
      %v960 = vld.sshfl [vmem:[#allocation1] sm:$0xff pattern:$0x75316420]
      %v961 = vld.sshfl [vmem:[#allocation1 + $0x8] sm:$0xff pattern:$0x75316420]
      %v962 = vld.sshfl [vmem:[#allocation1 + $0x10] sm:$0xff pattern:$0x75316420]
      %v963 = vld.sshfl [vmem:[#allocation1 + $0x18] sm:$0xff pattern:$0x75316420]
      %964 = vrot.lane.b32.xlu0 %v960, 114
      %v965 = vpop.permute.xlu0 %964
      %966 = vrot.lane.b32.xlu0 %v961, 114
      %v967 = vpop.permute.xlu0 %966
      %968 = vrot.lane.b32.xlu0 %v962, 114
      %v969 = vpop.permute.xlu0 %968
      %970 = vrot.lane.b32.xlu0 %v963, 114
      %v971 = vpop.permute.xlu0 %970
      %v972 = vsel %vm588, %v965, %v967
      %v973 = vsel %vm588, %v967, %v969
      %v974 = vsel %vm588, %v969, %v971
      %s979 = scalar_lea.vmem [#allocation1], 1
      %980 = vst [vmem:[%s979] ss:$2 sm:$0xff] %v252
      %s981 = scalar_lea.vmem [#allocation1], 17
      %982 = vst [vmem:[%s981] ss:$2 sm:$0xff] %v253
      %v983 = vld.sshfl [vmem:[#allocation1] sm:$0xff pattern:$0x75316420]
      %v984 = vld.sshfl [vmem:[#allocation1 + $0x8] sm:$0xff pattern:$0x75316420]
      %v985 = vld.sshfl [vmem:[#allocation1 + $0x10] sm:$0xff pattern:$0x75316420]
      %v986 = vld.sshfl [vmem:[#allocation1 + $0x18] sm:$0xff pattern:$0x75316420]
      %987 = vrot.lane.b32.xlu0 %v983, 113
      %v988 = vpop.permute.xlu0 %987
      %989 = vrot.lane.b32.xlu0 %v984, 113
      %v990 = vpop.permute.xlu0 %989
      %991 = vrot.lane.b32.xlu0 %v985, 113
      %v992 = vpop.permute.xlu0 %991
      %993 = vrot.lane.b32.xlu0 %v986, 113
      %v994 = vpop.permute.xlu0 %993
      %v995 = vsel %vm612, %v988, %v990
      %v996 = vsel %vm612, %v990, %v992
      %v997 = vsel %vm612, %v992, %v994
      %v1002 = vsel %vm620, %v656, %v680
      %v1003 = vsel %vm620, %v657, %v681
      %v1004 = vsel %vm620, %v658, %v682
      %v1005 = vsel %vm620, %v659, %v679
      %v1006 = vsel %vm620, %v702, %v725
      %v1007 = vsel %vm620, %v703, %v726
      %v1008 = vsel %vm620, %v704, %v727
      %v1009 = vsel %vm620, %v701, %v724
      %v1010 = vsel %vm620, %v747, %v770
      %v1011 = vsel %vm620, %v748, %v771
      %v1012 = vsel %vm620, %v749, %v772
      %v1013 = vsel %vm620, %v746, %v769
      %v1014 = vsel %vm620, %v792, %v815
      %v1015 = vsel %vm620, %v793, %v816
      %v1016 = vsel %vm620, %v794, %v817
      %v1017 = vsel %vm620, %v791, %v814
      %v1018 = vsel %vm620, %v837, %v860
      %v1019 = vsel %vm620, %v838, %v861
      %v1020 = vsel %vm620, %v839, %v862
      %v1021 = vsel %vm620, %v836, %v859
      %v1022 = vsel %vm620, %v882, %v905
      %v1023 = vsel %vm620, %v883, %v906
      %v1024 = vsel %vm620, %v884, %v907
      %v1025 = vsel %vm620, %v881, %v904
      %v1026 = vsel %vm620, %v927, %v950
      %v1027 = vsel %vm620, %v928, %v951
      %v1028 = vsel %vm620, %v929, %v952
      %v1029 = vsel %vm620, %v926, %v949
      %v1030 = vsel %vm620, %v972, %v995
      %v1031 = vsel %vm620, %v973, %v996
      %v1032 = vsel %vm620, %v974, %v997
      %v1033 = vsel %vm620, %v971, %v994
      %1034 = vst [vmem:[#allocation1] ss:$2 sm:$0xff] %v252
      %s1035 = scalar_lea.vmem [#allocation1], 16
      %1036 = vst [vmem:[%s1035] ss:$2 sm:$0xff] %v253
      %v1037 = vld.sshfl [vmem:[#allocation1] sm:$0xff pattern:$0x75316420]
      %v1038 = vld.sshfl [vmem:[#allocation1 + $0x8] sm:$0xff pattern:$0x75316420]
      %v1039 = vld.sshfl [vmem:[#allocation1 + $0x10] sm:$0xff pattern:$0x75316420]
      %v1040 = vld.sshfl [vmem:[#allocation1 + $0x18] sm:$0xff pattern:$0x75316420]
      %s1045 = scalar_lea.vmem [#allocation1], 1
      %1046 = vst [vmem:[%s1045] ss:$2 sm:$0xff] %v252
      %s1047 = scalar_lea.vmem [#allocation1], 17
      %1048 = vst [vmem:[%s1047] ss:$2 sm:$0xff] %v253
      %v1049 = vld.sshfl [vmem:[#allocation1] sm:$0xff pattern:$0x75316420]
      %v1050 = vld.sshfl [vmem:[#allocation1 + $0x8] sm:$0xff pattern:$0x75316420]
      %v1051 = vld.sshfl [vmem:[#allocation1 + $0x10] sm:$0xff pattern:$0x75316420]
      %v1052 = vld.sshfl [vmem:[#allocation1 + $0x18] sm:$0xff pattern:$0x75316420]
      %1053 = vrot.lane.b32.xlu0 %v1049, 127
      %v1054 = vpop.permute.xlu0 %1053
      %1055 = vrot.lane.b32.xlu0 %v1050, 127
      %v1056 = vpop.permute.xlu0 %1055
      %1057 = vrot.lane.b32.xlu0 %v1051, 127
      %v1058 = vpop.permute.xlu0 %1057
      %1059 = vrot.lane.b32.xlu0 %v1052, 127
      %v1060 = vpop.permute.xlu0 %1059
      %v1061 = vsel %vm283, %v1054, %v1056
      %v1062 = vsel %vm283, %v1056, %v1058
      %v1063 = vsel %vm283, %v1058, %v1060
      %1068 = vst [vmem:[#allocation1] ss:$2 sm:$0xff] %v252
      %s1069 = scalar_lea.vmem [#allocation1], 16
      %1070 = vst [vmem:[%s1069] ss:$2 sm:$0xff] %v253
      %v1071 = vld.sshfl [vmem:[#allocation1] sm:$0xff pattern:$0x75316420]
      %v1072 = vld.sshfl [vmem:[#allocation1 + $0x8] sm:$0xff pattern:$0x75316420]
      %v1073 = vld.sshfl [vmem:[#allocation1 + $0x10] sm:$0xff pattern:$0x75316420]
      %v1074 = vld.sshfl [vmem:[#allocation1 + $0x18] sm:$0xff pattern:$0x75316420]
      %1075 = vrot.lane.b32.xlu0 %v1071, 126
      %v1076 = vpop.permute.xlu0 %1075
      %1077 = vrot.lane.b32.xlu0 %v1072, 126
      %v1078 = vpop.permute.xlu0 %1077
      %1079 = vrot.lane.b32.xlu0 %v1073, 126
      %v1080 = vpop.permute.xlu0 %1079
      %1081 = vrot.lane.b32.xlu0 %v1074, 126
      %v1082 = vpop.permute.xlu0 %1081
      %v1083 = vsel %vm306, %v1076, %v1078
      %v1084 = vsel %vm306, %v1078, %v1080
      %v1085 = vsel %vm306, %v1080, %v1082
      %s1090 = scalar_lea.vmem [#allocation1], 1
      %1091 = vst [vmem:[%s1090] ss:$2 sm:$0xff] %v252
      %s1092 = scalar_lea.vmem [#allocation1], 17
      %1093 = vst [vmem:[%s1092] ss:$2 sm:$0xff] %v253
      %v1094 = vld.sshfl [vmem:[#allocation1] sm:$0xff pattern:$0x75316420]
      %v1095 = vld.sshfl [vmem:[#allocation1 + $0x8] sm:$0xff pattern:$0x75316420]
      %v1096 = vld.sshfl [vmem:[#allocation1 + $0x10] sm:$0xff pattern:$0x75316420]
      %v1097 = vld.sshfl [vmem:[#allocation1 + $0x18] sm:$0xff pattern:$0x75316420]
      %1098 = vrot.lane.b32.xlu0 %v1094, 125
      %v1099 = vpop.permute.xlu0 %1098
      %1100 = vrot.lane.b32.xlu0 %v1095, 125
      %v1101 = vpop.permute.xlu0 %1100
      %1102 = vrot.lane.b32.xlu0 %v1096, 125
      %v1103 = vpop.permute.xlu0 %1102
      %1104 = vrot.lane.b32.xlu0 %v1097, 125
      %v1105 = vpop.permute.xlu0 %1104
      %v1106 = vsel %vm330, %v1099, %v1101
      %v1107 = vsel %vm330, %v1101, %v1103
      %v1108 = vsel %vm330, %v1103, %v1105
      %1113 = vst [vmem:[#allocation1] ss:$2 sm:$0xff] %v252
      %s1114 = scalar_lea.vmem [#allocation1], 16
      %1115 = vst [vmem:[%s1114] ss:$2 sm:$0xff] %v253
      %v1116 = vld.sshfl [vmem:[#allocation1] sm:$0xff pattern:$0x75316420]
      %v1117 = vld.sshfl [vmem:[#allocation1 + $0x8] sm:$0xff pattern:$0x75316420]
      %v1118 = vld.sshfl [vmem:[#allocation1 + $0x10] sm:$0xff pattern:$0x75316420]
      %v1119 = vld.sshfl [vmem:[#allocation1 + $0x18] sm:$0xff pattern:$0x75316420]
      %1120 = vrot.lane.b32.xlu0 %v1116, 124
      %v1121 = vpop.permute.xlu0 %1120
      %1122 = vrot.lane.b32.xlu0 %v1117, 124
      %v1123 = vpop.permute.xlu0 %1122
      %1124 = vrot.lane.b32.xlu0 %v1118, 124
      %v1125 = vpop.permute.xlu0 %1124
      %1126 = vrot.lane.b32.xlu0 %v1119, 124
      %v1127 = vpop.permute.xlu0 %1126
      %v1128 = vsel %vm353, %v1121, %v1123
      %v1129 = vsel %vm353, %v1123, %v1125
      %v1130 = vsel %vm353, %v1125, %v1127
      %s1135 = scalar_lea.vmem [#allocation1], 1
      %1136 = vst [vmem:[%s1135] ss:$2 sm:$0xff] %v252
      %s1137 = scalar_lea.vmem [#allocation1], 17
      %1138 = vst [vmem:[%s1137] ss:$2 sm:$0xff] %v253
      %v1139 = vld.sshfl [vmem:[#allocation1] sm:$0xff pattern:$0x75316420]
      %v1140 = vld.sshfl [vmem:[#allocation1 + $0x8] sm:$0xff pattern:$0x75316420]
      %v1141 = vld.sshfl [vmem:[#allocation1 + $0x10] sm:$0xff pattern:$0x75316420]
      %v1142 = vld.sshfl [vmem:[#allocation1 + $0x18] sm:$0xff pattern:$0x75316420]
      %1143 = vrot.lane.b32.xlu0 %v1139, 123
      %v1144 = vpop.permute.xlu0 %1143
      %1145 = vrot.lane.b32.xlu0 %v1140, 123
      %v1146 = vpop.permute.xlu0 %1145
      %1147 = vrot.lane.b32.xlu0 %v1141, 123
      %v1148 = vpop.permute.xlu0 %1147
      %1149 = vrot.lane.b32.xlu0 %v1142, 123
      %v1150 = vpop.permute.xlu0 %1149
      %v1151 = vsel %vm377, %v1144, %v1146
      %v1152 = vsel %vm377, %v1146, %v1148
      %v1153 = vsel %vm377, %v1148, %v1150
      %1158 = vst [vmem:[#allocation1] ss:$2 sm:$0xff] %v252
      %s1159 = scalar_lea.vmem [#allocation1], 16
      %1160 = vst [vmem:[%s1159] ss:$2 sm:$0xff] %v253
      %v1161 = vld.sshfl [vmem:[#allocation1] sm:$0xff pattern:$0x75316420]
      %v1162 = vld.sshfl [vmem:[#allocation1 + $0x8] sm:$0xff pattern:$0x75316420]
      %v1163 = vld.sshfl [vmem:[#allocation1 + $0x10] sm:$0xff pattern:$0x75316420]
      %v1164 = vld.sshfl [vmem:[#allocation1 + $0x18] sm:$0xff pattern:$0x75316420]
      %1165 = vrot.lane.b32.xlu0 %v1161, 122
      %v1166 = vpop.permute.xlu0 %1165
      %1167 = vrot.lane.b32.xlu0 %v1162, 122
      %v1168 = vpop.permute.xlu0 %1167
      %1169 = vrot.lane.b32.xlu0 %v1163, 122
      %v1170 = vpop.permute.xlu0 %1169
      %1171 = vrot.lane.b32.xlu0 %v1164, 122
      %v1172 = vpop.permute.xlu0 %1171
      %v1173 = vsel %vm400, %v1166, %v1168
      %v1174 = vsel %vm400, %v1168, %v1170
      %v1175 = vsel %vm400, %v1170, %v1172
      %s1180 = scalar_lea.vmem [#allocation1], 1
      %1181 = vst [vmem:[%s1180] ss:$2 sm:$0xff] %v252
      %s1182 = scalar_lea.vmem [#allocation1], 17
      %1183 = vst [vmem:[%s1182] ss:$2 sm:$0xff] %v253
      %v1184 = vld.sshfl [vmem:[#allocation1] sm:$0xff pattern:$0x75316420]
      %v1185 = vld.sshfl [vmem:[#allocation1 + $0x8] sm:$0xff pattern:$0x75316420]
      %v1186 = vld.sshfl [vmem:[#allocation1 + $0x10] sm:$0xff pattern:$0x75316420]
      %v1187 = vld.sshfl [vmem:[#allocation1 + $0x18] sm:$0xff pattern:$0x75316420]
      %1188 = vrot.lane.b32.xlu0 %v1184, 121
      %v1189 = vpop.permute.xlu0 %1188
      %1190 = vrot.lane.b32.xlu0 %v1185, 121
      %v1191 = vpop.permute.xlu0 %1190
      %1192 = vrot.lane.b32.xlu0 %v1186, 121
      %v1193 = vpop.permute.xlu0 %1192
      %1194 = vrot.lane.b32.xlu0 %v1187, 121
      %v1195 = vpop.permute.xlu0 %1194
      %v1196 = vsel %vm424, %v1189, %v1191
      %v1197 = vsel %vm424, %v1191, %v1193
      %v1198 = vsel %vm424, %v1193, %v1195
      %1203 = vst [vmem:[#allocation1] ss:$2 sm:$0xff] %v252
      %s1204 = scalar_lea.vmem [#allocation1], 16
      %1205 = vst [vmem:[%s1204] ss:$2 sm:$0xff] %v253
      %v1206 = vld.sshfl [vmem:[#allocation1] sm:$0xff pattern:$0x75316420]
      %v1207 = vld.sshfl [vmem:[#allocation1 + $0x8] sm:$0xff pattern:$0x75316420]
      %v1208 = vld.sshfl [vmem:[#allocation1 + $0x10] sm:$0xff pattern:$0x75316420]
      %v1209 = vld.sshfl [vmem:[#allocation1 + $0x18] sm:$0xff pattern:$0x75316420]
      %1210 = vrot.lane.b32.xlu0 %v1206, 120
      %v1211 = vpop.permute.xlu0 %1210
      %1212 = vrot.lane.b32.xlu0 %v1207, 120
      %v1213 = vpop.permute.xlu0 %1212
      %1214 = vrot.lane.b32.xlu0 %v1208, 120
      %v1215 = vpop.permute.xlu0 %1214
      %1216 = vrot.lane.b32.xlu0 %v1209, 120
      %v1217 = vpop.permute.xlu0 %1216
      %v1218 = vsel %vm447, %v1211, %v1213
      %v1219 = vsel %vm447, %v1213, %v1215
      %v1220 = vsel %vm447, %v1215, %v1217
      %s1225 = scalar_lea.vmem [#allocation1], 1
      %1226 = vst [vmem:[%s1225] ss:$2 sm:$0xff] %v252
      %s1227 = scalar_lea.vmem [#allocation1], 17
      %1228 = vst [vmem:[%s1227] ss:$2 sm:$0xff] %v253
      %v1229 = vld.sshfl [vmem:[#allocation1] sm:$0xff pattern:$0x75316420]
      %v1230 = vld.sshfl [vmem:[#allocation1 + $0x8] sm:$0xff pattern:$0x75316420]
      %v1231 = vld.sshfl [vmem:[#allocation1 + $0x10] sm:$0xff pattern:$0x75316420]
      %v1232 = vld.sshfl [vmem:[#allocation1 + $0x18] sm:$0xff pattern:$0x75316420]
      %1233 = vrot.lane.b32.xlu0 %v1229, 119
      %v1234 = vpop.permute.xlu0 %1233
      %1235 = vrot.lane.b32.xlu0 %v1230, 119
      %v1236 = vpop.permute.xlu0 %1235
      %1237 = vrot.lane.b32.xlu0 %v1231, 119
      %v1238 = vpop.permute.xlu0 %1237
      %1239 = vrot.lane.b32.xlu0 %v1232, 119
      %v1240 = vpop.permute.xlu0 %1239
      %v1241 = vsel %vm471, %v1234, %v1236
      %v1242 = vsel %vm471, %v1236, %v1238
      %v1243 = vsel %vm471, %v1238, %v1240
      %1248 = vst [vmem:[#allocation1] ss:$2 sm:$0xff] %v252
      %s1249 = scalar_lea.vmem [#allocation1], 16
      %1250 = vst [vmem:[%s1249] ss:$2 sm:$0xff] %v253
      %v1251 = vld.sshfl [vmem:[#allocation1] sm:$0xff pattern:$0x75316420]
      %v1252 = vld.sshfl [vmem:[#allocation1 + $0x8] sm:$0xff pattern:$0x75316420]
      %v1253 = vld.sshfl [vmem:[#allocation1 + $0x10] sm:$0xff pattern:$0x75316420]
      %v1254 = vld.sshfl [vmem:[#allocation1 + $0x18] sm:$0xff pattern:$0x75316420]
      %1255 = vrot.lane.b32.xlu0 %v1251, 118
      %v1256 = vpop.permute.xlu0 %1255
      %1257 = vrot.lane.b32.xlu0 %v1252, 118
      %v1258 = vpop.permute.xlu0 %1257
      %1259 = vrot.lane.b32.xlu0 %v1253, 118
      %v1260 = vpop.permute.xlu0 %1259
      %1261 = vrot.lane.b32.xlu0 %v1254, 118
      %v1262 = vpop.permute.xlu0 %1261
      %v1263 = vsel %vm494, %v1256, %v1258
      %v1264 = vsel %vm494, %v1258, %v1260
      %v1265 = vsel %vm494, %v1260, %v1262
      %s1270 = scalar_lea.vmem [#allocation1], 1
      %1271 = vst [vmem:[%s1270] ss:$2 sm:$0xff] %v252
      %s1272 = scalar_lea.vmem [#allocation1], 17
      %1273 = vst [vmem:[%s1272] ss:$2 sm:$0xff] %v253
      %v1274 = vld.sshfl [vmem:[#allocation1] sm:$0xff pattern:$0x75316420]
      %v1275 = vld.sshfl [vmem:[#allocation1 + $0x8] sm:$0xff pattern:$0x75316420]
      %v1276 = vld.sshfl [vmem:[#allocation1 + $0x10] sm:$0xff pattern:$0x75316420]
      %v1277 = vld.sshfl [vmem:[#allocation1 + $0x18] sm:$0xff pattern:$0x75316420]
      %1278 = vrot.lane.b32.xlu0 %v1274, 117
      %v1279 = vpop.permute.xlu0 %1278
      %1280 = vrot.lane.b32.xlu0 %v1275, 117
      %v1281 = vpop.permute.xlu0 %1280
      %1282 = vrot.lane.b32.xlu0 %v1276, 117
      %v1283 = vpop.permute.xlu0 %1282
      %1284 = vrot.lane.b32.xlu0 %v1277, 117
      %v1285 = vpop.permute.xlu0 %1284
      %v1286 = vsel %vm518, %v1279, %v1281
      %v1287 = vsel %vm518, %v1281, %v1283
      %v1288 = vsel %vm518, %v1283, %v1285
      %1293 = vst [vmem:[#allocation1] ss:$2 sm:$0xff] %v252
      %s1294 = scalar_lea.vmem [#allocation1], 16
      %1295 = vst [vmem:[%s1294] ss:$2 sm:$0xff] %v253
      %v1296 = vld.sshfl [vmem:[#allocation1] sm:$0xff pattern:$0x75316420]
      %v1297 = vld.sshfl [vmem:[#allocation1 + $0x8] sm:$0xff pattern:$0x75316420]
      %v1298 = vld.sshfl [vmem:[#allocation1 + $0x10] sm:$0xff pattern:$0x75316420]
      %v1299 = vld.sshfl [vmem:[#allocation1 + $0x18] sm:$0xff pattern:$0x75316420]
      %1300 = vrot.lane.b32.xlu0 %v1296, 116
      %v1301 = vpop.permute.xlu0 %1300
      %1302 = vrot.lane.b32.xlu0 %v1297, 116
      %v1303 = vpop.permute.xlu0 %1302
      %1304 = vrot.lane.b32.xlu0 %v1298, 116
      %v1305 = vpop.permute.xlu0 %1304
      %1306 = vrot.lane.b32.xlu0 %v1299, 116
      %v1307 = vpop.permute.xlu0 %1306
      %v1308 = vsel %vm541, %v1301, %v1303
      %v1309 = vsel %vm541, %v1303, %v1305
      %v1310 = vsel %vm541, %v1305, %v1307
      %s1315 = scalar_lea.vmem [#allocation1], 1
      %1316 = vst [vmem:[%s1315] ss:$2 sm:$0xff] %v252
      %s1317 = scalar_lea.vmem [#allocation1], 17
      %1318 = vst [vmem:[%s1317] ss:$2 sm:$0xff] %v253
      %v1319 = vld.sshfl [vmem:[#allocation1] sm:$0xff pattern:$0x75316420]
      %v1320 = vld.sshfl [vmem:[#allocation1 + $0x8] sm:$0xff pattern:$0x75316420]
      %v1321 = vld.sshfl [vmem:[#allocation1 + $0x10] sm:$0xff pattern:$0x75316420]
      %v1322 = vld.sshfl [vmem:[#allocation1 + $0x18] sm:$0xff pattern:$0x75316420]
      %1323 = vrot.lane.b32.xlu0 %v1319, 115
      %v1324 = vpop.permute.xlu0 %1323
      %1325 = vrot.lane.b32.xlu0 %v1320, 115
      %v1326 = vpop.permute.xlu0 %1325
      %1327 = vrot.lane.b32.xlu0 %v1321, 115
      %v1328 = vpop.permute.xlu0 %1327
      %1329 = vrot.lane.b32.xlu0 %v1322, 115
      %v1330 = vpop.permute.xlu0 %1329
      %v1331 = vsel %vm565, %v1324, %v1326
      %v1332 = vsel %vm565, %v1326, %v1328
      %v1333 = vsel %vm565, %v1328, %v1330
      %1338 = vst [vmem:[#allocation1] ss:$2 sm:$0xff] %v252
      %s1339 = scalar_lea.vmem [#allocation1], 16
      %1340 = vst [vmem:[%s1339] ss:$2 sm:$0xff] %v253
      %v1341 = vld.sshfl [vmem:[#allocation1] sm:$0xff pattern:$0x75316420]
      %v1342 = vld.sshfl [vmem:[#allocation1 + $0x8] sm:$0xff pattern:$0x75316420]
      %v1343 = vld.sshfl [vmem:[#allocation1 + $0x10] sm:$0xff pattern:$0x75316420]
      %v1344 = vld.sshfl [vmem:[#allocation1 + $0x18] sm:$0xff pattern:$0x75316420]
      %1345 = vrot.lane.b32.xlu0 %v1341, 114
      %v1346 = vpop.permute.xlu0 %1345
      %1347 = vrot.lane.b32.xlu0 %v1342, 114
      %v1348 = vpop.permute.xlu0 %1347
      %1349 = vrot.lane.b32.xlu0 %v1343, 114
      %v1350 = vpop.permute.xlu0 %1349
      %1351 = vrot.lane.b32.xlu0 %v1344, 114
      %v1352 = vpop.permute.xlu0 %1351
      %v1353 = vsel %vm588, %v1346, %v1348
      %v1354 = vsel %vm588, %v1348, %v1350
      %v1355 = vsel %vm588, %v1350, %v1352
      %s1360 = scalar_lea.vmem [#allocation1], 1
      %1361 = vst [vmem:[%s1360] ss:$2 sm:$0xff] %v252
      %s1362 = scalar_lea.vmem [#allocation1], 17
      %1363 = vst [vmem:[%s1362] ss:$2 sm:$0xff] %v253
      %v1364 = vld.sshfl [vmem:[#allocation1] sm:$0xff pattern:$0x75316420]
      %v1365 = vld.sshfl [vmem:[#allocation1 + $0x8] sm:$0xff pattern:$0x75316420]
      %v1366 = vld.sshfl [vmem:[#allocation1 + $0x10] sm:$0xff pattern:$0x75316420]
      %v1367 = vld.sshfl [vmem:[#allocation1 + $0x18] sm:$0xff pattern:$0x75316420]
      %1368 = vrot.lane.b32.xlu0 %v1364, 113
      %v1369 = vpop.permute.xlu0 %1368
      %1370 = vrot.lane.b32.xlu0 %v1365, 113
      %v1371 = vpop.permute.xlu0 %1370
      %1372 = vrot.lane.b32.xlu0 %v1366, 113
      %v1373 = vpop.permute.xlu0 %1372
      %1374 = vrot.lane.b32.xlu0 %v1367, 113
      %v1375 = vpop.permute.xlu0 %1374
      %v1376 = vsel %vm612, %v1369, %v1371
      %v1377 = vsel %vm612, %v1371, %v1373
      %v1378 = vsel %vm612, %v1373, %v1375
      %v1383 = vsel %vm620, %v1037, %v1061
      %v1384 = vsel %vm620, %v1038, %v1062
      %v1385 = vsel %vm620, %v1039, %v1063
      %v1386 = vsel %vm620, %v1040, %v1060
      %v1387 = vsel %vm620, %v1083, %v1106
      %v1388 = vsel %vm620, %v1084, %v1107
      %v1389 = vsel %vm620, %v1085, %v1108
      %v1390 = vsel %vm620, %v1082, %v1105
      %v1391 = vsel %vm620, %v1128, %v1151
      %v1392 = vsel %vm620, %v1129, %v1152
      %v1393 = vsel %vm620, %v1130, %v1153
      %v1394 = vsel %vm620, %v1127, %v1150
      %v1395 = vsel %vm620, %v1173, %v1196
      %v1396 = vsel %vm620, %v1174, %v1197
      %v1397 = vsel %vm620, %v1175, %v1198
      %v1398 = vsel %vm620, %v1172, %v1195
      %v1399 = vsel %vm620, %v1218, %v1241
      %v1400 = vsel %vm620, %v1219, %v1242
      %v1401 = vsel %vm620, %v1220, %v1243
      %v1402 = vsel %vm620, %v1217, %v1240
      %v1403 = vsel %vm620, %v1263, %v1286
      %v1404 = vsel %vm620, %v1264, %v1287
      %v1405 = vsel %vm620, %v1265, %v1288
      %v1406 = vsel %vm620, %v1262, %v1285
      %v1407 = vsel %vm620, %v1308, %v1331
      %v1408 = vsel %vm620, %v1309, %v1332
      %v1409 = vsel %vm620, %v1310, %v1333
      %v1410 = vsel %vm620, %v1307, %v1330
      %v1411 = vsel %vm620, %v1353, %v1376
      %v1412 = vsel %vm620, %v1354, %v1377
      %v1413 = vsel %vm620, %v1355, %v1378
      %v1414 = vsel %vm620, %v1352, %v1375
      %1415 = vst [vmem:[#allocation1] ss:$2 sm:$0xff] %v252
      %s1416 = scalar_lea.vmem [#allocation1], 16
      %1417 = vst [vmem:[%s1416] ss:$2 sm:$0xff] %v253
      %v1418 = vld.sshfl [vmem:[#allocation1] sm:$0xff pattern:$0x75316420]
      %v1419 = vld.sshfl [vmem:[#allocation1 + $0x8] sm:$0xff pattern:$0x75316420]
      %v1420 = vld.sshfl [vmem:[#allocation1 + $0x10] sm:$0xff pattern:$0x75316420]
      %v1421 = vld.sshfl [vmem:[#allocation1 + $0x18] sm:$0xff pattern:$0x75316420]
      %s1426 = scalar_lea.vmem [#allocation1], 1
      %1427 = vst [vmem:[%s1426] ss:$2 sm:$0xff] %v252
      %s1428 = scalar_lea.vmem [#allocation1], 17
      %1429 = vst [vmem:[%s1428] ss:$2 sm:$0xff] %v253
      %v1430 = vld.sshfl [vmem:[#allocation1] sm:$0xff pattern:$0x75316420]
      %v1431 = vld.sshfl [vmem:[#allocation1 + $0x8] sm:$0xff pattern:$0x75316420]
      %v1432 = vld.sshfl [vmem:[#allocation1 + $0x10] sm:$0xff pattern:$0x75316420]
      %v1433 = vld.sshfl [vmem:[#allocation1 + $0x18] sm:$0xff pattern:$0x75316420]
      %1434 = vrot.lane.b32.xlu0 %v1430, 127
      %v1435 = vpop.permute.xlu0 %1434
      %1436 = vrot.lane.b32.xlu0 %v1431, 127
      %v1437 = vpop.permute.xlu0 %1436
      %1438 = vrot.lane.b32.xlu0 %v1432, 127
      %v1439 = vpop.permute.xlu0 %1438
      %1440 = vrot.lane.b32.xlu0 %v1433, 127
      %v1441 = vpop.permute.xlu0 %1440
      %v1442 = vsel %vm283, %v1435, %v1437
      %v1443 = vsel %vm283, %v1437, %v1439
      %v1444 = vsel %vm283, %v1439, %v1441
      %1449 = vst [vmem:[#allocation1] ss:$2 sm:$0xff] %v252
      %s1450 = scalar_lea.vmem [#allocation1], 16
      %1451 = vst [vmem:[%s1450] ss:$2 sm:$0xff] %v253
      %v1452 = vld.sshfl [vmem:[#allocation1] sm:$0xff pattern:$0x75316420]
      %v1453 = vld.sshfl [vmem:[#allocation1 + $0x8] sm:$0xff pattern:$0x75316420]
      %v1454 = vld.sshfl [vmem:[#allocation1 + $0x10] sm:$0xff pattern:$0x75316420]
      %v1455 = vld.sshfl [vmem:[#allocation1 + $0x18] sm:$0xff pattern:$0x75316420]
      %1456 = vrot.lane.b32.xlu0 %v1452, 126
      %v1457 = vpop.permute.xlu0 %1456
      %1458 = vrot.lane.b32.xlu0 %v1453, 126
      %v1459 = vpop.permute.xlu0 %1458
      %1460 = vrot.lane.b32.xlu0 %v1454, 126
      %v1461 = vpop.permute.xlu0 %1460
      %1462 = vrot.lane.b32.xlu0 %v1455, 126
      %v1463 = vpop.permute.xlu0 %1462
      %v1464 = vsel %vm306, %v1457, %v1459
      %v1465 = vsel %vm306, %v1459, %v1461
      %v1466 = vsel %vm306, %v1461, %v1463
      %s1471 = scalar_lea.vmem [#allocation1], 1
      %1472 = vst [vmem:[%s1471] ss:$2 sm:$0xff] %v252
      %s1473 = scalar_lea.vmem [#allocation1], 17
      %1474 = vst [vmem:[%s1473] ss:$2 sm:$0xff] %v253
      %v1475 = vld.sshfl [vmem:[#allocation1] sm:$0xff pattern:$0x75316420]
      %v1476 = vld.sshfl [vmem:[#allocation1 + $0x8] sm:$0xff pattern:$0x75316420]
      %v1477 = vld.sshfl [vmem:[#allocation1 + $0x10] sm:$0xff pattern:$0x75316420]
      %v1478 = vld.sshfl [vmem:[#allocation1 + $0x18] sm:$0xff pattern:$0x75316420]
      %1479 = vrot.lane.b32.xlu0 %v1475, 125
      %v1480 = vpop.permute.xlu0 %1479
      %1481 = vrot.lane.b32.xlu0 %v1476, 125
      %v1482 = vpop.permute.xlu0 %1481
      %1483 = vrot.lane.b32.xlu0 %v1477, 125
      %v1484 = vpop.permute.xlu0 %1483
      %1485 = vrot.lane.b32.xlu0 %v1478, 125
      %v1486 = vpop.permute.xlu0 %1485
      %v1487 = vsel %vm330, %v1480, %v1482
      %v1488 = vsel %vm330, %v1482, %v1484
      %v1489 = vsel %vm330, %v1484, %v1486
      %1494 = vst [vmem:[#allocation1] ss:$2 sm:$0xff] %v252
      %s1495 = scalar_lea.vmem [#allocation1], 16
      %1496 = vst [vmem:[%s1495] ss:$2 sm:$0xff] %v253
      %v1497 = vld.sshfl [vmem:[#allocation1] sm:$0xff pattern:$0x75316420]
      %v1498 = vld.sshfl [vmem:[#allocation1 + $0x8] sm:$0xff pattern:$0x75316420]
      %v1499 = vld.sshfl [vmem:[#allocation1 + $0x10] sm:$0xff pattern:$0x75316420]
      %v1500 = vld.sshfl [vmem:[#allocation1 + $0x18] sm:$0xff pattern:$0x75316420]
      %1501 = vrot.lane.b32.xlu0 %v1497, 124
      %v1502 = vpop.permute.xlu0 %1501
      %1503 = vrot.lane.b32.xlu0 %v1498, 124
      %v1504 = vpop.permute.xlu0 %1503
      %1505 = vrot.lane.b32.xlu0 %v1499, 124
      %v1506 = vpop.permute.xlu0 %1505
      %1507 = vrot.lane.b32.xlu0 %v1500, 124
      %v1508 = vpop.permute.xlu0 %1507
      %v1509 = vsel %vm353, %v1502, %v1504
      %v1510 = vsel %vm353, %v1504, %v1506
      %v1511 = vsel %vm353, %v1506, %v1508
      %s1516 = scalar_lea.vmem [#allocation1], 1
      %1517 = vst [vmem:[%s1516] ss:$2 sm:$0xff] %v252
      %s1518 = scalar_lea.vmem [#allocation1], 17
      %1519 = vst [vmem:[%s1518] ss:$2 sm:$0xff] %v253
      %v1520 = vld.sshfl [vmem:[#allocation1] sm:$0xff pattern:$0x75316420]
      %v1521 = vld.sshfl [vmem:[#allocation1 + $0x8] sm:$0xff pattern:$0x75316420]
      %v1522 = vld.sshfl [vmem:[#allocation1 + $0x10] sm:$0xff pattern:$0x75316420]
      %v1523 = vld.sshfl [vmem:[#allocation1 + $0x18] sm:$0xff pattern:$0x75316420]
      %1524 = vrot.lane.b32.xlu0 %v1520, 123
      %v1525 = vpop.permute.xlu0 %1524
      %1526 = vrot.lane.b32.xlu0 %v1521, 123
      %v1527 = vpop.permute.xlu0 %1526
      %1528 = vrot.lane.b32.xlu0 %v1522, 123
      %v1529 = vpop.permute.xlu0 %1528
      %1530 = vrot.lane.b32.xlu0 %v1523, 123
      %v1531 = vpop.permute.xlu0 %1530
      %v1532 = vsel %vm377, %v1525, %v1527
      %v1533 = vsel %vm377, %v1527, %v1529
      %v1534 = vsel %vm377, %v1529, %v1531
      %1539 = vst [vmem:[#allocation1] ss:$2 sm:$0xff] %v252
      %s1540 = scalar_lea.vmem [#allocation1], 16
      %1541 = vst [vmem:[%s1540] ss:$2 sm:$0xff] %v253
      %v1542 = vld.sshfl [vmem:[#allocation1] sm:$0xff pattern:$0x75316420]
      %v1543 = vld.sshfl [vmem:[#allocation1 + $0x8] sm:$0xff pattern:$0x75316420]
      %v1544 = vld.sshfl [vmem:[#allocation1 + $0x10] sm:$0xff pattern:$0x75316420]
      %v1545 = vld.sshfl [vmem:[#allocation1 + $0x18] sm:$0xff pattern:$0x75316420]
      %1546 = vrot.lane.b32.xlu0 %v1542, 122
      %v1547 = vpop.permute.xlu0 %1546
      %1548 = vrot.lane.b32.xlu0 %v1543, 122
      %v1549 = vpop.permute.xlu0 %1548
      %1550 = vrot.lane.b32.xlu0 %v1544, 122
      %v1551 = vpop.permute.xlu0 %1550
      %1552 = vrot.lane.b32.xlu0 %v1545, 122
      %v1553 = vpop.permute.xlu0 %1552
      %v1554 = vsel %vm400, %v1547, %v1549
      %v1555 = vsel %vm400, %v1549, %v1551
      %v1556 = vsel %vm400, %v1551, %v1553
      %s1561 = scalar_lea.vmem [#allocation1], 1
      %1562 = vst [vmem:[%s1561] ss:$2 sm:$0xff] %v252
      %s1563 = scalar_lea.vmem [#allocation1], 17
      %1564 = vst [vmem:[%s1563] ss:$2 sm:$0xff] %v253
      %v1565 = vld.sshfl [vmem:[#allocation1] sm:$0xff pattern:$0x75316420]
      %v1566 = vld.sshfl [vmem:[#allocation1 + $0x8] sm:$0xff pattern:$0x75316420]
      %v1567 = vld.sshfl [vmem:[#allocation1 + $0x10] sm:$0xff pattern:$0x75316420]
      %v1568 = vld.sshfl [vmem:[#allocation1 + $0x18] sm:$0xff pattern:$0x75316420]
      %1569 = vrot.lane.b32.xlu0 %v1565, 121
      %v1570 = vpop.permute.xlu0 %1569
      %1571 = vrot.lane.b32.xlu0 %v1566, 121
      %v1572 = vpop.permute.xlu0 %1571
      %1573 = vrot.lane.b32.xlu0 %v1567, 121
      %v1574 = vpop.permute.xlu0 %1573
      %1575 = vrot.lane.b32.xlu0 %v1568, 121
      %v1576 = vpop.permute.xlu0 %1575
      %v1577 = vsel %vm424, %v1570, %v1572
      %v1578 = vsel %vm424, %v1572, %v1574
      %v1579 = vsel %vm424, %v1574, %v1576
      %1584 = vst [vmem:[#allocation1] ss:$2 sm:$0xff] %v252
      %s1585 = scalar_lea.vmem [#allocation1], 16
      %1586 = vst [vmem:[%s1585] ss:$2 sm:$0xff] %v253
      %v1587 = vld.sshfl [vmem:[#allocation1] sm:$0xff pattern:$0x75316420]
      %v1588 = vld.sshfl [vmem:[#allocation1 + $0x8] sm:$0xff pattern:$0x75316420]
      %v1589 = vld.sshfl [vmem:[#allocation1 + $0x10] sm:$0xff pattern:$0x75316420]
      %v1590 = vld.sshfl [vmem:[#allocation1 + $0x18] sm:$0xff pattern:$0x75316420]
      %1591 = vrot.lane.b32.xlu0 %v1587, 120
      %v1592 = vpop.permute.xlu0 %1591
      %1593 = vrot.lane.b32.xlu0 %v1588, 120
      %v1594 = vpop.permute.xlu0 %1593
      %1595 = vrot.lane.b32.xlu0 %v1589, 120
      %v1596 = vpop.permute.xlu0 %1595
      %1597 = vrot.lane.b32.xlu0 %v1590, 120
      %v1598 = vpop.permute.xlu0 %1597
      %v1599 = vsel %vm447, %v1592, %v1594
      %v1600 = vsel %vm447, %v1594, %v1596
      %v1601 = vsel %vm447, %v1596, %v1598
      %s1606 = scalar_lea.vmem [#allocation1], 1
      %1607 = vst [vmem:[%s1606] ss:$2 sm:$0xff] %v252
      %s1608 = scalar_lea.vmem [#allocation1], 17
      %1609 = vst [vmem:[%s1608] ss:$2 sm:$0xff] %v253
      %v1610 = vld.sshfl [vmem:[#allocation1] sm:$0xff pattern:$0x75316420]
      %v1611 = vld.sshfl [vmem:[#allocation1 + $0x8] sm:$0xff pattern:$0x75316420]
      %v1612 = vld.sshfl [vmem:[#allocation1 + $0x10] sm:$0xff pattern:$0x75316420]
      %v1613 = vld.sshfl [vmem:[#allocation1 + $0x18] sm:$0xff pattern:$0x75316420]
      %1614 = vrot.lane.b32.xlu0 %v1610, 119
      %v1615 = vpop.permute.xlu0 %1614
      %1616 = vrot.lane.b32.xlu0 %v1611, 119
      %v1617 = vpop.permute.xlu0 %1616
      %1618 = vrot.lane.b32.xlu0 %v1612, 119
      %v1619 = vpop.permute.xlu0 %1618
      %1620 = vrot.lane.b32.xlu0 %v1613, 119
      %v1621 = vpop.permute.xlu0 %1620
      %v1622 = vsel %vm471, %v1615, %v1617
      %v1623 = vsel %vm471, %v1617, %v1619
      %v1624 = vsel %vm471, %v1619, %v1621
      %1629 = vst [vmem:[#allocation1] ss:$2 sm:$0xff] %v252
      %s1630 = scalar_lea.vmem [#allocation1], 16
      %1631 = vst [vmem:[%s1630] ss:$2 sm:$0xff] %v253
      %v1632 = vld.sshfl [vmem:[#allocation1] sm:$0xff pattern:$0x75316420]
      %v1633 = vld.sshfl [vmem:[#allocation1 + $0x8] sm:$0xff pattern:$0x75316420]
      %v1634 = vld.sshfl [vmem:[#allocation1 + $0x10] sm:$0xff pattern:$0x75316420]
      %v1635 = vld.sshfl [vmem:[#allocation1 + $0x18] sm:$0xff pattern:$0x75316420]
      %1636 = vrot.lane.b32.xlu0 %v1632, 118
      %v1637 = vpop.permute.xlu0 %1636
      %1638 = vrot.lane.b32.xlu0 %v1633, 118
      %v1639 = vpop.permute.xlu0 %1638
      %1640 = vrot.lane.b32.xlu0 %v1634, 118
      %v1641 = vpop.permute.xlu0 %1640
      %1642 = vrot.lane.b32.xlu0 %v1635, 118
      %v1643 = vpop.permute.xlu0 %1642
      %v1644 = vsel %vm494, %v1637, %v1639
      %v1645 = vsel %vm494, %v1639, %v1641
      %v1646 = vsel %vm494, %v1641, %v1643
      %s1651 = scalar_lea.vmem [#allocation1], 1
      %1652 = vst [vmem:[%s1651] ss:$2 sm:$0xff] %v252
      %s1653 = scalar_lea.vmem [#allocation1], 17
      %1654 = vst [vmem:[%s1653] ss:$2 sm:$0xff] %v253
      %v1655 = vld.sshfl [vmem:[#allocation1] sm:$0xff pattern:$0x75316420]
      %v1656 = vld.sshfl [vmem:[#allocation1 + $0x8] sm:$0xff pattern:$0x75316420]
      %v1657 = vld.sshfl [vmem:[#allocation1 + $0x10] sm:$0xff pattern:$0x75316420]
      %v1658 = vld.sshfl [vmem:[#allocation1 + $0x18] sm:$0xff pattern:$0x75316420]
      %1659 = vrot.lane.b32.xlu0 %v1655, 117
      %v1660 = vpop.permute.xlu0 %1659
      %1661 = vrot.lane.b32.xlu0 %v1656, 117
      %v1662 = vpop.permute.xlu0 %1661
      %1663 = vrot.lane.b32.xlu0 %v1657, 117
      %v1664 = vpop.permute.xlu0 %1663
      %1665 = vrot.lane.b32.xlu0 %v1658, 117
      %v1666 = vpop.permute.xlu0 %1665
      %v1667 = vsel %vm518, %v1660, %v1662
      %v1668 = vsel %vm518, %v1662, %v1664
      %v1669 = vsel %vm518, %v1664, %v1666
      %1674 = vst [vmem:[#allocation1] ss:$2 sm:$0xff] %v252
      %s1675 = scalar_lea.vmem [#allocation1], 16
      %1676 = vst [vmem:[%s1675] ss:$2 sm:$0xff] %v253
      %v1677 = vld.sshfl [vmem:[#allocation1] sm:$0xff pattern:$0x75316420]
      %v1678 = vld.sshfl [vmem:[#allocation1 + $0x8] sm:$0xff pattern:$0x75316420]
      %v1679 = vld.sshfl [vmem:[#allocation1 + $0x10] sm:$0xff pattern:$0x75316420]
      %v1680 = vld.sshfl [vmem:[#allocation1 + $0x18] sm:$0xff pattern:$0x75316420]
      %1681 = vrot.lane.b32.xlu0 %v1677, 116
      %v1682 = vpop.permute.xlu0 %1681
      %1683 = vrot.lane.b32.xlu0 %v1678, 116
      %v1684 = vpop.permute.xlu0 %1683
      %1685 = vrot.lane.b32.xlu0 %v1679, 116
      %v1686 = vpop.permute.xlu0 %1685
      %1687 = vrot.lane.b32.xlu0 %v1680, 116
      %v1688 = vpop.permute.xlu0 %1687
      %v1689 = vsel %vm541, %v1682, %v1684
      %v1690 = vsel %vm541, %v1684, %v1686
      %v1691 = vsel %vm541, %v1686, %v1688
      %s1696 = scalar_lea.vmem [#allocation1], 1
      %1697 = vst [vmem:[%s1696] ss:$2 sm:$0xff] %v252
      %s1698 = scalar_lea.vmem [#allocation1], 17
      %1699 = vst [vmem:[%s1698] ss:$2 sm:$0xff] %v253
      %v1700 = vld.sshfl [vmem:[#allocation1] sm:$0xff pattern:$0x75316420]
      %v1701 = vld.sshfl [vmem:[#allocation1 + $0x8] sm:$0xff pattern:$0x75316420]
      %v1702 = vld.sshfl [vmem:[#allocation1 + $0x10] sm:$0xff pattern:$0x75316420]
      %v1703 = vld.sshfl [vmem:[#allocation1 + $0x18] sm:$0xff pattern:$0x75316420]
      %1704 = vrot.lane.b32.xlu0 %v1700, 115
      %v1705 = vpop.permute.xlu0 %1704
      %1706 = vrot.lane.b32.xlu0 %v1701, 115
      %v1707 = vpop.permute.xlu0 %1706
      %1708 = vrot.lane.b32.xlu0 %v1702, 115
      %v1709 = vpop.permute.xlu0 %1708
      %1710 = vrot.lane.b32.xlu0 %v1703, 115
      %v1711 = vpop.permute.xlu0 %1710
      %v1712 = vsel %vm565, %v1705, %v1707
      %v1713 = vsel %vm565, %v1707, %v1709
      %v1714 = vsel %vm565, %v1709, %v1711
      %1719 = vst [vmem:[#allocation1] ss:$2 sm:$0xff] %v252
      %s1720 = scalar_lea.vmem [#allocation1], 16
      %1721 = vst [vmem:[%s1720] ss:$2 sm:$0xff] %v253
      %v1722 = vld.sshfl [vmem:[#allocation1] sm:$0xff pattern:$0x75316420]
      %v1723 = vld.sshfl [vmem:[#allocation1 + $0x8] sm:$0xff pattern:$0x75316420]
      %v1724 = vld.sshfl [vmem:[#allocation1 + $0x10] sm:$0xff pattern:$0x75316420]
      %v1725 = vld.sshfl [vmem:[#allocation1 + $0x18] sm:$0xff pattern:$0x75316420]
      %1726 = vrot.lane.b32.xlu0 %v1722, 114
      %v1727 = vpop.permute.xlu0 %1726
      %1728 = vrot.lane.b32.xlu0 %v1723, 114
      %v1729 = vpop.permute.xlu0 %1728
      %1730 = vrot.lane.b32.xlu0 %v1724, 114
      %v1731 = vpop.permute.xlu0 %1730
      %1732 = vrot.lane.b32.xlu0 %v1725, 114
      %v1733 = vpop.permute.xlu0 %1732
      %v1734 = vsel %vm588, %v1727, %v1729
      %v1735 = vsel %vm588, %v1729, %v1731
      %v1736 = vsel %vm588, %v1731, %v1733
      %s1741 = scalar_lea.vmem [#allocation1], 1
      %1742 = vst [vmem:[%s1741] ss:$2 sm:$0xff] %v252
      %s1743 = scalar_lea.vmem [#allocation1], 17
      %1744 = vst [vmem:[%s1743] ss:$2 sm:$0xff] %v253
      %v1745 = vld.sshfl [vmem:[#allocation1] sm:$0xff pattern:$0x75316420]
      %v1746 = vld.sshfl [vmem:[#allocation1 + $0x8] sm:$0xff pattern:$0x75316420]
      %v1747 = vld.sshfl [vmem:[#allocation1 + $0x10] sm:$0xff pattern:$0x75316420]
      %v1748 = vld.sshfl [vmem:[#allocation1 + $0x18] sm:$0xff pattern:$0x75316420]
      %1749 = vrot.lane.b32.xlu0 %v1745, 113
      %v1750 = vpop.permute.xlu0 %1749
      %1751 = vrot.lane.b32.xlu0 %v1746, 113
      %v1752 = vpop.permute.xlu0 %1751
      %1753 = vrot.lane.b32.xlu0 %v1747, 113
      %v1754 = vpop.permute.xlu0 %1753
      %1755 = vrot.lane.b32.xlu0 %v1748, 113
      %v1756 = vpop.permute.xlu0 %1755
      %v1757 = vsel %vm612, %v1750, %v1752
      %v1758 = vsel %vm612, %v1752, %v1754
      %v1759 = vsel %vm612, %v1754, %v1756
      %v1764 = vsel %vm620, %v1418, %v1442
      %v1765 = vsel %vm620, %v1419, %v1443
      %v1766 = vsel %vm620, %v1420, %v1444
      %v1767 = vsel %vm620, %v1421, %v1441
      %v1768 = vsel %vm620, %v1464, %v1487
      %v1769 = vsel %vm620, %v1465, %v1488
      %v1770 = vsel %vm620, %v1466, %v1489
      %v1771 = vsel %vm620, %v1463, %v1486
      %v1772 = vsel %vm620, %v1509, %v1532
      %v1773 = vsel %vm620, %v1510, %v1533
      %v1774 = vsel %vm620, %v1511, %v1534
      %v1775 = vsel %vm620, %v1508, %v1531
      %v1776 = vsel %vm620, %v1554, %v1577
      %v1777 = vsel %vm620, %v1555, %v1578
      %v1778 = vsel %vm620, %v1556, %v1579
      %v1779 = vsel %vm620, %v1553, %v1576
      %v1780 = vsel %vm620, %v1599, %v1622
      %v1781 = vsel %vm620, %v1600, %v1623
      %v1782 = vsel %vm620, %v1601, %v1624
      %v1783 = vsel %vm620, %v1598, %v1621
      %v1784 = vsel %vm620, %v1644, %v1667
      %v1785 = vsel %vm620, %v1645, %v1668
      %v1786 = vsel %vm620, %v1646, %v1669
      %v1787 = vsel %vm620, %v1643, %v1666
      %v1788 = vsel %vm620, %v1689, %v1712
      %v1789 = vsel %vm620, %v1690, %v1713
      %v1790 = vsel %vm620, %v1691, %v1714
      %v1791 = vsel %vm620, %v1688, %v1711
      %v1792 = vsel %vm620, %v1734, %v1757
      %v1793 = vsel %vm620, %v1735, %v1758
      %v1794 = vsel %vm620, %v1736, %v1759
      %v1795 = vsel %vm620, %v1733, %v1756
      %1828 = vrot.lane.b32.xlu0 %v1002, 112
      %v1829 = vpop.permute.xlu0 %1828
      %1830 = vrot.lane.b32.xlu0 %v1003, 112
      %v1831 = vpop.permute.xlu0 %1830
      %1832 = vrot.lane.b32.xlu0 %v1004, 112
      %v1833 = vpop.permute.xlu0 %1832
      %1834 = vrot.lane.b32.xlu0 %v1005, 112
      %v1835 = vpop.permute.xlu0 %1834
      %1836 = vrot.lane.b32.xlu0 %v1006, 112
      %v1837 = vpop.permute.xlu0 %1836
      %1838 = vrot.lane.b32.xlu0 %v1007, 112
      %v1839 = vpop.permute.xlu0 %1838
      %1840 = vrot.lane.b32.xlu0 %v1008, 112
      %v1841 = vpop.permute.xlu0 %1840
      %1842 = vrot.lane.b32.xlu0 %v1009, 112
      %v1843 = vpop.permute.xlu0 %1842
      %1844 = vrot.lane.b32.xlu0 %v1010, 112
      %v1845 = vpop.permute.xlu0 %1844
      %1846 = vrot.lane.b32.xlu0 %v1011, 112
      %v1847 = vpop.permute.xlu0 %1846
      %1848 = vrot.lane.b32.xlu0 %v1012, 112
      %v1849 = vpop.permute.xlu0 %1848
      %1850 = vrot.lane.b32.xlu0 %v1013, 112
      %v1851 = vpop.permute.xlu0 %1850
      %1852 = vrot.lane.b32.xlu0 %v1014, 112
      %v1853 = vpop.permute.xlu0 %1852
      %1854 = vrot.lane.b32.xlu0 %v1015, 112
      %v1855 = vpop.permute.xlu0 %1854
      %1856 = vrot.lane.b32.xlu0 %v1016, 112
      %v1857 = vpop.permute.xlu0 %1856
      %1858 = vrot.lane.b32.xlu0 %v1017, 112
      %v1859 = vpop.permute.xlu0 %1858
      %1860 = vrot.lane.b32.xlu0 %v1018, 112
      %v1861 = vpop.permute.xlu0 %1860
      %1862 = vrot.lane.b32.xlu0 %v1019, 112
      %v1863 = vpop.permute.xlu0 %1862
      %1864 = vrot.lane.b32.xlu0 %v1020, 112
      %v1865 = vpop.permute.xlu0 %1864
      %1866 = vrot.lane.b32.xlu0 %v1021, 112
      %v1867 = vpop.permute.xlu0 %1866
      %1868 = vrot.lane.b32.xlu0 %v1022, 112
      %v1869 = vpop.permute.xlu0 %1868
      %1870 = vrot.lane.b32.xlu0 %v1023, 112
      %v1871 = vpop.permute.xlu0 %1870
      %1872 = vrot.lane.b32.xlu0 %v1024, 112
      %v1873 = vpop.permute.xlu0 %1872
      %1874 = vrot.lane.b32.xlu0 %v1025, 112
      %v1875 = vpop.permute.xlu0 %1874
      %1876 = vrot.lane.b32.xlu0 %v1026, 112
      %v1877 = vpop.permute.xlu0 %1876
      %1878 = vrot.lane.b32.xlu0 %v1027, 112
      %v1879 = vpop.permute.xlu0 %1878
      %1880 = vrot.lane.b32.xlu0 %v1028, 112
      %v1881 = vpop.permute.xlu0 %1880
      %1882 = vrot.lane.b32.xlu0 %v1029, 112
      %v1883 = vpop.permute.xlu0 %1882
      %1884 = vrot.lane.b32.xlu0 %v1030, 112
      %v1885 = vpop.permute.xlu0 %1884
      %1886 = vrot.lane.b32.xlu0 %v1031, 112
      %v1887 = vpop.permute.xlu0 %1886
      %1888 = vrot.lane.b32.xlu0 %v1032, 112
      %v1889 = vpop.permute.xlu0 %1888
      %1890 = vrot.lane.b32.xlu0 %v1033, 112
      %v1891 = vpop.permute.xlu0 %1890
      %vm1892 = vcmask 916480
      %v1893 = vsel %vm1892, %v1829, %v1831
      %v1894 = vsel %vm1892, %v1831, %v1833
      %v1895 = vsel %vm1892, %v1833, %v1835
      %v1896 = vsel %vm1892, %v1837, %v1839
      %v1897 = vsel %vm1892, %v1839, %v1841
      %v1898 = vsel %vm1892, %v1841, %v1843
      %v1899 = vsel %vm1892, %v1845, %v1847
      %v1900 = vsel %vm1892, %v1847, %v1849
      %v1901 = vsel %vm1892, %v1849, %v1851
      %v1902 = vsel %vm1892, %v1853, %v1855
      %v1903 = vsel %vm1892, %v1855, %v1857
      %v1904 = vsel %vm1892, %v1857, %v1859
      %v1905 = vsel %vm1892, %v1861, %v1863
      %v1906 = vsel %vm1892, %v1863, %v1865
      %v1907 = vsel %vm1892, %v1865, %v1867
      %v1908 = vsel %vm1892, %v1869, %v1871
      %v1909 = vsel %vm1892, %v1871, %v1873
      %v1910 = vsel %vm1892, %v1873, %v1875
      %v1911 = vsel %vm1892, %v1877, %v1879
      %v1912 = vsel %vm1892, %v1879, %v1881
      %v1913 = vsel %vm1892, %v1881, %v1883
      %v1914 = vsel %vm1892, %v1885, %v1887
      %v1915 = vsel %vm1892, %v1887, %v1889
      %v1916 = vsel %vm1892, %v1889, %v1891
      %1981 = vrot.lane.b32.xlu0 %v1383, 96
      %v1982 = vpop.permute.xlu0 %1981
      %1983 = vrot.lane.b32.xlu0 %v1384, 96
      %v1984 = vpop.permute.xlu0 %1983
      %1985 = vrot.lane.b32.xlu0 %v1385, 96
      %v1986 = vpop.permute.xlu0 %1985
      %1987 = vrot.lane.b32.xlu0 %v1386, 96
      %v1988 = vpop.permute.xlu0 %1987
      %1989 = vrot.lane.b32.xlu0 %v1387, 96
      %v1990 = vpop.permute.xlu0 %1989
      %1991 = vrot.lane.b32.xlu0 %v1388, 96
      %v1992 = vpop.permute.xlu0 %1991
      %1993 = vrot.lane.b32.xlu0 %v1389, 96
      %v1994 = vpop.permute.xlu0 %1993
      %1995 = vrot.lane.b32.xlu0 %v1390, 96
      %v1996 = vpop.permute.xlu0 %1995
      %1997 = vrot.lane.b32.xlu0 %v1391, 96
      %v1998 = vpop.permute.xlu0 %1997
      %1999 = vrot.lane.b32.xlu0 %v1392, 96
      %v2000 = vpop.permute.xlu0 %1999
      %2001 = vrot.lane.b32.xlu0 %v1393, 96
      %v2002 = vpop.permute.xlu0 %2001
      %2003 = vrot.lane.b32.xlu0 %v1394, 96
      %v2004 = vpop.permute.xlu0 %2003
      %2005 = vrot.lane.b32.xlu0 %v1395, 96
      %v2006 = vpop.permute.xlu0 %2005
      %2007 = vrot.lane.b32.xlu0 %v1396, 96
      %v2008 = vpop.permute.xlu0 %2007
      %2009 = vrot.lane.b32.xlu0 %v1397, 96
      %v2010 = vpop.permute.xlu0 %2009
      %2011 = vrot.lane.b32.xlu0 %v1398, 96
      %v2012 = vpop.permute.xlu0 %2011
      %2013 = vrot.lane.b32.xlu0 %v1399, 96
      %v2014 = vpop.permute.xlu0 %2013
      %2015 = vrot.lane.b32.xlu0 %v1400, 96
      %v2016 = vpop.permute.xlu0 %2015
      %2017 = vrot.lane.b32.xlu0 %v1401, 96
      %v2018 = vpop.permute.xlu0 %2017
      %2019 = vrot.lane.b32.xlu0 %v1402, 96
      %v2020 = vpop.permute.xlu0 %2019
      %2021 = vrot.lane.b32.xlu0 %v1403, 96
      %v2022 = vpop.permute.xlu0 %2021
      %2023 = vrot.lane.b32.xlu0 %v1404, 96
      %v2024 = vpop.permute.xlu0 %2023
      %2025 = vrot.lane.b32.xlu0 %v1405, 96
      %v2026 = vpop.permute.xlu0 %2025
      %2027 = vrot.lane.b32.xlu0 %v1406, 96
      %v2028 = vpop.permute.xlu0 %2027
      %2029 = vrot.lane.b32.xlu0 %v1407, 96
      %v2030 = vpop.permute.xlu0 %2029
      %2031 = vrot.lane.b32.xlu0 %v1408, 96
      %v2032 = vpop.permute.xlu0 %2031
      %2033 = vrot.lane.b32.xlu0 %v1409, 96
      %v2034 = vpop.permute.xlu0 %2033
      %2035 = vrot.lane.b32.xlu0 %v1410, 96
      %v2036 = vpop.permute.xlu0 %2035
      %2037 = vrot.lane.b32.xlu0 %v1411, 96
      %v2038 = vpop.permute.xlu0 %2037
      %2039 = vrot.lane.b32.xlu0 %v1412, 96
      %v2040 = vpop.permute.xlu0 %2039
      %2041 = vrot.lane.b32.xlu0 %v1413, 96
      %v2042 = vpop.permute.xlu0 %2041
      %2043 = vrot.lane.b32.xlu0 %v1414, 96
      %v2044 = vpop.permute.xlu0 %2043
      %vm2045 = vcmask 785408
      %v2046 = vsel %vm2045, %v1982, %v1984
      %v2047 = vsel %vm2045, %v1984, %v1986
      %v2048 = vsel %vm2045, %v1986, %v1988
      %v2049 = vsel %vm2045, %v1990, %v1992
      %v2050 = vsel %vm2045, %v1992, %v1994
      %v2051 = vsel %vm2045, %v1994, %v1996
      %v2052 = vsel %vm2045, %v1998, %v2000
      %v2053 = vsel %vm2045, %v2000, %v2002
      %v2054 = vsel %vm2045, %v2002, %v2004
      %v2055 = vsel %vm2045, %v2006, %v2008
      %v2056 = vsel %vm2045, %v2008, %v2010
      %v2057 = vsel %vm2045, %v2010, %v2012
      %v2058 = vsel %vm2045, %v2014, %v2016
      %v2059 = vsel %vm2045, %v2016, %v2018
      %v2060 = vsel %vm2045, %v2018, %v2020
      %v2061 = vsel %vm2045, %v2022, %v2024
      %v2062 = vsel %vm2045, %v2024, %v2026
      %v2063 = vsel %vm2045, %v2026, %v2028
      %v2064 = vsel %vm2045, %v2030, %v2032
      %v2065 = vsel %vm2045, %v2032, %v2034
      %v2066 = vsel %vm2045, %v2034, %v2036
      %v2067 = vsel %vm2045, %v2038, %v2040
      %v2068 = vsel %vm2045, %v2040, %v2042
      %v2069 = vsel %vm2045, %v2042, %v2044
      %2134 = vrot.lane.b32.xlu0 %v1764, 80
      %v2135 = vpop.permute.xlu0 %2134
      %2136 = vrot.lane.b32.xlu0 %v1765, 80
      %v2137 = vpop.permute.xlu0 %2136
      %2138 = vrot.lane.b32.xlu0 %v1766, 80
      %v2139 = vpop.permute.xlu0 %2138
      %2140 = vrot.lane.b32.xlu0 %v1767, 80
      %v2141 = vpop.permute.xlu0 %2140
      %2142 = vrot.lane.b32.xlu0 %v1768, 80
      %v2143 = vpop.permute.xlu0 %2142
      %2144 = vrot.lane.b32.xlu0 %v1769, 80
      %v2145 = vpop.permute.xlu0 %2144
      %2146 = vrot.lane.b32.xlu0 %v1770, 80
      %v2147 = vpop.permute.xlu0 %2146
      %2148 = vrot.lane.b32.xlu0 %v1771, 80
      %v2149 = vpop.permute.xlu0 %2148
      %2150 = vrot.lane.b32.xlu0 %v1772, 80
      %v2151 = vpop.permute.xlu0 %2150
      %2152 = vrot.lane.b32.xlu0 %v1773, 80
      %v2153 = vpop.permute.xlu0 %2152
      %2154 = vrot.lane.b32.xlu0 %v1774, 80
      %v2155 = vpop.permute.xlu0 %2154
      %2156 = vrot.lane.b32.xlu0 %v1775, 80
      %v2157 = vpop.permute.xlu0 %2156
      %2158 = vrot.lane.b32.xlu0 %v1776, 80
      %v2159 = vpop.permute.xlu0 %2158
      %2160 = vrot.lane.b32.xlu0 %v1777, 80
      %v2161 = vpop.permute.xlu0 %2160
      %2162 = vrot.lane.b32.xlu0 %v1778, 80
      %v2163 = vpop.permute.xlu0 %2162
      %2164 = vrot.lane.b32.xlu0 %v1779, 80
      %v2165 = vpop.permute.xlu0 %2164
      %2166 = vrot.lane.b32.xlu0 %v1780, 80
      %v2167 = vpop.permute.xlu0 %2166
      %2168 = vrot.lane.b32.xlu0 %v1781, 80
      %v2169 = vpop.permute.xlu0 %2168
      %2170 = vrot.lane.b32.xlu0 %v1782, 80
      %v2171 = vpop.permute.xlu0 %2170
      %2172 = vrot.lane.b32.xlu0 %v1783, 80
      %v2173 = vpop.permute.xlu0 %2172
      %2174 = vrot.lane.b32.xlu0 %v1784, 80
      %v2175 = vpop.permute.xlu0 %2174
      %2176 = vrot.lane.b32.xlu0 %v1785, 80
      %v2177 = vpop.permute.xlu0 %2176
      %2178 = vrot.lane.b32.xlu0 %v1786, 80
      %v2179 = vpop.permute.xlu0 %2178
      %2180 = vrot.lane.b32.xlu0 %v1787, 80
      %v2181 = vpop.permute.xlu0 %2180
      %2182 = vrot.lane.b32.xlu0 %v1788, 80
      %v2183 = vpop.permute.xlu0 %2182
      %2184 = vrot.lane.b32.xlu0 %v1789, 80
      %v2185 = vpop.permute.xlu0 %2184
      %2186 = vrot.lane.b32.xlu0 %v1790, 80
      %v2187 = vpop.permute.xlu0 %2186
      %2188 = vrot.lane.b32.xlu0 %v1791, 80
      %v2189 = vpop.permute.xlu0 %2188
      %2190 = vrot.lane.b32.xlu0 %v1792, 80
      %v2191 = vpop.permute.xlu0 %2190
      %2192 = vrot.lane.b32.xlu0 %v1793, 80
      %v2193 = vpop.permute.xlu0 %2192
      %2194 = vrot.lane.b32.xlu0 %v1794, 80
      %v2195 = vpop.permute.xlu0 %2194
      %2196 = vrot.lane.b32.xlu0 %v1795, 80
      %v2197 = vpop.permute.xlu0 %2196
      %vm2198 = vcmask 654336
      %v2199 = vsel %vm2198, %v2135, %v2137
      %v2200 = vsel %vm2198, %v2137, %v2139
      %v2201 = vsel %vm2198, %v2139, %v2141
      %v2202 = vsel %vm2198, %v2143, %v2145
      %v2203 = vsel %vm2198, %v2145, %v2147
      %v2204 = vsel %vm2198, %v2147, %v2149
      %v2205 = vsel %vm2198, %v2151, %v2153
      %v2206 = vsel %vm2198, %v2153, %v2155
      %v2207 = vsel %vm2198, %v2155, %v2157
      %v2208 = vsel %vm2198, %v2159, %v2161
      %v2209 = vsel %vm2198, %v2161, %v2163
      %v2210 = vsel %vm2198, %v2163, %v2165
      %v2211 = vsel %vm2198, %v2167, %v2169
      %v2212 = vsel %vm2198, %v2169, %v2171
      %v2213 = vsel %vm2198, %v2171, %v2173
      %v2214 = vsel %vm2198, %v2175, %v2177
      %v2215 = vsel %vm2198, %v2177, %v2179
      %v2216 = vsel %vm2198, %v2179, %v2181
      %v2217 = vsel %vm2198, %v2183, %v2185
      %v2218 = vsel %vm2198, %v2185, %v2187
      %v2219 = vsel %vm2198, %v2187, %v2189
      %v2220 = vsel %vm2198, %v2191, %v2193
      %v2221 = vsel %vm2198, %v2193, %v2195
      %v2222 = vsel %vm2198, %v2195, %v2197
      %v2255 = vld [vmem:[%s1] sm:$0xff]
      %v2256 = vld [vmem:[%s1 + $0x8] sm:$0xff]
      %v2257 = vld [vmem:[%s1 + $0x10] sm:$0xff]
      %v2258 = vld [vmem:[%s1 + $0x18] sm:$0xff]
      %v2259 = vld [vmem:[%s1 + $0x20] sm:$0xff]
      %v2260 = vld [vmem:[%s1 + $0x28] sm:$0xff]
      %v2261 = vld [vmem:[%s1 + $0x30] sm:$0xff]
      %v2262 = vld [vmem:[%s1 + $0x38] sm:$0xff]
      %v2263 = vld [vmem:[%s3] sm:$0xff]
      %v2264 = vld [vmem:[%s3 + $0x8] sm:$0xff]
      %v2265 = vld [vmem:[%s3 + $0x10] sm:$0xff]
      %v2266 = vld [vmem:[%s3 + $0x18] sm:$0xff]
      %2268 = vset.pattern.permute.xlu0 0
      %2269 = vperm.xlu0 %2268, %v2263
      %v2270 = vpop.permute.xlu0 %2269
      %2273 = vset.pattern.permute.xlu0 0
      %2274 = vperm.xlu0 %2273, %v2264
      %v2275 = vpop.permute.xlu0 %2274
      %2278 = vset.pattern.permute.xlu0 0
      %2279 = vperm.xlu0 %2278, %v2265
      %v2280 = vpop.permute.xlu0 %2279
      %2283 = vset.pattern.permute.xlu0 0
      %2284 = vperm.xlu0 %2283, %v2266
      %v2285 = vpop.permute.xlu0 %2284
      %2287 = vmatpush.msra.mxu0 %v1914
      %2288 = vmatpush.msra.mxu0 %v1911
      %2289 = vmatpush.msra.mxu0 %v1908
      %2290 = vmatpush.msra.mxu0 %v1905
      %2291 = vmatpush.msra.mxu0 %v1902
      %2292 = vmatpush.msra.mxu0 %v1899
      %2293 = vmatpush.msra.mxu0 %v1896
      %2294 = vmatpush.msra.mxu0 %v1893
      %2295 = vmatpush.msra.mxu0 %v649
      %2296 = vmatpush.msra.mxu0 %v645
      %2297 = vmatpush.msra.mxu0 %v641
      %2298 = vmatpush.msra.mxu0 %v637
      %2299 = vmatpush.msra.mxu0 %v633
      %2300 = vmatpush.msra.mxu0 %v629
      %2301 = vmatpush.msra.mxu0 %v625
      %2302 = vmatpush.msra.mxu0 %v621
      %2303 = vmatmul.f32.gmra.mxu0 %v2255
      %v2304 = vpop.f32.mrf.mxu0
      %v2305 = vadd.f32 %v2270, %v2304
      %2306 = vmatmul.f32.gmra.mxu0 %v2257
      %v2307 = vpop.f32.mrf.mxu0
      %v2308 = vadd.f32 %v2275, %v2307
      %2309 = vmatmul.f32.gmra.mxu0 %v2259
      %v2310 = vpop.f32.mrf.mxu0
      %v2311 = vadd.f32 %v2280, %v2310
      %2312 = vmatmul.f32.gmra.mxu0 %v2261
      %v2313 = vpop.f32.mrf.mxu0
      %v2314 = vadd.f32 %v2285, %v2313
      %2315 = vdwg.mxu0
      %2316 = vmatpush.msra.mxu0 %v2220
      %2317 = vmatpush.msra.mxu0 %v2217
      %2318 = vmatpush.msra.mxu0 %v2214
      %2319 = vmatpush.msra.mxu0 %v2211
      %2320 = vmatpush.msra.mxu0 %v2208
      %2321 = vmatpush.msra.mxu0 %v2205
      %2322 = vmatpush.msra.mxu0 %v2202
      %2323 = vmatpush.msra.mxu0 %v2199
      %2324 = vmatpush.msra.mxu0 %v2067
      %2325 = vmatpush.msra.mxu0 %v2064
      %2326 = vmatpush.msra.mxu0 %v2061
      %2327 = vmatpush.msra.mxu0 %v2058
      %2328 = vmatpush.msra.mxu0 %v2055
      %2329 = vmatpush.msra.mxu0 %v2052
      %2330 = vmatpush.msra.mxu0 %v2049
      %2331 = vmatpush.msra.mxu0 %v2046
      %2332 = vmatmul.f32.gmra.mxu0 %v2256
      %v2333 = vpop.f32.mrf.mxu0
      %v2334 = vadd.f32 %v2305, %v2333
      %2335 = vmatmul.f32.gmra.mxu0 %v2258
      %v2336 = vpop.f32.mrf.mxu0
      %v2337 = vadd.f32 %v2308, %v2336
      %2338 = vmatmul.f32.gmra.mxu0 %v2260
      %v2339 = vpop.f32.mrf.mxu0
      %v2340 = vadd.f32 %v2311, %v2339
      %2341 = vmatmul.f32.gmra.mxu0 %v2262
      %v2342 = vpop.f32.mrf.mxu0
      %v2343 = vadd.f32 %v2314, %v2342
      %2344 = vdwg.mxu0
      %2345 = vmatpush.msra.mxu0 %v1915
      %2346 = vmatpush.msra.mxu0 %v1912
      %2347 = vmatpush.msra.mxu0 %v1909
      %2348 = vmatpush.msra.mxu0 %v1906
      %2349 = vmatpush.msra.mxu0 %v1903
      %2350 = vmatpush.msra.mxu0 %v1900
      %2351 = vmatpush.msra.mxu0 %v1897
      %2352 = vmatpush.msra.mxu0 %v1894
      %2353 = vmatpush.msra.mxu0 %v650
      %2354 = vmatpush.msra.mxu0 %v646
      %2355 = vmatpush.msra.mxu0 %v642
      %2356 = vmatpush.msra.mxu0 %v638
      %2357 = vmatpush.msra.mxu0 %v634
      %2358 = vmatpush.msra.mxu0 %v630
      %2359 = vmatpush.msra.mxu0 %v626
      %2360 = vmatpush.msra.mxu0 %v622
      %2361 = vmatmul.f32.gmra.mxu0 %v2255
      %v2362 = vpop.f32.mrf.mxu0
      %v2363 = vadd.f32 %v2270, %v2362
      %2364 = vmatmul.f32.gmra.mxu0 %v2257
      %v2365 = vpop.f32.mrf.mxu0
      %v2366 = vadd.f32 %v2275, %v2365
      %2367 = vmatmul.f32.gmra.mxu0 %v2259
      %v2368 = vpop.f32.mrf.mxu0
      %v2369 = vadd.f32 %v2280, %v2368
      %2370 = vmatmul.f32.gmra.mxu0 %v2261
      %v2371 = vpop.f32.mrf.mxu0
      %v2372 = vadd.f32 %v2285, %v2371
      %2373 = vdwg.mxu0
      %2374 = vmatpush.msra.mxu0 %v2221
      %2375 = vmatpush.msra.mxu0 %v2218
      %2376 = vmatpush.msra.mxu0 %v2215
      %2377 = vmatpush.msra.mxu0 %v2212
      %2378 = vmatpush.msra.mxu0 %v2209
      %2379 = vmatpush.msra.mxu0 %v2206
      %2380 = vmatpush.msra.mxu0 %v2203
      %2381 = vmatpush.msra.mxu0 %v2200
      %2382 = vmatpush.msra.mxu0 %v2068
      %2383 = vmatpush.msra.mxu0 %v2065
      %2384 = vmatpush.msra.mxu0 %v2062
      %2385 = vmatpush.msra.mxu0 %v2059
      %2386 = vmatpush.msra.mxu0 %v2056
      %2387 = vmatpush.msra.mxu0 %v2053
      %2388 = vmatpush.msra.mxu0 %v2050
      %2389 = vmatpush.msra.mxu0 %v2047
      %2390 = vmatmul.f32.gmra.mxu0 %v2256
      %v2391 = vpop.f32.mrf.mxu0
      %v2392 = vadd.f32 %v2363, %v2391
      %2393 = vmatmul.f32.gmra.mxu0 %v2258
      %v2394 = vpop.f32.mrf.mxu0
      %v2395 = vadd.f32 %v2366, %v2394
      %2396 = vmatmul.f32.gmra.mxu0 %v2260
      %v2397 = vpop.f32.mrf.mxu0
      %v2398 = vadd.f32 %v2369, %v2397
      %2399 = vmatmul.f32.gmra.mxu0 %v2262
      %v2400 = vpop.f32.mrf.mxu0
      %v2401 = vadd.f32 %v2372, %v2400
      %2402 = vdwg.mxu0
      %2403 = vmatpush.msra.mxu0 %v1916
      %2404 = vmatpush.msra.mxu0 %v1913
      %2405 = vmatpush.msra.mxu0 %v1910
      %2406 = vmatpush.msra.mxu0 %v1907
      %2407 = vmatpush.msra.mxu0 %v1904
      %2408 = vmatpush.msra.mxu0 %v1901
      %2409 = vmatpush.msra.mxu0 %v1898
      %2410 = vmatpush.msra.mxu0 %v1895
      %2411 = vmatpush.msra.mxu0 %v651
      %2412 = vmatpush.msra.mxu0 %v647
      %2413 = vmatpush.msra.mxu0 %v643
      %2414 = vmatpush.msra.mxu0 %v639
      %2415 = vmatpush.msra.mxu0 %v635
      %2416 = vmatpush.msra.mxu0 %v631
      %2417 = vmatpush.msra.mxu0 %v627
      %2418 = vmatpush.msra.mxu0 %v623
      %2419 = vmatmul.f32.gmra.mxu0 %v2255
      %v2420 = vpop.f32.mrf.mxu0
      %v2421 = vadd.f32 %v2270, %v2420
      %2422 = vmatmul.f32.gmra.mxu0 %v2257
      %v2423 = vpop.f32.mrf.mxu0
      %v2424 = vadd.f32 %v2275, %v2423
      %2425 = vmatmul.f32.gmra.mxu0 %v2259
      %v2426 = vpop.f32.mrf.mxu0
      %v2427 = vadd.f32 %v2280, %v2426
      %2428 = vmatmul.f32.gmra.mxu0 %v2261
      %v2429 = vpop.f32.mrf.mxu0
      %v2430 = vadd.f32 %v2285, %v2429
      %2431 = vdwg.mxu0
      %2432 = vmatpush.msra.mxu0 %v2222
      %2433 = vmatpush.msra.mxu0 %v2219
      %2434 = vmatpush.msra.mxu0 %v2216
      %2435 = vmatpush.msra.mxu0 %v2213
      %2436 = vmatpush.msra.mxu0 %v2210
      %2437 = vmatpush.msra.mxu0 %v2207
      %2438 = vmatpush.msra.mxu0 %v2204
      %2439 = vmatpush.msra.mxu0 %v2201
      %2440 = vmatpush.msra.mxu0 %v2069
      %2441 = vmatpush.msra.mxu0 %v2066
      %2442 = vmatpush.msra.mxu0 %v2063
      %2443 = vmatpush.msra.mxu0 %v2060
      %2444 = vmatpush.msra.mxu0 %v2057
      %2445 = vmatpush.msra.mxu0 %v2054
      %2446 = vmatpush.msra.mxu0 %v2051
      %2447 = vmatpush.msra.mxu0 %v2048
      %2448 = vmatmul.f32.gmra.mxu0 %v2256
      %v2449 = vpop.f32.mrf.mxu0
      %v2450 = vadd.f32 %v2421, %v2449
      %2451 = vmatmul.f32.gmra.mxu0 %v2258
      %v2452 = vpop.f32.mrf.mxu0
      %v2453 = vadd.f32 %v2424, %v2452
      %2454 = vmatmul.f32.gmra.mxu0 %v2260
      %v2455 = vpop.f32.mrf.mxu0
      %v2456 = vadd.f32 %v2427, %v2455
      %2457 = vmatmul.f32.gmra.mxu0 %v2262
      %v2458 = vpop.f32.mrf.mxu0
      %v2459 = vadd.f32 %v2430, %v2458
      %2460 = vdwg.mxu0
      %2461 = vmatpush.msra.mxu0 %v1891
      %2462 = vmatpush.msra.mxu0 %v1883
      %2463 = vmatpush.msra.mxu0 %v1875
      %2464 = vmatpush.msra.mxu0 %v1867
      %2465 = vmatpush.msra.mxu0 %v1859
      %2466 = vmatpush.msra.mxu0 %v1851
      %2467 = vmatpush.msra.mxu0 %v1843
      %2468 = vmatpush.msra.mxu0 %v1835
      %2469 = vmatpush.msra.mxu0 %v652
      %2470 = vmatpush.msra.mxu0 %v648
      %2471 = vmatpush.msra.mxu0 %v644
      %2472 = vmatpush.msra.mxu0 %v640
      %2473 = vmatpush.msra.mxu0 %v636
      %2474 = vmatpush.msra.mxu0 %v632
      %2475 = vmatpush.msra.mxu0 %v628
      %2476 = vmatpush.msra.mxu0 %v624
      %2477 = vmatmul.f32.gmra.mxu0 %v2255
      %v2478 = vpop.f32.mrf.mxu0
      %v2479 = vadd.f32 %v2270, %v2478
      %2480 = vmatmul.f32.gmra.mxu0 %v2257
      %v2481 = vpop.f32.mrf.mxu0
      %v2482 = vadd.f32 %v2275, %v2481
      %2483 = vmatmul.f32.gmra.mxu0 %v2259
      %v2484 = vpop.f32.mrf.mxu0
      %v2485 = vadd.f32 %v2280, %v2484
      %2486 = vmatmul.f32.gmra.mxu0 %v2261
      %v2487 = vpop.f32.mrf.mxu0
      %v2488 = vadd.f32 %v2285, %v2487
      %2489 = vdwg.mxu0
      %2490 = vmatpush.msra.mxu0 %v2197
      %2491 = vmatpush.msra.mxu0 %v2189
      %2492 = vmatpush.msra.mxu0 %v2181
      %2493 = vmatpush.msra.mxu0 %v2173
      %2494 = vmatpush.msra.mxu0 %v2165
      %2495 = vmatpush.msra.mxu0 %v2157
      %2496 = vmatpush.msra.mxu0 %v2149
      %2497 = vmatpush.msra.mxu0 %v2141
      %2498 = vmatpush.msra.mxu0 %v2044
      %2499 = vmatpush.msra.mxu0 %v2036
      %2500 = vmatpush.msra.mxu0 %v2028
      %2501 = vmatpush.msra.mxu0 %v2020
      %2502 = vmatpush.msra.mxu0 %v2012
      %2503 = vmatpush.msra.mxu0 %v2004
      %2504 = vmatpush.msra.mxu0 %v1996
      %2505 = vmatpush.msra.mxu0 %v1988
      %2506 = vmatmul.f32.gmra.mxu0 %v2256
      %v2507 = vpop.f32.mrf.mxu0
      %v2508 = vadd.f32 %v2479, %v2507
      %2509 = vmatmul.f32.gmra.mxu0 %v2258
      %v2510 = vpop.f32.mrf.mxu0
      %v2511 = vadd.f32 %v2482, %v2510
      %2512 = vmatmul.f32.gmra.mxu0 %v2260
      %v2513 = vpop.f32.mrf.mxu0
      %v2514 = vadd.f32 %v2485, %v2513
      %2515 = vmatmul.f32.gmra.mxu0 %v2262
      %v2516 = vpop.f32.mrf.mxu0
      %v2517 = vadd.f32 %v2488, %v2516
      %2518 = vdwg.mxu0
      %vm2519 = vcmp.gt.f32.partialorder %v2334, 0.0
      %vm2520 = vcmp.gt.f32.partialorder %v2392, 0.0
      %vm2521 = vcmp.gt.f32.partialorder %v2450, 0.0
      %vm2522 = vcmp.gt.f32.partialorder %v2508, 0.0
      %vm2523 = vcmp.gt.f32.partialorder %v2337, 0.0
      %vm2524 = vcmp.gt.f32.partialorder %v2395, 0.0
      %vm2525 = vcmp.gt.f32.partialorder %v2453, 0.0
      %vm2526 = vcmp.gt.f32.partialorder %v2511, 0.0
      %vm2527 = vcmp.gt.f32.partialorder %v2340, 0.0
      %vm2528 = vcmp.gt.f32.partialorder %v2398, 0.0
      %vm2529 = vcmp.gt.f32.partialorder %v2456, 0.0
      %vm2530 = vcmp.gt.f32.partialorder %v2514, 0.0
      %vm2531 = vcmp.gt.f32.partialorder %v2343, 0.0
      %vm2532 = vcmp.gt.f32.partialorder %v2401, 0.0
      %vm2533 = vcmp.gt.f32.partialorder %v2459, 0.0
      %vm2534 = vcmp.gt.f32.partialorder %v2517, 0.0
      %v2535 = vmin.f32 %v2334, 0.0
      %v2536 = vmin.f32 %v2392, 0.0
      %v2537 = vmin.f32 %v2450, 0.0
      %v2538 = vmin.f32 %v2508, 0.0
      %v2539 = vmin.f32 %v2337, 0.0
      %v2540 = vmin.f32 %v2395, 0.0
      %v2541 = vmin.f32 %v2453, 0.0
      %v2542 = vmin.f32 %v2511, 0.0
      %v2543 = vmin.f32 %v2340, 0.0
      %v2544 = vmin.f32 %v2398, 0.0
      %v2545 = vmin.f32 %v2456, 0.0
      %v2546 = vmin.f32 %v2514, 0.0
      %v2547 = vmin.f32 %v2343, 0.0
      %v2548 = vmin.f32 %v2401, 0.0
      %v2549 = vmin.f32 %v2459, 0.0
      %v2550 = vmin.f32 %v2517, 0.0
      %v2551 = vmul.f32 %v2535, 1.442695
      %v2552 = vpow.pop %v2551
      %v2553 = vmul.f32 %v2536, 1.442695
      %v2554 = vpow.pop %v2553
      %v2555 = vmul.f32 %v2537, 1.442695
      %v2556 = vpow.pop %v2555
      %v2557 = vmul.f32 %v2538, 1.442695
      %v2558 = vpow.pop %v2557
      %v2559 = vmul.f32 %v2539, 1.442695
      %v2560 = vpow.pop %v2559
      %v2561 = vmul.f32 %v2540, 1.442695
      %v2562 = vpow.pop %v2561
      %v2563 = vmul.f32 %v2541, 1.442695
      %v2564 = vpow.pop %v2563
      %v2565 = vmul.f32 %v2542, 1.442695
      %v2566 = vpow.pop %v2565
      %v2567 = vmul.f32 %v2543, 1.442695
      %v2568 = vpow.pop %v2567
      %v2569 = vmul.f32 %v2544, 1.442695
      %v2570 = vpow.pop %v2569
      %v2571 = vmul.f32 %v2545, 1.442695
      %v2572 = vpow.pop %v2571
      %v2573 = vmul.f32 %v2546, 1.442695
      %v2574 = vpow.pop %v2573
      %v2575 = vmul.f32 %v2547, 1.442695
      %v2576 = vpow.pop %v2575
      %v2577 = vmul.f32 %v2548, 1.442695
      %v2578 = vpow.pop %v2577
      %v2579 = vmul.f32 %v2549, 1.442695
      %v2580 = vpow.pop %v2579
      %v2581 = vmul.f32 %v2550, 1.442695
      %v2582 = vpow.pop %v2581
      %v2583 = vsub.f32 %v2552, 1.0
      %v2584 = vsub.f32 %v2554, 1.0
      %v2585 = vsub.f32 %v2556, 1.0
      %v2586 = vsub.f32 %v2558, 1.0
      %v2587 = vsub.f32 %v2560, 1.0
      %v2588 = vsub.f32 %v2562, 1.0
      %v2589 = vsub.f32 %v2564, 1.0
      %v2590 = vsub.f32 %v2566, 1.0
      %v2591 = vsub.f32 %v2568, 1.0
      %v2592 = vsub.f32 %v2570, 1.0
      %v2593 = vsub.f32 %v2572, 1.0
      %v2594 = vsub.f32 %v2574, 1.0
      %v2595 = vsub.f32 %v2576, 1.0
      %v2596 = vsub.f32 %v2578, 1.0
      %v2597 = vsub.f32 %v2580, 1.0
      %v2598 = vsub.f32 %v2582, 1.0
      %v2599 = vsel %vm2519, %v2334, %v2583
      %v2600 = vsel %vm2520, %v2392, %v2584
      %v2601 = vsel %vm2521, %v2450, %v2585
      %v2602 = vsel %vm2522, %v2508, %v2586
      %v2603 = vsel %vm2523, %v2337, %v2587
      %v2604 = vsel %vm2524, %v2395, %v2588
      %v2605 = vsel %vm2525, %v2453, %v2589
      %v2606 = vsel %vm2526, %v2511, %v2590
      %v2607 = vsel %vm2527, %v2340, %v2591
      %v2608 = vsel %vm2528, %v2398, %v2592
      %v2609 = vsel %vm2529, %v2456, %v2593
      %v2610 = vsel %vm2530, %v2514, %v2594
      %v2611 = vsel %vm2531, %v2343, %v2595
      %v2612 = vsel %vm2532, %v2401, %v2596
      %v2613 = vsel %vm2533, %v2459, %v2597
      %v2614 = vsel %vm2534, %v2517, %v2598
      %v2615 = vld [vmem:[%s4] sm:$0xff]
      %v2616 = vld [vmem:[%s4 + $0x8] sm:$0xff]
      %v2617 = vld [vmem:[%s4 + $0x10] sm:$0xff]
      %v2618 = vld [vmem:[%s4 + $0x18] sm:$0xff]
      %v2619 = vld [vmem:[%s4 + $0x20] sm:$0xff]
      %v2620 = vld [vmem:[%s4 + $0x28] sm:$0xff]
      %v2621 = vld [vmem:[%s4 + $0x30] sm:$0xff]
      %v2622 = vld [vmem:[%s4 + $0x38] sm:$0xff]
      %v2623 = vld [vmem:[%s4 + $0x40] sm:$0xff]
      %v2624 = vld [vmem:[%s4 + $0x48] sm:$0xff]
      %v2625 = vld [vmem:[%s4 + $0x50] sm:$0xff]
      %v2626 = vld [vmem:[%s4 + $0x58] sm:$0xff]
      %v2627 = vld [vmem:[%s4 + $0x60] sm:$0xff]
      %v2628 = vld [vmem:[%s4 + $0x68] sm:$0xff]
      %v2629 = vld [vmem:[%s4 + $0x70] sm:$0xff]
      %v2630 = vld [vmem:[%s4 + $0x78] sm:$0xff]
      %v2631 = vld [vmem:[%s4 + $0x80] sm:$0xff]
      %v2632 = vld [vmem:[%s4 + $0x88] sm:$0xff]
      %v2633 = vld [vmem:[%s4 + $0x90] sm:$0xff]
      %v2634 = vld [vmem:[%s4 + $0x98] sm:$0xff]
      %v2635 = vld [vmem:[%s4 + $0xa0] sm:$0xff]
      %v2636 = vld [vmem:[%s4 + $0xa8] sm:$0xff]
      %v2637 = vld [vmem:[%s4 + $0xb0] sm:$0xff]
      %v2638 = vld [vmem:[%s4 + $0xb8] sm:$0xff]
      %v2639 = vld [vmem:[%s4 + $0xc0] sm:$0xff]
      %v2640 = vld [vmem:[%s4 + $0xc8] sm:$0xff]
      %v2641 = vld [vmem:[%s4 + $0xd0] sm:$0xff]
      %v2642 = vld [vmem:[%s4 + $0xd8] sm:$0xff]
      %v2643 = vld [vmem:[%s4 + $0xe0] sm:$0xff]
      %v2644 = vld [vmem:[%s4 + $0xe8] sm:$0xff]
      %v2645 = vld [vmem:[%s4 + $0xf0] sm:$0xff]
      %v2646 = vld [vmem:[%s4 + $0xf8] sm:$0xff]
      %v2647 = vld [vmem:[%s4 + $0x100] sm:$0xff]
      %v2648 = vld [vmem:[%s4 + $0x108] sm:$0xff]
      %v2649 = vld [vmem:[%s4 + $0x110] sm:$0xff]
      %v2650 = vld [vmem:[%s4 + $0x118] sm:$0xff]
      %v2651 = vld [vmem:[%s4 + $0x120] sm:$0xff]
      %v2652 = vld [vmem:[%s4 + $0x128] sm:$0xff]
      %v2653 = vld [vmem:[%s4 + $0x130] sm:$0xff]
      %v2654 = vld [vmem:[%s4 + $0x138] sm:$0xff]
      %v2655 = vld [vmem:[%s4 + $0x140] sm:$0xff]
      %v2656 = vld [vmem:[%s4 + $0x148] sm:$0xff]
      %v2657 = vld [vmem:[%s4 + $0x150] sm:$0xff]
      %v2658 = vld [vmem:[%s4 + $0x158] sm:$0xff]
      %v2659 = vld [vmem:[%s4 + $0x160] sm:$0xff]
      %v2660 = vld [vmem:[%s4 + $0x168] sm:$0xff]
      %v2661 = vld [vmem:[%s4 + $0x170] sm:$0xff]
      %v2662 = vld [vmem:[%s4 + $0x178] sm:$0xff]
      %v2663 = vld [vmem:[%s4 + $0x180] sm:$0xff]
      %v2664 = vld [vmem:[%s4 + $0x188] sm:$0xff]
      %v2665 = vld [vmem:[%s4 + $0x190] sm:$0xff]
      %v2666 = vld [vmem:[%s4 + $0x198] sm:$0xff]
      %v2667 = vld [vmem:[%s4 + $0x1a0] sm:$0xff]
      %v2668 = vld [vmem:[%s4 + $0x1a8] sm:$0xff]
      %v2669 = vld [vmem:[%s4 + $0x1b0] sm:$0xff]
      %v2670 = vld [vmem:[%s4 + $0x1b8] sm:$0xff]
      %vm2671 = vcmask 523264
      %v2673 = vsel %vm2671, %v2602, 0
      %v2676 = vsel %vm2671, %v2606, 0
      %v2679 = vsel %vm2671, %v2610, 0
      %v2682 = vsel %vm2671, %v2614, 0
      %2684 = vmatpush.msra.mxu0 %v2630
      %2685 = vmatpush.msra.mxu0 %v2629
      %2686 = vmatpush.msra.mxu0 %v2628
      %2687 = vmatpush.msra.mxu0 %v2627
      %2688 = vmatpush.msra.mxu0 %v2626
      %2689 = vmatpush.msra.mxu0 %v2625
      %2690 = vmatpush.msra.mxu0 %v2624
      %2691 = vmatpush.msra.mxu0 %v2623
      %2692 = vmatpush.msra.mxu0 %v2622
      %2693 = vmatpush.msra.mxu0 %v2621
      %2694 = vmatpush.msra.mxu0 %v2620
      %2695 = vmatpush.msra.mxu0 %v2619
      %2696 = vmatpush.msra.mxu0 %v2618
      %2697 = vmatpush.msra.mxu0 %v2617
      %2698 = vmatpush.msra.mxu0 %v2616
      %2699 = vmatpush.msra.mxu0 %v2615
      %2700 = vmatmul.f32.gmra.mxu0 %v2599
      %v2701 = vpop.f32.mrf.mxu0
      %v2702 = vadd.f32 0.0, %v2701
      %2703 = vmatmul.f32.gmra.mxu0 %v2603
      %v2704 = vpop.f32.mrf.mxu0
      %v2705 = vadd.f32 0.0, %v2704
      %2706 = vmatmul.f32.gmra.mxu0 %v2607
      %v2707 = vpop.f32.mrf.mxu0
      %v2708 = vadd.f32 0.0, %v2707
      %2709 = vmatmul.f32.gmra.mxu0 %v2611
      %v2710 = vpop.f32.mrf.mxu0
      %v2711 = vadd.f32 0.0, %v2710
      %2712 = vdwg.mxu0
      %2713 = vmatpush.msra.mxu0 %v2646
      %2714 = vmatpush.msra.mxu0 %v2645
      %2715 = vmatpush.msra.mxu0 %v2644
      %2716 = vmatpush.msra.mxu0 %v2643
      %2717 = vmatpush.msra.mxu0 %v2642
      %2718 = vmatpush.msra.mxu0 %v2641
      %2719 = vmatpush.msra.mxu0 %v2640
      %2720 = vmatpush.msra.mxu0 %v2639
      %2721 = vmatpush.msra.mxu0 %v2638
      %2722 = vmatpush.msra.mxu0 %v2637
      %2723 = vmatpush.msra.mxu0 %v2636
      %2724 = vmatpush.msra.mxu0 %v2635
      %2725 = vmatpush.msra.mxu0 %v2634
      %2726 = vmatpush.msra.mxu0 %v2633
      %2727 = vmatpush.msra.mxu0 %v2632
      %2728 = vmatpush.msra.mxu0 %v2631
      %2729 = vmatmul.f32.gmra.mxu0 %v2600
      %v2730 = vpop.f32.mrf.mxu0
      %v2731 = vadd.f32 %v2702, %v2730
      %2732 = vmatmul.f32.gmra.mxu0 %v2604
      %v2733 = vpop.f32.mrf.mxu0
      %v2734 = vadd.f32 %v2705, %v2733
      %2735 = vmatmul.f32.gmra.mxu0 %v2608
      %v2736 = vpop.f32.mrf.mxu0
      %v2737 = vadd.f32 %v2708, %v2736
      %2738 = vmatmul.f32.gmra.mxu0 %v2612
      %v2739 = vpop.f32.mrf.mxu0
      %v2740 = vadd.f32 %v2711, %v2739
      %2741 = vdwg.mxu0
      %2742 = vmatpush.msra.mxu0 %v2662
      %2743 = vmatpush.msra.mxu0 %v2661
      %2744 = vmatpush.msra.mxu0 %v2660
      %2745 = vmatpush.msra.mxu0 %v2659
      %2746 = vmatpush.msra.mxu0 %v2658
      %2747 = vmatpush.msra.mxu0 %v2657
      %2748 = vmatpush.msra.mxu0 %v2656
      %2749 = vmatpush.msra.mxu0 %v2655
      %2750 = vmatpush.msra.mxu0 %v2654
      %2751 = vmatpush.msra.mxu0 %v2653
      %2752 = vmatpush.msra.mxu0 %v2652
      %2753 = vmatpush.msra.mxu0 %v2651
      %2754 = vmatpush.msra.mxu0 %v2650
      %2755 = vmatpush.msra.mxu0 %v2649
      %2756 = vmatpush.msra.mxu0 %v2648
      %2757 = vmatpush.msra.mxu0 %v2647
      %2758 = vmatmul.f32.gmra.mxu0 %v2601
      %v2759 = vpop.f32.mrf.mxu0
      %v2760 = vadd.f32 %v2731, %v2759
      %2761 = vmatmul.f32.gmra.mxu0 %v2605
      %v2762 = vpop.f32.mrf.mxu0
      %v2763 = vadd.f32 %v2734, %v2762
      %2764 = vmatmul.f32.gmra.mxu0 %v2609
      %v2765 = vpop.f32.mrf.mxu0
      %v2766 = vadd.f32 %v2737, %v2765
      %2767 = vmatmul.f32.gmra.mxu0 %v2613
      %v2768 = vpop.f32.mrf.mxu0
      %v2769 = vadd.f32 %v2740, %v2768
      %2770 = vdwg.mxu0
      %2771 = vmatpush.msra.mxu0 0.0
      %2772 = vmatpush.msra.mxu0 0.0
      %2773 = vmatpush.msra.mxu0 0.0
      %2774 = vmatpush.msra.mxu0 0.0
      %2775 = vmatpush.msra.mxu0 0.0
      %2776 = vmatpush.msra.mxu0 0.0
      %2777 = vmatpush.msra.mxu0 0.0
      %2778 = vmatpush.msra.mxu0 0.0
      %2779 = vmatpush.msra.mxu0 %v2670
      %2780 = vmatpush.msra.mxu0 %v2669
      %2781 = vmatpush.msra.mxu0 %v2668
      %2782 = vmatpush.msra.mxu0 %v2667
      %2783 = vmatpush.msra.mxu0 %v2666
      %2784 = vmatpush.msra.mxu0 %v2665
      %2785 = vmatpush.msra.mxu0 %v2664
      %2786 = vmatpush.msra.mxu0 %v2663
      %2787 = vmatmul.f32.gmra.mxu0 %v2673
      %v2788 = vpop.f32.mrf.mxu0
      %v2789 = vadd.f32 %v2760, %v2788
      %2790 = vmatmul.f32.gmra.mxu0 %v2676
      %v2791 = vpop.f32.mrf.mxu0
      %v2792 = vadd.f32 %v2763, %v2791
      %2793 = vmatmul.f32.gmra.mxu0 %v2679
      %v2794 = vpop.f32.mrf.mxu0
      %v2795 = vadd.f32 %v2766, %v2794
      %2796 = vmatmul.f32.gmra.mxu0 %v2682
      %v2797 = vpop.f32.mrf.mxu0
      %v2798 = vadd.f32 %v2769, %v2797
      %2799 = vdwg.mxu0
      %2804 = vrot.lane.b32.xlu0 %v2789, 7
      %v2805 = vpop.permute.xlu0 %2804
      %2806 = vrot.lane.b32.xlu0 %v2792, 7
      %v2807 = vpop.permute.xlu0 %2806
      %2808 = vrot.lane.b32.xlu0 %v2795, 7
      %v2809 = vpop.permute.xlu0 %2808
      %2810 = vrot.lane.b32.xlu0 %v2798, 7
      %v2811 = vpop.permute.xlu0 %2810
      %vm2816 = vcmask 56320
      %v2817 = vsel %vm2816, 0.0, %v2805
      %v2818 = vsel %vm2816, 0.0, %v2807
      %v2819 = vsel %vm2816, 0.0, %v2809
      %v2820 = vsel %vm2816, 0.0, %v2811
      %vm2821 = vcmask 515072
      %v2822 = vsel %vm2821, %v2817, 0.0
      %v2823 = vsel %vm2821, %v2818, 0.0
      %v2824 = vsel %vm2821, %v2819, 0.0
      %v2825 = vsel %vm2821, %v2820, 0.0
      %2830 = vrot.lane.b32.xlu0 %v2822, 127
      %v2831 = vpop.permute.xlu0 %2830
      %2832 = vrot.lane.b32.xlu0 %v2823, 127
      %v2833 = vpop.permute.xlu0 %2832
      %2834 = vrot.lane.b32.xlu0 %v2824, 127
      %v2835 = vpop.permute.xlu0 %2834
      %2836 = vrot.lane.b32.xlu0 %v2825, 127
      %v2837 = vpop.permute.xlu0 %2836
      %2842 = vrot.lane.b32.xlu0 %v2822, 126
      %v2843 = vpop.permute.xlu0 %2842
      %2844 = vrot.lane.b32.xlu0 %v2823, 126
      %v2845 = vpop.permute.xlu0 %2844
      %2846 = vrot.lane.b32.xlu0 %v2824, 126
      %v2847 = vpop.permute.xlu0 %2846
      %2848 = vrot.lane.b32.xlu0 %v2825, 126
      %v2849 = vpop.permute.xlu0 %2848
      %2854 = vrot.lane.b32.xlu0 %v2822, 125
      %v2855 = vpop.permute.xlu0 %2854
      %2856 = vrot.lane.b32.xlu0 %v2823, 125
      %v2857 = vpop.permute.xlu0 %2856
      %2858 = vrot.lane.b32.xlu0 %v2824, 125
      %v2859 = vpop.permute.xlu0 %2858
      %2860 = vrot.lane.b32.xlu0 %v2825, 125
      %v2861 = vpop.permute.xlu0 %2860
      %2866 = vrot.lane.b32.xlu0 %v2822, 124
      %v2867 = vpop.permute.xlu0 %2866
      %2868 = vrot.lane.b32.xlu0 %v2823, 124
      %v2869 = vpop.permute.xlu0 %2868
      %2870 = vrot.lane.b32.xlu0 %v2824, 124
      %v2871 = vpop.permute.xlu0 %2870
      %2872 = vrot.lane.b32.xlu0 %v2825, 124
      %v2873 = vpop.permute.xlu0 %2872
      %2878 = vrot.lane.b32.xlu0 %v2822, 123
      %v2879 = vpop.permute.xlu0 %2878
      %2880 = vrot.lane.b32.xlu0 %v2823, 123
      %v2881 = vpop.permute.xlu0 %2880
      %2882 = vrot.lane.b32.xlu0 %v2824, 123
      %v2883 = vpop.permute.xlu0 %2882
      %2884 = vrot.lane.b32.xlu0 %v2825, 123
      %v2885 = vpop.permute.xlu0 %2884
      %2890 = vrot.lane.b32.xlu0 %v2822, 122
      %v2891 = vpop.permute.xlu0 %2890
      %2892 = vrot.lane.b32.xlu0 %v2823, 122
      %v2893 = vpop.permute.xlu0 %2892
      %2894 = vrot.lane.b32.xlu0 %v2824, 122
      %v2895 = vpop.permute.xlu0 %2894
      %2896 = vrot.lane.b32.xlu0 %v2825, 122
      %v2897 = vpop.permute.xlu0 %2896
      %2902 = vrot.lane.b32.xlu0 %v2822, 121
      %v2903 = vpop.permute.xlu0 %2902
      %2904 = vrot.lane.b32.xlu0 %v2823, 121
      %v2905 = vpop.permute.xlu0 %2904
      %2906 = vrot.lane.b32.xlu0 %v2824, 121
      %v2907 = vpop.permute.xlu0 %2906
      %2908 = vrot.lane.b32.xlu0 %v2825, 121
      %v2909 = vpop.permute.xlu0 %2908
      %2914 = vrot.lane.b32.xlu0 %v2822, 120
      %v2915 = vpop.permute.xlu0 %2914
      %2916 = vrot.lane.b32.xlu0 %v2823, 120
      %v2917 = vpop.permute.xlu0 %2916
      %2918 = vrot.lane.b32.xlu0 %v2824, 120
      %v2919 = vpop.permute.xlu0 %2918
      %2920 = vrot.lane.b32.xlu0 %v2825, 120
      %v2921 = vpop.permute.xlu0 %2920
      %2926 = vrot.lane.b32.xlu0 %v2822, 119
      %v2927 = vpop.permute.xlu0 %2926
      %2928 = vrot.lane.b32.xlu0 %v2823, 119
      %v2929 = vpop.permute.xlu0 %2928
      %2930 = vrot.lane.b32.xlu0 %v2824, 119
      %v2931 = vpop.permute.xlu0 %2930
      %2932 = vrot.lane.b32.xlu0 %v2825, 119
      %v2933 = vpop.permute.xlu0 %2932
      %2938 = vrot.lane.b32.xlu0 %v2822, 118
      %v2939 = vpop.permute.xlu0 %2938
      %2940 = vrot.lane.b32.xlu0 %v2823, 118
      %v2941 = vpop.permute.xlu0 %2940
      %2942 = vrot.lane.b32.xlu0 %v2824, 118
      %v2943 = vpop.permute.xlu0 %2942
      %2944 = vrot.lane.b32.xlu0 %v2825, 118
      %v2945 = vpop.permute.xlu0 %2944
      %2950 = vrot.lane.b32.xlu0 %v2822, 117
      %v2951 = vpop.permute.xlu0 %2950
      %2952 = vrot.lane.b32.xlu0 %v2823, 117
      %v2953 = vpop.permute.xlu0 %2952
      %2954 = vrot.lane.b32.xlu0 %v2824, 117
      %v2955 = vpop.permute.xlu0 %2954
      %2956 = vrot.lane.b32.xlu0 %v2825, 117
      %v2957 = vpop.permute.xlu0 %2956
      %2962 = vrot.lane.b32.xlu0 %v2822, 116
      %v2963 = vpop.permute.xlu0 %2962
      %2964 = vrot.lane.b32.xlu0 %v2823, 116
      %v2965 = vpop.permute.xlu0 %2964
      %2966 = vrot.lane.b32.xlu0 %v2824, 116
      %v2967 = vpop.permute.xlu0 %2966
      %2968 = vrot.lane.b32.xlu0 %v2825, 116
      %v2969 = vpop.permute.xlu0 %2968
      %2974 = vrot.lane.b32.xlu0 %v2822, 115
      %v2975 = vpop.permute.xlu0 %2974
      %2976 = vrot.lane.b32.xlu0 %v2823, 115
      %v2977 = vpop.permute.xlu0 %2976
      %2978 = vrot.lane.b32.xlu0 %v2824, 115
      %v2979 = vpop.permute.xlu0 %2978
      %2980 = vrot.lane.b32.xlu0 %v2825, 115
      %v2981 = vpop.permute.xlu0 %2980
      %2986 = vrot.lane.b32.xlu0 %v2822, 114
      %v2987 = vpop.permute.xlu0 %2986
      %2988 = vrot.lane.b32.xlu0 %v2823, 114
      %v2989 = vpop.permute.xlu0 %2988
      %2990 = vrot.lane.b32.xlu0 %v2824, 114
      %v2991 = vpop.permute.xlu0 %2990
      %2992 = vrot.lane.b32.xlu0 %v2825, 114
      %v2993 = vpop.permute.xlu0 %2992
      %2998 = vrot.lane.b32.xlu0 %v2822, 113
      %v2999 = vpop.permute.xlu0 %2998
      %3000 = vrot.lane.b32.xlu0 %v2823, 113
      %v3001 = vpop.permute.xlu0 %3000
      %3002 = vrot.lane.b32.xlu0 %v2824, 113
      %v3003 = vpop.permute.xlu0 %3002
      %3004 = vrot.lane.b32.xlu0 %v2825, 113
      %v3005 = vpop.permute.xlu0 %3004
      %v3010 = vld [vmem:[%s2] sm:$0xff]
      %v3011 = vld [vmem:[%s2 + $0x8] sm:$0xff]
      %v3012 = vld [vmem:[%s2 + $0x10] sm:$0xff]
      %v3013 = vld [vmem:[%s2 + $0x18] sm:$0xff]
      %v3014 = vld [vmem:[%s2 + $0x20] sm:$0xff]
      %v3015 = vld [vmem:[%s2 + $0x28] sm:$0xff]
      %v3016 = vld [vmem:[%s2 + $0x30] sm:$0xff]
      %v3017 = vld [vmem:[%s2 + $0x38] sm:$0xff]
      %v3018 = vld [vmem:[%s2 + $0x40] sm:$0xff]
      %v3019 = vld [vmem:[%s2 + $0x48] sm:$0xff]
      %v3020 = vld [vmem:[%s2 + $0x50] sm:$0xff]
      %v3021 = vld [vmem:[%s2 + $0x58] sm:$0xff]
      %v3022 = vld [vmem:[%s2 + $0x60] sm:$0xff]
      %v3023 = vld [vmem:[%s2 + $0x68] sm:$0xff]
      %v3024 = vld [vmem:[%s2 + $0x70] sm:$0xff]
      %v3025 = vld [vmem:[%s2 + $0x78] sm:$0xff]
      %3026 = vset.pattern.permute.xlu0 1
      %3027 = vperm.xlu0 %3026, %v2263
      %v3028 = vpop.permute.xlu0 %3027
      %3030 = vset.pattern.permute.xlu0 1
      %3031 = vperm.xlu0 %3030, %v2264
      %v3032 = vpop.permute.xlu0 %3031
      %3034 = vset.pattern.permute.xlu0 1
      %3035 = vperm.xlu0 %3034, %v2265
      %v3036 = vpop.permute.xlu0 %3035
      %3038 = vset.pattern.permute.xlu0 1
      %3039 = vperm.xlu0 %3038, %v2266
      %v3040 = vpop.permute.xlu0 %3039
      %3042 = vmatpush.msra.mxu0 %v2861
      %3043 = vmatpush.msra.mxu0 %v2859
      %3044 = vmatpush.msra.mxu0 %v2857
      %3045 = vmatpush.msra.mxu0 %v2855
      %3046 = vmatpush.msra.mxu0 %v2849
      %3047 = vmatpush.msra.mxu0 %v2847
      %3048 = vmatpush.msra.mxu0 %v2845
      %3049 = vmatpush.msra.mxu0 %v2843
      %3050 = vmatpush.msra.mxu0 %v2837
      %3051 = vmatpush.msra.mxu0 %v2835
      %3052 = vmatpush.msra.mxu0 %v2833
      %3053 = vmatpush.msra.mxu0 %v2831
      %3054 = vmatpush.msra.mxu0 %v2825
      %3055 = vmatpush.msra.mxu0 %v2824
      %3056 = vmatpush.msra.mxu0 %v2823
      %3057 = vmatpush.msra.mxu0 %v2822
      %3058 = vmatmul.f32.gmra.mxu0 %v3010
      %v3059 = vpop.f32.mrf.mxu0
      %v3060 = vadd.f32 %v3028, %v3059
      %3061 = vmatmul.f32.gmra.mxu0 %v3014
      %v3062 = vpop.f32.mrf.mxu0
      %v3063 = vadd.f32 %v3032, %v3062
      %3064 = vmatmul.f32.gmra.mxu0 %v3018
      %v3065 = vpop.f32.mrf.mxu0
      %v3066 = vadd.f32 %v3036, %v3065
      %3067 = vmatmul.f32.gmra.mxu0 %v3022
      %v3068 = vpop.f32.mrf.mxu0
      %v3069 = vadd.f32 %v3040, %v3068
      %3070 = vdwg.mxu0
      %3071 = vmatpush.msra.mxu0 %v2909
      %3072 = vmatpush.msra.mxu0 %v2907
      %3073 = vmatpush.msra.mxu0 %v2905
      %3074 = vmatpush.msra.mxu0 %v2903
      %3075 = vmatpush.msra.mxu0 %v2897
      %3076 = vmatpush.msra.mxu0 %v2895
      %3077 = vmatpush.msra.mxu0 %v2893
      %3078 = vmatpush.msra.mxu0 %v2891
      %3079 = vmatpush.msra.mxu0 %v2885
      %3080 = vmatpush.msra.mxu0 %v2883
      %3081 = vmatpush.msra.mxu0 %v2881
      %3082 = vmatpush.msra.mxu0 %v2879
      %3083 = vmatpush.msra.mxu0 %v2873
      %3084 = vmatpush.msra.mxu0 %v2871
      %3085 = vmatpush.msra.mxu0 %v2869
      %3086 = vmatpush.msra.mxu0 %v2867
      %3087 = vmatmul.f32.gmra.mxu0 %v3011
      %v3088 = vpop.f32.mrf.mxu0
      %v3089 = vadd.f32 %v3060, %v3088
      %3090 = vmatmul.f32.gmra.mxu0 %v3015
      %v3091 = vpop.f32.mrf.mxu0
      %v3092 = vadd.f32 %v3063, %v3091
      %3093 = vmatmul.f32.gmra.mxu0 %v3019
      %v3094 = vpop.f32.mrf.mxu0
      %v3095 = vadd.f32 %v3066, %v3094
      %3096 = vmatmul.f32.gmra.mxu0 %v3023
      %v3097 = vpop.f32.mrf.mxu0
      %v3098 = vadd.f32 %v3069, %v3097
      %3099 = vdwg.mxu0
      %3100 = vmatpush.msra.mxu0 %v2957
      %3101 = vmatpush.msra.mxu0 %v2955
      %3102 = vmatpush.msra.mxu0 %v2953
      %3103 = vmatpush.msra.mxu0 %v2951
      %3104 = vmatpush.msra.mxu0 %v2945
      %3105 = vmatpush.msra.mxu0 %v2943
      %3106 = vmatpush.msra.mxu0 %v2941
      %3107 = vmatpush.msra.mxu0 %v2939
      %3108 = vmatpush.msra.mxu0 %v2933
      %3109 = vmatpush.msra.mxu0 %v2931
      %3110 = vmatpush.msra.mxu0 %v2929
      %3111 = vmatpush.msra.mxu0 %v2927
      %3112 = vmatpush.msra.mxu0 %v2921
      %3113 = vmatpush.msra.mxu0 %v2919
      %3114 = vmatpush.msra.mxu0 %v2917
      %3115 = vmatpush.msra.mxu0 %v2915
      %3116 = vmatmul.f32.gmra.mxu0 %v3012
      %v3117 = vpop.f32.mrf.mxu0
      %v3118 = vadd.f32 %v3089, %v3117
      %3119 = vmatmul.f32.gmra.mxu0 %v3016
      %v3120 = vpop.f32.mrf.mxu0
      %v3121 = vadd.f32 %v3092, %v3120
      %3122 = vmatmul.f32.gmra.mxu0 %v3020
      %v3123 = vpop.f32.mrf.mxu0
      %v3124 = vadd.f32 %v3095, %v3123
      %3125 = vmatmul.f32.gmra.mxu0 %v3024
      %v3126 = vpop.f32.mrf.mxu0
      %v3127 = vadd.f32 %v3098, %v3126
      %3128 = vdwg.mxu0
      %3129 = vmatpush.msra.mxu0 %v3005
      %3130 = vmatpush.msra.mxu0 %v3003
      %3131 = vmatpush.msra.mxu0 %v3001
      %3132 = vmatpush.msra.mxu0 %v2999
      %3133 = vmatpush.msra.mxu0 %v2993
      %3134 = vmatpush.msra.mxu0 %v2991
      %3135 = vmatpush.msra.mxu0 %v2989
      %3136 = vmatpush.msra.mxu0 %v2987
      %3137 = vmatpush.msra.mxu0 %v2981
      %3138 = vmatpush.msra.mxu0 %v2979
      %3139 = vmatpush.msra.mxu0 %v2977
      %3140 = vmatpush.msra.mxu0 %v2975
      %3141 = vmatpush.msra.mxu0 %v2969
      %3142 = vmatpush.msra.mxu0 %v2967
      %3143 = vmatpush.msra.mxu0 %v2965
      %3144 = vmatpush.msra.mxu0 %v2963
      %3145 = vmatmul.f32.gmra.mxu0 %v3013
      %v3146 = vpop.f32.mrf.mxu0
      %v3147 = vadd.f32 %v3118, %v3146
      %3148 = vmatmul.f32.gmra.mxu0 %v3017
      %v3149 = vpop.f32.mrf.mxu0
      %v3150 = vadd.f32 %v3121, %v3149
      %3151 = vmatmul.f32.gmra.mxu0 %v3021
      %v3152 = vpop.f32.mrf.mxu0
      %v3153 = vadd.f32 %v3124, %v3152
      %3154 = vmatmul.f32.gmra.mxu0 %v3025
      %v3155 = vpop.f32.mrf.mxu0
      %v3156 = vadd.f32 %v3127, %v3155
      %3157 = vdwg.mxu0
      %vm3158 = vcmp.gt.f32.partialorder %v3147, 0.0
      %vm3159 = vcmp.gt.f32.partialorder %v3150, 0.0
      %vm3160 = vcmp.gt.f32.partialorder %v3153, 0.0
      %vm3161 = vcmp.gt.f32.partialorder %v3156, 0.0
      %v3162 = vmin.f32 %v3147, 0.0
      %v3163 = vmin.f32 %v3150, 0.0
      %v3164 = vmin.f32 %v3153, 0.0
      %v3165 = vmin.f32 %v3156, 0.0
      %v3166 = vmul.f32 %v3162, 1.442695
      %v3167 = vpow.pop %v3166
      %v3168 = vmul.f32 %v3163, 1.442695
      %v3169 = vpow.pop %v3168
      %v3170 = vmul.f32 %v3164, 1.442695
      %v3171 = vpow.pop %v3170
      %v3172 = vmul.f32 %v3165, 1.442695
      %v3173 = vpow.pop %v3172
      %v3174 = vsub.f32 %v3167, 1.0
      %v3175 = vsub.f32 %v3169, 1.0
      %v3176 = vsub.f32 %v3171, 1.0
      %v3177 = vsub.f32 %v3173, 1.0
      %v3178 = vsel %vm3158, %v3147, %v3174
      %v3179 = vsel %vm3159, %v3150, %v3175
      %v3180 = vsel %vm3160, %v3153, %v3176
      %v3181 = vsel %vm3161, %v3156, %v3177
      %v3182 = vld [vmem:[%s5] sm:$0xff]
      %v3183 = vld [vmem:[%s5 + $0x8] sm:$0xff]
      %v3184 = vld [vmem:[%s5 + $0x10] sm:$0xff]
      %v3185 = vld [vmem:[%s5 + $0x18] sm:$0xff]
      %v3186 = vld [vmem:[%s5 + $0x20] sm:$0xff]
      %v3187 = vld [vmem:[%s5 + $0x28] sm:$0xff]
      %v3188 = vld [vmem:[%s5 + $0x30] sm:$0xff]
      %vm3189 = vcmask 457728
      %v3191 = vsel %vm3189, %v3178, 0
      %v3194 = vsel %vm3189, %v3179, 0
      %v3197 = vsel %vm3189, %v3180, 0
      %v3200 = vsel %vm3189, %v3181, 0
      %3202 = vmatpush.msra.mxu0 0.0
      %3203 = vmatpush.msra.mxu0 0.0
      %3204 = vmatpush.msra.mxu0 0.0
      %3205 = vmatpush.msra.mxu0 0.0
      %3206 = vmatpush.msra.mxu0 0.0
      %3207 = vmatpush.msra.mxu0 0.0
      %3208 = vmatpush.msra.mxu0 0.0
      %3209 = vmatpush.msra.mxu0 0.0
      %3210 = vmatpush.msra.mxu0 0.0
      %3211 = vmatpush.msra.mxu0 %v3188
      %3212 = vmatpush.msra.mxu0 %v3187
      %3213 = vmatpush.msra.mxu0 %v3186
      %3214 = vmatpush.msra.mxu0 %v3185
      %3215 = vmatpush.msra.mxu0 %v3184
      %3216 = vmatpush.msra.mxu0 %v3183
      %3217 = vmatpush.msra.mxu0 %v3182
      %3218 = vmatmul.f32.gmra.mxu0 %v3191
      %v3219 = vpop.f32.mrf.mxu0
      %v3220 = vadd.f32 0.0, %v3219
      %3221 = vmatmul.f32.gmra.mxu0 %v3194
      %v3222 = vpop.f32.mrf.mxu0
      %v3223 = vadd.f32 0.0, %v3222
      %3224 = vmatmul.f32.gmra.mxu0 %v3197
      %v3225 = vpop.f32.mrf.mxu0
      %v3226 = vadd.f32 0.0, %v3225
      %3227 = vmatmul.f32.gmra.mxu0 %v3200
      %v3228 = vpop.f32.mrf.mxu0
      %v3229 = vadd.f32 0.0, %v3228
      %3230 = vdwg.mxu0
      %vm3231 = vcmask 64512
      %3232 = vst.msk [vmem:[%s251] sm:$0xff] %vm3231, %v3220
      %3233 = vst.msk [vmem:[%s251 + $0x8] sm:$0xff] %vm3231, %v3223
      %3234 = vst.msk [vmem:[%s251 + $0x10] sm:$0xff] %vm3231, %v3226
      %3235 = vst.msk [vmem:[%s251 + $0x18] sm:$0xff] %vm3231, %v3229
      %p3236 = scmp.lt.s32.totalorder %s17, 1
      %s3237 = scalar_select %p3236, %s17, 1
      %s3238 = smul.addr %s3237, 4
      %s3239 = smul.addr %s3238, 8
      %s3240 = scalar_lea.vmem %s6, %s3239
      // Predicated region
      $region45: #{atcnet_forward_pallas.2} parent=43 // pred_check
        %p3241 = pneg %p166
      $region46: #{atcnet_forward_pallas.2} parent=43 // pred_check_branch
        %3243 = sbr.rel (%p3241) target = $region48
      $region47: #{atcnet_forward_pallas.2} parent=43 // pred_region
        _
      $region48: #{atcnet_forward_pallas.2} parent=43 // pred_fallthru
        _
    $region44: #{atcnet_forward_pallas.2} parent=5 // pred_fallthru
      _
    %p3244 = scmp.le.s32.totalorder 2, %s12
    // Predicated region
    $region49: #{atcnet_forward_pallas.2} parent=5 // pred_check
      %p3245 = pneg %p3244
    $region50: #{atcnet_forward_pallas.2} parent=5 // pred_check_branch
      %3247 = sbr.rel (%p3245) target = $region52
    $region51: #{atcnet_forward_pallas.2} parent=5 // pred_region
      %s3248 = ssub.s32 %s12, 2
      // Predicated region
      $region53: #{atcnet_forward_pallas.2} parent=51 // pred_check
        %p3249 = pneg %p172
      $region54: #{atcnet_forward_pallas.2} parent=51 // pred_check_branch
        %3251 = sbr.rel (%p3249) target = $region56
      $region55: #{atcnet_forward_pallas.2} parent=51 // pred_region
        %p3252 = scmp.lt.s32.totalorder %s18, 1
        %s3253 = scalar_select %p3252, %s18, 1
        %s3254 = smul.addr %s3253, 4
        %s3255 = smul.addr %s3254, 8
        %s3256 = scalar_lea.vmem %s6, %s3255
      $region56: #{atcnet_forward_pallas.2} parent=51 // pred_fallthru
        _
    $region52: #{atcnet_forward_pallas.2} parent=5 // pred_fallthru
      _
  $region6: #{atcnet_forward_pallas.2} parent=0 // loop_footer
    %s16 = sadd.s32 1, %s12
  $region7: #{atcnet_forward_pallas.2} parent=0 // loop_footer_branch
    %11 = sbr.rel target = $region3
  $region8: #{atcnet_forward_pallas.2} parent=0 // loop_exit
    _

</llo_original>
